<compile_context>
chip_gen: v5e
topology: v5e:2x2
jax: 0.10.0
libtpu: 0.0.40
codegen_flags: <defaults>
</compile_context>

<pallas_src>
import functools
import math

import jax
import jax.numpy as jnp
from jax.experimental import pallas as pl
from jax.experimental.pallas import tpu as pltpu

# bf16 MXU operands + bf16 stored weights/activations (f32 accumulation and
# f32 LayerNorm/softmax).  Set to jnp.float32 for exact f32 reference math.
COMPUTE_DTYPE = jnp.bfloat16
NEG_INF = -1e10
LN_EPS = 1e-5
VOCAB_LANE_TILE = 512   # vocab weight is pre-padded to a multiple of this


# ----------------------------------------------------------------------------
# Small in-kernel helpers
# ----------------------------------------------------------------------------
def _mm(a, b):
    """MXU matmul: bf16 operands, f32 accumulation."""
    return jnp.dot(a.astype(COMPUTE_DTYPE), b.astype(COMPUTE_DTYPE),
                   preferred_element_type=jnp.float32)


def _qkt(a, b):
    """a @ b.T without materializing a transpose (contract last dims)."""
    return jax.lax.dot_general(
        a.astype(COMPUTE_DTYPE), b.astype(COMPUTE_DTYPE),
        (((1,), (1,)), ((), ())), preferred_element_type=jnp.float32)


def _layernorm(y, g, b):
    """PyTorch LayerNorm over the last dim (biased variance), f32 math."""
    mu = jnp.mean(y, axis=-1, keepdims=True)
    var = jnp.mean(jnp.square(y - mu), axis=-1, keepdims=True)
    return (y - mu) * jax.lax.rsqrt(var + LN_EPS) * g + b


def _mha_into(ctx_ref, q, k, v, allow, n_heads, inv_scale, collect_probs):
    """Multi-head attention; each head's context is stored into its static lane
    slice of ctx_ref (a (Lq, D) f32 VMEM scratch) so the caller can run a single
    full-D output projection.  Returns per-head probs if requested.

    TODO(synk): flash-style online softmax over Lk chunks for long sequences.
    """
    D = q.shape[-1]
    Dh = D // n_heads
    probs = []
    for h in range(n_heads):
        sl = slice(h * Dh, (h + 1) * Dh)
        energy = _qkt(q[:, sl], k[:, sl]) * inv_scale           # (Lq, Lk) f32
        energy = jnp.where(allow, energy, NEG_INF)              # masked_fill
        mx = jnp.max(energy, axis=-1, keepdims=True)
        e = jnp.exp(energy - mx)
        p = e * pl.reciprocal(jnp.sum(e, axis=-1, keepdims=True), approx=True)
        ctx_ref[:, sl] = _mm(p, v[:, sl])                       # (Lq, Dh) f32
        if collect_probs:
            probs.append(p)
    return probs


# ----------------------------------------------------------------------------
# Fused decoder-layer kernel: grid = (batch, pf_dim chunks)
# ----------------------------------------------------------------------------
def _decoder_layer_kernel(
    # per-batch activations + compact padding-mask rows
    trg_ref, enc_ref, tpad_ref, spad_ref,
    # masked self-attention + LN1
    sa_wqkv, sa_bqkv, sa_wo, sa_bo, ln1_g, ln1_b,
    # encoder (cross) attention + LN2
    ca_wq, ca_bq, ca_wkv, ca_bkv, ca_wo, ca_bo, ln2_g, ln2_b,
    # position-wise feed-forward (W1/b1/W2 are pf-chunked) + LN3
    ff_w1, ff_b1, ff_w2, ff_b2, ln3_g, ln3_b,
    # outputs (out [, attn]) then scratch (x_sc, acc_sc)
    *refs,
    n_heads, inv_scale, with_attn,
):
    if with_attn:
        out_ref, attn_ref, x_sc, acc_sc = refs
    else:
        out_ref, x_sc, acc_sc = refs
        attn_ref = None

    c = pl.program_id(1)          # pf-chunk index ("arbitrary", innermost)

    @pl.when(c == 0)
    def _attn_and_init():
        trg = trg_ref[...].astype(jnp.float32)                  # (Lt, D) f32
        Lt, D = trg.shape

        # Masks rebuilt in-kernel: causal from iota, padding from (1, L) rows.
        rows = jax.lax.broadcasted_iota(jnp.int32, (Lt, Lt), 0)
        cols = jax.lax.broadcasted_iota(jnp.int32, (Lt, Lt), 1)
        t_allow = jnp.logical_and(cols <= rows, tpad_ref[...] > 0.5)  # (Lt,Lt)
        s_allow = spad_ref[...] > 0.5                                 # (1, Ls)

        # ---- masked self-attention: fused QKV, one full-D out-projection ----
        qkv = _mm(trg_ref[...], sa_wqkv[...]) + sa_bqkv[...]
        q, k, v = qkv[:, :D], qkv[:, D:2 * D], qkv[:, 2 * D:]
        # acc_sc doubles as the per-head context staging buffer here.
        _mha_into(acc_sc, q, k, v, t_allow, n_heads, inv_scale, False)
        sa_out = _mm(acc_sc[...], sa_wo[...]) + sa_bo[...]
        x = _layernorm(trg + sa_out, ln1_g[...], ln1_b[...])

        # ---- encoder (cross) attention: fused KV projection ----
        qc = _mm(x, ca_wq[...]) + ca_bq[...]
        kv = _mm(enc_ref[...], ca_wkv[...]) + ca_bkv[...]
        probs = _mha_into(acc_sc, qc, kv[:, :D], kv[:, D:], s_allow,
                          n_heads, inv_scale, with_attn)
        ca_out = _mm(acc_sc[...], ca_wo[...]) + ca_bo[...]
        x = _layernorm(x + ca_out, ln2_g[...], ln2_b[...])

        x_sc[...] = x                                            # carry across pf chunks
        acc_sc[...] = jnp.zeros(acc_sc.shape, acc_sc.dtype)      # now the FFN accumulator
        if with_attn:
            for h in range(n_heads):
                attn_ref[h] = probs[h].astype(attn_ref.dtype)

    # ---- FFN chunk: acc += relu(x @ W1[:, c] + b1[:, c]) @ W2[c, :] ----
    x = x_sc[...]
    h_mid = jnp.maximum(_mm(x, ff_w1[...]) + ff_b1[...], 0.0)
    acc_sc[...] += _mm(h_mid, ff_w2[...])

    @pl.when(c == pl.num_programs(1) - 1)
    def _finalize():
        y = _layernorm(x_sc[...] + acc_sc[...] + ff_b2[...],
                       ln3_g[...], ln3_b[...])
        out_ref[...] = y.astype(out_ref.dtype)


# ----------------------------------------------------------------------------
# Feature detection / device-dependent knobs
# ----------------------------------------------------------------------------
@functools.lru_cache(maxsize=1)
def _single_buffer_supported():
    """Probe whether pipeline_mode=pl.Buffered(1) works for single-buffered
    constant weight blocks (halves weight VMEM); fall back cleanly if not."""
    if not hasattr(pl, "Buffered"):
        return False

    def _probe(x_ref, o_ref):
        o_ref[...] = x_ref[...] + 1.0

    try:
        spec = pl.BlockSpec((8, 128), lambda i: (0, 0),
                            pipeline_mode=pl.Buffered(buffer_count=1))
        fn = pl.pallas_call(
            _probe,
            grid=(2,),
            in_specs=[spec],
            out_specs=pl.BlockSpec((8, 128), lambda i: (0, 0)),
            out_shape=jax.ShapeDtypeStruct((8, 128), jnp.float32),
        )
        jax.jit(fn).lower(jax.ShapeDtypeStruct((8, 128), jnp.float32)).compile()
        return True
    except Exception:
        return False


@functools.lru_cache(maxsize=1)
def _vmem_limit_bytes():
    """Explicit scoped-VMEM budget per generation (v7x has 64 MiB physical)."""
    try:
        kind = jax.devices()[0].device_kind.lower()
    except Exception:
        kind = ""
    if "v5" in kind or "v6" in kind:
        return 100 * 1024 * 1024
    return 48 * 1024 * 1024


def _pick_pf_tile(pf):
    for cand in (1024, 512, 256, 128):
        if pf % cand == 0 and pf // cand >= 2:
            return cand
    return pf


def _pick_row_tile(m):
    for cand in (256, 128, 64, 32, 16, 8):
        if m % cand == 0 and m // cand >= 2:
            return cand
    return m


# ----------------------------------------------------------------------------
# Decoder layer wrapper
# ----------------------------------------------------------------------------
def decoder_layer(trg, enc, tpad, spad, lp, n_heads, with_attn):
    B, Lt, D = trg.shape
    Ls = enc.shape[1]
    H = n_heads
    pf = lp["ff_w1"].shape[1]
    tpf = _pick_pf_tile(pf)
    n_pf = pf // tpf
    inv_scale = 1.0 / math.sqrt(D // n_heads)

    sa, ca = lp["sa"], lp["ca"]
    const_args = (sa["wqkv"], sa["bqkv"], sa["wo"], sa["bo"],
                  lp["ln1_g"], lp["ln1_b"],
                  ca["wq"], ca["bq"], ca["wkv"], ca["bkv"], ca["wo"], ca["bo"],
                  lp["ln2_g"], lp["ln2_b"])
    tail_const = (lp["ff_b2"], lp["ln3_g"], lp["ln3_b"])

    single_buf = _single_buffer_supported()

    def _const_spec(shape):
        index_map = lambda b, c: (0,) * len(shape)
        if single_buf:
            # Same block for every grid point -> one VMEM copy is enough.
            return pl.BlockSpec(shape, index_map,
                                pipeline_mode=pl.Buffered(buffer_count=1))
        return pl.BlockSpec(shape, index_map)

    in_specs = [
        pl.BlockSpec((None, Lt, D), lambda b, c: (b, 0, 0)),     # trg (bf16)
        pl.BlockSpec((None, Ls, D), lambda b, c: (b, 0, 0)),     # enc_src (bf16)
        pl.BlockSpec((None, 1, Lt), lambda b, c: (b, 0, 0)),     # target pad row
        pl.BlockSpec((None, 1, Ls), lambda b, c: (b, 0, 0)),     # source pad row
        *[_const_spec(w.shape) for w in const_args],
        pl.BlockSpec((D, tpf), lambda b, c: (0, c)),             # ff_w1 chunk
        pl.BlockSpec((1, tpf), lambda b, c: (0, c)),             # ff_b1 chunk
        pl.BlockSpec((tpf, D), lambda b, c: (c, 0)),             # ff_w2 chunk
        *[_const_spec(w.shape) for w in tail_const],
    ]

    out_specs = pl.BlockSpec((None, Lt, D), lambda b, c: (b, 0, 0))
    out_shape = jax.ShapeDtypeStruct((B, Lt, D), COMPUTE_DTYPE)
    if with_attn:
        out_specs = [out_specs,
                     pl.BlockSpec((None, H, Lt, Ls), lambda b, c: (b, 0, 0, 0))]
        out_shape = (out_shape,
                     jax.ShapeDtypeStruct((B, H, Lt, Ls), COMPUTE_DTYPE))

    kernel = functools.partial(_decoder_layer_kernel, n_heads=n_heads,
                               inv_scale=inv_scale, with_attn=with_attn)

    return pl.pallas_call(
        kernel,
        grid=(B, n_pf),
        in_specs=in_specs,
        out_specs=out_specs,
        out_shape=out_shape,
        scratch_shapes=[
            pltpu.VMEM((Lt, D), jnp.float32),   # x after cross-attn Add&Norm
            pltpu.VMEM((Lt, D), jnp.float32),   # head-ctx staging / FFN accumulator
        ],
        compiler_params=pltpu.CompilerParams(
            dimension_semantics=("parallel", "arbitrary"),
            vmem_limit_bytes=_vmem_limit_bytes()),
    )(trg, enc, tpad, spad, *const_args,
      lp["ff_w1"], lp["ff_b1"], lp["ff_w2"], *tail_const)


# ----------------------------------------------------------------------------
# Final vocab projection: (rows x lane-padded-N) parallel grid
# ----------------------------------------------------------------------------
def _vocab_kernel(x_ref, w_ref, b_ref, o_ref):
    o_ref[...] = (_mm(x_ref[...], w_ref[...]) + b_ref[...]).astype(o_ref.dtype)


def vocab_projection(x, w_padded, b_padded):
    """x: (M, K) bf16 @ w: (K, Np) bf16 + b: (1, Np); Np pre-padded at init."""
    M, K = x.shape
    Np = w_padded.shape[1]
    tm = _pick_row_tile(M)
    tn = min(VOCAB_LANE_TILE, Np)
    return pl.pallas_call(
        _vocab_kernel,
        grid=(M // tm, Np // tn),
        in_specs=[
            pl.BlockSpec((tm, K), lambda i, j: (i, 0)),
            pl.BlockSpec((K, tn), lambda i, j: (0, j)),
            pl.BlockSpec((1, tn), lambda i, j: (0, j)),
        ],
        out_specs=pl.BlockSpec((tm, tn), lambda i, j: (i, j)),
        out_shape=jax.ShapeDtypeStruct((M, Np), jnp.float32),
        compiler_params=pltpu.CompilerParams(
            dimension_semantics=("parallel", "parallel"),
            vmem_limit_bytes=_vmem_limit_bytes()),
    )(x, w_padded, b_padded)


# ----------------------------------------------------------------------------
# Decoder forward (XLA glue: embedding gather + mask-row extraction)
# ----------------------------------------------------------------------------
def decoder_forward(params, trg_tokens, enc_src, trg_mask, src_mask,
                    *, n_heads, output_dim):
    """trg_tokens: (B, Lt) int32; enc_src: (B, Ls, D);
    trg_mask: (B,1,Lt,Lt); src_mask: (B,1,1,Ls)."""
    B, Lt = trg_tokens.shape
    Ls = enc_src.shape[1]
    D = params["tok_emb"].shape[1]
    scale = math.sqrt(D)

    # Embedding gather + scale + positional add stay in XLA; dropout == identity.
    tok = jnp.take(params["tok_emb"], trg_tokens, axis=0)          # (B, Lt, D)
    pos = params["pos_emb"][:Lt][None, :, :]
    trg = (tok * scale + pos).astype(COMPUTE_DTYPE)
    enc = enc_src.astype(COMPUTE_DTYPE)

    # Compact masks: only O(B*L) pad rows are streamed; the causal part is
    # regenerated in-kernel.  Assumes the standard trg_mask = causal AND
    # per-token-padding construction (its last row is exactly the pad row).
    tpad = trg_mask[:, 0, Lt - 1, :].astype(jnp.float32).reshape(B, 1, Lt)
    spad = src_mask.astype(jnp.float32).reshape(B, 1, Ls)

    attention = None
    n_layers = len(params["layers"])
    for li, lp in enumerate(params["layers"]):
        last = li == n_layers - 1
        res = decoder_layer(trg, enc, tpad, spad, lp, n_heads, last)
        if last:
            trg, attention = res      # only the final layer emits attention
        else:
            trg = res

    logits = vocab_projection(trg.reshape(B * Lt, D),
                              params["w_out"], params["b_out"])
    logits = logits[:, :output_dim].reshape(B, Lt, output_dim)
    return logits, attention.astype(jnp.float32)


# ----------------------------------------------------------------------------
# Deterministic parameter init (bf16 weights, fused QKV/KV, padded vocab W)
# ----------------------------------------------------------------------------
def _init_linear(key, d_in, d_out):
    k1, k2 = jax.random.split(key)
    w = (jax.random.normal(k1, (d_in, d_out), jnp.float32) * 0.02
         ).astype(COMPUTE_DTYPE)
    b = jax.random.normal(k2, (1, d_out), jnp.float32) * 0.02
    return w, b


def _init_self_attn(key, D):
    ks = jax.random.split(key, 4)
    wq, bq = _init_linear(ks[0], D, D)
    wk, bk = _init_linear(ks[1], D, D)
    wv, bv = _init_linear(ks[2], D, D)
    wo, bo = _init_linear(ks[3], D, D)
    return dict(wqkv=jnp.concatenate([wq, wk, wv], axis=1),
                bqkv=jnp.concatenate([bq, bk, bv], axis=1),
                wo=wo, bo=bo)


def _init_cross_attn(key, D):
    ks = jax.random.split(key, 4)
    wq, bq = _init_linear(ks[0], D, D)
    wk, bk = _init_linear(ks[1], D, D)
    wv, bv = _init_linear(ks[2], D, D)
    wo, bo = _init_linear(ks[3], D, D)
    return dict(wq=wq, bq=bq,
                wkv=jnp.concatenate([wk, wv], axis=1),
                bkv=jnp.concatenate([bk, bv], axis=1),
                wo=wo, bo=bo)


def init_decoder_params(key, output_dim, hid_dim, n_layers, n_heads, pf_dim,
                        max_length=100):
    keys = jax.random.split(key, 3 + n_layers)
    tok_emb = jax.random.normal(keys[0], (output_dim, hid_dim), jnp.float32) * 0.02
    pos_emb = jax.random.normal(keys[1], (max_length, hid_dim), jnp.float32) * 0.02
    # Vocab projection weight pre-padded (pad hoisted out of the forward pass)
    # to a lane-dense multiple of VOCAB_LANE_TILE.
    w_out, b_out = _init_linear(keys[2], hid_dim, output_dim)
    n_pad = (-output_dim) % VOCAB_LANE_TILE
    w_out = jnp.pad(w_out, ((0, 0), (0, n_pad)))
    b_out = jnp.pad(b_out, ((0, 0), (0, n_pad)))

    layers = []
    for li in range(n_layers):
        lk = jax.random.split(keys[3 + li], 4)
        w1, b1 = _init_linear(lk[2], hid_dim, pf_dim)
        w2, b2 = _init_linear(lk[3], pf_dim, hid_dim)
        ones = jnp.ones((1, hid_dim), jnp.float32)
        zeros = jnp.zeros((1, hid_dim), jnp.float32)
        layers.append(dict(
            sa=_init_self_attn(lk[0], hid_dim),
            ca=_init_cross_attn(lk[1], hid_dim),
            ff_w1=w1, ff_b1=b1, ff_w2=w2, ff_b2=b2,
            ln1_g=ones, ln1_b=zeros,
            ln2_g=ones, ln2_b=zeros,
            ln3_g=ones, ln3_b=zeros,
        ))
    return dict(tok_emb=tok_emb, pos_emb=pos_emb, w_out=w_out, b_out=b_out,
                layers=layers)


# ----------------------------------------------------------------------------
if __name__ == "__main__":
    B, trg_len, src_len = 2, 8, 8
    output_dim, hid_dim, n_layers, n_heads, pf_dim = 50, 32, 2, 4, 64

    root = jax.random.PRNGKey(0)
    k_params, k_trg, k_enc = jax.random.split(root, 3)

    params = init_decoder_params(
        k_params, output_dim, hid_dim, n_layers, n_heads, pf_dim, max_length=100)

    trg_tokens = jax.random.randint(k_trg, (B, trg_len), 0, output_dim, jnp.int32)
    enc_src = jax.random.normal(k_enc, (B, src_len, hid_dim), jnp.float32)

    # causal target mask [B, 1, Lt, Lt]; padding source mask [B, 1, 1, Ls]
    trg_mask = jnp.broadcast_to(
        jnp.tril(jnp.ones((trg_len, trg_len), jnp.float32)),
        (B, 1, trg_len, trg_len))
    src_mask = jnp.ones((B, 1, 1, src_len), jnp.float32)
    src_mask = src_mask.at[1, 0, 0, src_len - 2:].set(0.0)

    _single_buffer_supported()   # warm the feature probe outside jit tracing

    fwd = jax.jit(functools.partial(decoder_forward,
                                    n_heads=n_heads, output_dim=output_dim))
    output, attention = fwd(params, trg_tokens, enc_src, trg_mask, src_mask)
    jax.block_until_ready((output, attention))

    assert output.shape == (B, trg_len, output_dim)
    assert attention.shape == (B, n_heads, trg_len, src_len)
    assert bool(jnp.all(jnp.isfinite(output)))
    assert bool(jnp.all(jnp.isfinite(attention)))
    print("KERNEL_OK")
</pallas_src>

<mosaic_0001>
module attributes {stable_mosaic.version = 11 : i64} {
  func.func @_vocab_kernel(%arg0: i32, %arg1: i32, %arg2: memref<8x32xbf16, #tpu.memory_space<vmem>>, %arg3: memref<32x512xbf16, #tpu.memory_space<vmem>>, %arg4: memref<1x512xf32, #tpu.memory_space<vmem>>, %arg5: memref<8x512xf32, #tpu.memory_space<vmem>>) attributes {dimension_semantics = [#tpu.dimension_semantics<parallel>, #tpu.dimension_semantics<parallel>], iteration_bounds = array<i64: 2, 1>, scalar_prefetch = 0 : i64, scratch_operands = 0 : i64, tpu.core_type = #tpu.core_type<tc>, window_params = [{transform_indices = @transform_0, window_bounds = array<i64: 8, 32>}, {transform_indices = @transform_1, window_bounds = array<i64: 32, 512>}, {transform_indices = @transform_2, window_bounds = array<i64: 1, 512>}, {transform_indices = @transform_3, window_bounds = array<i64: 8, 512>}]} {
    %c0 = arith.constant 0 : index
    %c0_0 = arith.constant 0 : index
    %0 = vector.load %arg2[%c0, %c0_0] : memref<8x32xbf16, #tpu.memory_space<vmem>>, vector<8x32xbf16>
    %c0_1 = arith.constant 0 : index
    %c0_2 = arith.constant 0 : index
    %1 = vector.load %arg3[%c0_1, %c0_2] : memref<32x512xbf16, #tpu.memory_space<vmem>>, vector<32x512xbf16>
    %cst = arith.constant dense<0.000000e+00> : vector<8x512xf32>
    %2 = tpu.matmul %0, %1, %cst {dimension_numbers = #tpu.dot_dimension_numbers<[1], [0], [0], [1], [0, 0, 1, 1], [], []>} : vector<8x32xbf16>, vector<32x512xbf16>, vector<8x512xf32> -> vector<8x512xf32>
    %c0_3 = arith.constant 0 : index
    %c0_4 = arith.constant 0 : index
    %3 = vector.load %arg4[%c0_3, %c0_4] : memref<1x512xf32, #tpu.memory_space<vmem>>, vector<1x512xf32>
    %4 = vector.broadcast %3 : vector<1x512xf32> to vector<8x512xf32>
    %5 = arith.addf %2, %4 : vector<8x512xf32>
    %c0_5 = arith.constant 0 : index
    %c0_6 = arith.constant 0 : index
    %6 = vector.load %arg5[%c0_5, %c0_6] : memref<8x512xf32, #tpu.memory_space<vmem>>, vector<8x512xf32>
    tpu.vector_store %arg5[%c0_5, %c0_6], %5 {strides = array<i32>} : memref<8x512xf32, #tpu.memory_space<vmem>>, vector<8x512xf32>,
    return
  }
  func.func @transform_0(%arg0: i32, %arg1: i32) -> (i32, i32) {
    %c0_i32 = arith.constant 0 : i32
    %c0_i32_0 = arith.constant 0 : i32
    return %arg0, %c0_i32 : i32, i32
  }
  func.func @transform_1(%arg0: i32, %arg1: i32) -> (i32, i32) {
    %c0_i32 = arith.constant 0 : i32
    %c0_i32_0 = arith.constant 0 : i32
    return %c0_i32, %arg1 : i32, i32
  }
  func.func @transform_2(%arg0: i32, %arg1: i32) -> (i32, i32) {
    %c0_i32 = arith.constant 0 : i32
    %c0_i32_0 = arith.constant 0 : i32
    return %c0_i32, %arg1 : i32, i32
  }
  func.func @transform_3(%arg0: i32, %arg1: i32) -> (i32, i32) {
    %c0_i32 = arith.constant 0 : i32
    return %arg0, %arg1 : i32, i32
  }
}

module attributes {stable_mosaic.version = 11 : i64} {
  func.func @_decoder_layer_kernel(%arg0: i32, %arg1: i32, %arg2: memref<1x8x32xbf16, #tpu.memory_space<vmem>>, %arg3: memref<1x8x32xbf16, #tpu.memory_space<vmem>>, %arg4: memref<1x1x8xf32, #tpu.memory_space<vmem>>, %arg5: memref<1x1x8xf32, #tpu.memory_space<vmem>>, %arg6: memref<32x96xbf16, #tpu.memory_space<vmem>>, %arg7: memref<1x96xf32, #tpu.memory_space<vmem>>, %arg8: memref<32x32xbf16, #tpu.memory_space<vmem>>, %arg9: memref<1x32xf32, #tpu.memory_space<vmem>>, %arg10: memref<1x32xf32, #tpu.memory_space<vmem>>, %arg11: memref<1x32xf32, #tpu.memory_space<vmem>>, %arg12: memref<32x32xbf16, #tpu.memory_space<vmem>>, %arg13: memref<1x32xf32, #tpu.memory_space<vmem>>, %arg14: memref<32x64xbf16, #tpu.memory_space<vmem>>, %arg15: memref<1x64xf32, #tpu.memory_space<vmem>>, %arg16: memref<32x32xbf16, #tpu.memory_space<vmem>>, %arg17: memref<1x32xf32, #tpu.memory_space<vmem>>, %arg18: memref<1x32xf32, #tpu.memory_space<vmem>>, %arg19: memref<1x32xf32, #tpu.memory_space<vmem>>, %arg20: memref<32x64xbf16, #tpu.memory_space<vmem>>, %arg21: memref<1x64xf32, #tpu.memory_space<vmem>>, %arg22: memref<64x32xbf16, #tpu.memory_space<vmem>>, %arg23: memref<1x32xf32, #tpu.memory_space<vmem>>, %arg24: memref<1x32xf32, #tpu.memory_space<vmem>>, %arg25: memref<1x32xf32, #tpu.memory_space<vmem>>, %arg26: memref<1x8x32xbf16, #tpu.memory_space<vmem>>, %arg27: memref<8x32xf32, #tpu.memory_space<vmem>>, %arg28: memref<8x32xf32, #tpu.memory_space<vmem>>) attributes {dimension_semantics = [#tpu.dimension_semantics<parallel>, #tpu.dimension_semantics<arbitrary>], iteration_bounds = array<i64: 2, 1>, scalar_prefetch = 0 : i64, scratch_operands = 2 : i64, tpu.core_type = #tpu.core_type<tc>, window_params = [{transform_indices = @transform_0, window_bounds = array<i64: 1, 8, 32>}, {transform_indices = @transform_1, window_bounds = array<i64: 1, 8, 32>}, {transform_indices = @transform_2, window_bounds = array<i64: 1, 1, 8>}, {transform_indices = @transform_3, window_bounds = array<i64: 1, 1, 8>}, {pipeline_mode = #tpu.pipeline_mode<synchronous>, transform_indices = @transform_4, window_bounds = array<i64: 32, 96>}, {pipeline_mode = #tpu.pipeline_mode<synchronous>, transform_indices = @transform_5, window_bounds = array<i64: 1, 96>}, {pipeline_mode = #tpu.pipeline_mode<synchronous>, transform_indices = @transform_6, window_bounds = array<i64: 32, 32>}, {pipeline_mode = #tpu.pipeline_mode<synchronous>, transform_indices = @transform_7, window_bounds = array<i64: 1, 32>}, {pipeline_mode = #tpu.pipeline_mode<synchronous>, transform_indices = @transform_8, window_bounds = array<i64: 1, 32>}, {pipeline_mode = #tpu.pipeline_mode<synchronous>, transform_indices = @transform_9, window_bounds = array<i64: 1, 32>}, {pipeline_mode = #tpu.pipeline_mode<synchronous>, transform_indices = @transform_10, window_bounds = array<i64: 32, 32>}, {pipeline_mode = #tpu.pipeline_mode<synchronous>, transform_indices = @transform_11, window_bounds = array<i64: 1, 32>}, {pipeline_mode = #tpu.pipeline_mode<synchronous>, transform_indices = @transform_12, window_bounds = array<i64: 32, 64>}, {pipeline_mode = #tpu.pipeline_mode<synchronous>, transform_indices = @transform_13, window_bounds = array<i64: 1, 64>}, {pipeline_mode = #tpu.pipeline_mode<synchronous>, transform_indices = @transform_14, window_bounds = array<i64: 32, 32>}, {pipeline_mode = #tpu.pipeline_mode<synchronous>, transform_indices = @transform_15, window_bounds = array<i64: 1, 32>}, {pipeline_mode = #tpu.pipeline_mode<synchronous>, transform_indices = @transform_16, window_bounds = array<i64: 1, 32>}, {pipeline_mode = #tpu.pipeline_mode<synchronous>, transform_indices = @transform_17, window_bounds = array<i64: 1, 32>}, {transform_indices = @transform_18, window_bounds = array<i64: 32, 64>}, {transform_indices = @transform_19, window_bounds = array<i64: 1, 64>}, {transform_indices = @transform_20, window_bounds = array<i64: 64, 32>}, {pipeline_mode = #tpu.pipeline_mode<synchronous>, transform_indices = @transform_21, window_bounds = array<i64: 1, 32>}, {pipeline_mode = #tpu.pipeline_mode<synchronous>, transform_indices = @transform_22, window_bounds = array<i64: 1, 32>}, {pipeline_mode = #tpu.pipeline_mode<synchronous>, transform_indices = @transform_23, window_bounds = array<i64: 1, 32>}, {transform_indices = @transform_24, window_bounds = array<i64: 1, 8, 32>}]} {
    %c0_i32 = arith.constant 0 : i32
    %0 = arith.cmpi eq, %arg1, %c0_i32 : i32
    %1 = arith.extui %0 : i1 to i32
    %c0_i32_0 = arith.constant 0 : i32
    %2 = arith.cmpi ne, %1, %c0_i32_0 : i32
    scf.if %2 {
      %c0_16 = arith.constant 0 : index
      %c0_17 = arith.constant 0 : index
      %c0_18 = arith.constant 0 : index
      %21 = vector.load %arg2[%c0_16, %c0_17, %c0_18] : memref<1x8x32xbf16, #tpu.memory_space<vmem>>, vector<1x8x32xbf16>
      %22 = vector.shape_cast %21 : vector<1x8x32xbf16> to vector<8x32xbf16>
      %23 = arith.extf %22 : vector<8x32xbf16> to vector<8x32xf32>
      %24 = tpu.iota {dimensions = array<i32: 0>} : vector<8x8xi32>
      %25 = tpu.iota {dimensions = array<i32: 1>} : vector<8x8xi32>
      %26 = arith.cmpi sle, %25, %24 : vector<8x8xi32>
      %c0_19 = arith.constant 0 : index
      %c0_20 = arith.constant 0 : index
      %c0_21 = arith.constant 0 : index
      %27 = vector.load %arg4[%c0_19, %c0_20, %c0_21] : memref<1x1x8xf32, #tpu.memory_space<vmem>>, vector<1x1x8xf32>
      %28 = vector.shape_cast %27 : vector<1x1x8xf32> to vector<1x8xf32>
      %cst_22 = arith.constant 5.000000e-01 : f32
      %29 = vector.broadcast %cst_22 : f32 to vector<1x8xf32>
      %30 = arith.cmpf ogt, %28, %29 : vector<1x8xf32>
      %31 = vector.broadcast %30 : vector<1x8xi1> to vector<8x8xi1>
      %32 = arith.andi %26, %31 : vector<8x8xi1>
      %c0_23 = arith.constant 0 : index
      %c0_24 = arith.constant 0 : index
      %c0_25 = arith.constant 0 : index
      %33 = vector.load %arg5[%c0_23, %c0_24, %c0_25] : memref<1x1x8xf32, #tpu.memory_space<vmem>>, vector<1x1x8xf32>
      %34 = vector.shape_cast %33 : vector<1x1x8xf32> to vector<1x8xf32>
      %cst_26 = arith.constant 5.000000e-01 : f32
      %35 = vector.broadcast %cst_26 : f32 to vector<1x8xf32>
      %36 = arith.cmpf ogt, %34, %35 : vector<1x8xf32>
      %c0_27 = arith.constant 0 : index
      %c0_28 = arith.constant 0 : index
      %c0_29 = arith.constant 0 : index
      %37 = vector.load %arg2[%c0_27, %c0_28, %c0_29] : memref<1x8x32xbf16, #tpu.memory_space<vmem>>, vector<1x8x32xbf16>
      %38 = vector.shape_cast %37 : vector<1x8x32xbf16> to vector<8x32xbf16>
      %c0_30 = arith.constant 0 : index
      %c0_31 = arith.constant 0 : index
      %39 = vector.load %arg6[%c0_30, %c0_31] : memref<32x96xbf16, #tpu.memory_space<vmem>>, vector<32x96xbf16>
      %cst_32 = arith.constant dense<0.000000e+00> : vector<8x96xf32>
      %40 = tpu.matmul %38, %39, %cst_32 {dimension_numbers = #tpu.dot_dimension_numbers<[1], [0], [0], [1], [0, 0, 1, 1], [], []>} : vector<8x32xbf16>, vector<32x96xbf16>, vector<8x96xf32> -> vector<8x96xf32>
      %c0_33 = arith.constant 0 : index
      %c0_34 = arith.constant 0 : index
      %41 = vector.load %arg7[%c0_33, %c0_34] : memref<1x96xf32, #tpu.memory_space<vmem>>, vector<1x96xf32>
      %42 = vector.broadcast %41 : vector<1x96xf32> to vector<8x96xf32>
      %43 = arith.addf %40, %42 : vector<8x96xf32>
      %44 = vector.extract_strided_slice %43 {offsets = [0, 0], sizes = [8, 32], strides = [1, 1]} : vector<8x96xf32> to vector<8x32xf32>
      %45 = vector.extract_strided_slice %43 {offsets = [0, 32], sizes = [8, 32], strides = [1, 1]} : vector<8x96xf32> to vector<8x32xf32>
      %46 = vector.extract_strided_slice %43 {offsets = [0, 64], sizes = [8, 32], strides = [1, 1]} : vector<8x96xf32> to vector<8x32xf32>
      %47 = vector.extract_strided_slice %44 {offsets = [0, 0], sizes = [8, 8], strides = [1, 1]} : vector<8x32xf32> to vector<8x8xf32>
      %48 = vector.extract_strided_slice %45 {offsets = [0, 0], sizes = [8, 8], strides = [1, 1]} : vector<8x32xf32> to vector<8x8xf32>
      %49 = arith.truncf %47 : vector<8x8xf32> to vector<8x8xbf16>
      %50 = arith.truncf %48 : vector<8x8xf32> to vector<8x8xbf16>
      %cst_35 = arith.constant dense<0.000000e+00> : vector<8x8xf32>
      %51 = tpu.matmul %49, %50, %cst_35 {dimension_numbers = #tpu.dot_dimension_numbers<[1], [1], [0], [0], [0, 0, 1, 0], [], []>} : vector<8x8xbf16>, vector<8x8xbf16>, vector<8x8xf32> -> vector<8x8xf32>
      %cst_36 = arith.constant 0.353553385 : f32
      %52 = vector.broadcast %cst_36 : f32 to vector<8x8xf32>
      %53 = arith.mulf %51, %52 : vector<8x8xf32>
      %cst_37 = arith.constant -1.000000e+10 : f32
      %54 = vector.broadcast %cst_37 : f32 to vector<8x8xf32>
      %55 = arith.select %32, %53, %54 : vector<8x8xi1>, vector<8x8xf32>
      %cst_38 = arith.constant dense<0xFF800000> : vector<8xf32>
      %56 = vector.multi_reduction <maximumf>, %55, %cst_38 [1] : vector<8x8xf32> to vector<8xf32>
      %57 = vector.shape_cast %56 : vector<8xf32> to vector<8x1xf32>
      %58 = vector.broadcast %57 : vector<8x1xf32> to vector<8x8xf32>
      %59 = arith.subf %55, %58 : vector<8x8xf32>
      %60 = math.exp %59 : vector<8x8xf32>
      %cst_39 = arith.constant dense<0.000000e+00> : vector<8xf32>
      %61 = vector.multi_reduction <add>, %60, %cst_39 [1] : vector<8x8xf32> to vector<8xf32>
      %62 = vector.shape_cast %61 : vector<8xf32> to vector<8x1xf32>
      %63 = tpu.reciprocal %62 {approx = true} : vector<8x1xf32> -> vector<8x1xf32>
      %64 = vector.broadcast %63 : vector<8x1xf32> to vector<8x8xf32>
      %65 = arith.mulf %60, %64 : vector<8x8xf32>
      %66 = vector.extract_strided_slice %46 {offsets = [0, 0], sizes = [8, 8], strides = [1, 1]} : vector<8x32xf32> to vector<8x8xf32>
      %67 = arith.truncf %65 : vector<8x8xf32> to vector<8x8xbf16>
      %68 = arith.truncf %66 : vector<8x8xf32> to vector<8x8xbf16>
      %cst_40 = arith.constant dense<0.000000e+00> : vector<8x8xf32>
      %69 = tpu.matmul %67, %68, %cst_40 {dimension_numbers = #tpu.dot_dimension_numbers<[1], [0], [0], [1], [0, 0, 1, 1], [], []>} : vector<8x8xbf16>, vector<8x8xbf16>, vector<8x8xf32> -> vector<8x8xf32>
      %c0_41 = arith.constant 0 : index
      %c0_42 = arith.constant 0 : index
      %70 = vector.load %arg28[%c0_41, %c0_42] : memref<8x32xf32, #tpu.memory_space<vmem>>, vector<8x8xf32>
      tpu.vector_store %arg28[%c0_41, %c0_42], %69 {strides = array<i32>} : memref<8x32xf32, #tpu.memory_space<vmem>>, vector<8x8xf32>,
      %71 = vector.extract_strided_slice %44 {offsets = [0, 8], sizes = [8, 8], strides = [1, 1]} : vector<8x32xf32> to vector<8x8xf32>
      %72 = vector.extract_strided_slice %45 {offsets = [0, 8], sizes = [8, 8], strides = [1, 1]} : vector<8x32xf32> to vector<8x8xf32>
      %73 = arith.truncf %71 : vector<8x8xf32> to vector<8x8xbf16>
      %74 = arith.truncf %72 : vector<8x8xf32> to vector<8x8xbf16>
      %cst_43 = arith.constant dense<0.000000e+00> : vector<8x8xf32>
      %75 = tpu.matmul %73, %74, %cst_43 {dimension_numbers = #tpu.dot_dimension_numbers<[1], [1], [0], [0], [0, 0, 1, 0], [], []>} : vector<8x8xbf16>, vector<8x8xbf16>, vector<8x8xf32> -> vector<8x8xf32>
      %cst_44 = arith.constant 0.353553385 : f32
      %76 = vector.broadcast %cst_44 : f32 to vector<8x8xf32>
      %77 = arith.mulf %75, %76 : vector<8x8xf32>
      %cst_45 = arith.constant -1.000000e+10 : f32
      %78 = vector.broadcast %cst_45 : f32 to vector<8x8xf32>
      %79 = arith.select %32, %77, %78 : vector<8x8xi1>, vector<8x8xf32>
      %cst_46 = arith.constant dense<0xFF800000> : vector<8xf32>
      %80 = vector.multi_reduction <maximumf>, %79, %cst_46 [1] : vector<8x8xf32> to vector<8xf32>
      %81 = vector.shape_cast %80 : vector<8xf32> to vector<8x1xf32>
      %82 = vector.broadcast %81 : vector<8x1xf32> to vector<8x8xf32>
      %83 = arith.subf %79, %82 : vector<8x8xf32>
      %84 = math.exp %83 : vector<8x8xf32>
      %cst_47 = arith.constant dense<0.000000e+00> : vector<8xf32>
      %85 = vector.multi_reduction <add>, %84, %cst_47 [1] : vector<8x8xf32> to vector<8xf32>
      %86 = vector.shape_cast %85 : vector<8xf32> to vector<8x1xf32>
      %87 = tpu.reciprocal %86 {approx = true} : vector<8x1xf32> -> vector<8x1xf32>
      %88 = vector.broadcast %87 : vector<8x1xf32> to vector<8x8xf32>
      %89 = arith.mulf %84, %88 : vector<8x8xf32>
      %90 = vector.extract_strided_slice %46 {offsets = [0, 8], sizes = [8, 8], strides = [1, 1]} : vector<8x32xf32> to vector<8x8xf32>
      %91 = arith.truncf %89 : vector<8x8xf32> to vector<8x8xbf16>
      %92 = arith.truncf %90 : vector<8x8xf32> to vector<8x8xbf16>
      %cst_48 = arith.constant dense<0.000000e+00> : vector<8x8xf32>
      %93 = tpu.matmul %91, %92, %cst_48 {dimension_numbers = #tpu.dot_dimension_numbers<[1], [0], [0], [1], [0, 0, 1, 1], [], []>} : vector<8x8xbf16>, vector<8x8xbf16>, vector<8x8xf32> -> vector<8x8xf32>
      %c0_49 = arith.constant 0 : index
      %c8 = arith.constant 8 : index
      %94 = vector.load %arg28[%c0_49, %c8] : memref<8x32xf32, #tpu.memory_space<vmem>>, vector<8x8xf32>
      tpu.vector_store %arg28[%c0_49, %c8], %93 {strides = array<i32>} : memref<8x32xf32, #tpu.memory_space<vmem>>, vector<8x8xf32>,
      %95 = vector.extract_strided_slice %44 {offsets = [0, 16], sizes = [8, 8], strides = [1, 1]} : vector<8x32xf32> to vector<8x8xf32>
      %96 = vector.extract_strided_slice %45 {offsets = [0, 16], sizes = [8, 8], strides = [1, 1]} : vector<8x32xf32> to vector<8x8xf32>
      %97 = arith.truncf %95 : vector<8x8xf32> to vector<8x8xbf16>
      %98 = arith.truncf %96 : vector<8x8xf32> to vector<8x8xbf16>
      %cst_50 = arith.constant dense<0.000000e+00> : vector<8x8xf32>
      %99 = tpu.matmul %97, %98, %cst_50 {dimension_numbers = #tpu.dot_dimension_numbers<[1], [1], [0], [0], [0, 0, 1, 0], [], []>} : vector<8x8xbf16>, vector<8x8xbf16>, vector<8x8xf32> -> vector<8x8xf32>
      %cst_51 = arith.constant 0.353553385 : f32
      %100 = vector.broadcast %cst_51 : f32 to vector<8x8xf32>
      %101 = arith.mulf %99, %100 : vector<8x8xf32>
      %cst_52 = arith.constant -1.000000e+10 : f32
      %102 = vector.broadcast %cst_52 : f32 to vector<8x8xf32>
      %103 = arith.select %32, %101, %102 : vector<8x8xi1>, vector<8x8xf32>
      %cst_53 = arith.constant dense<0xFF800000> : vector<8xf32>
      %104 = vector.multi_reduction <maximumf>, %103, %cst_53 [1] : vector<8x8xf32> to vector<8xf32>
      %105 = vector.shape_cast %104 : vector<8xf32> to vector<8x1xf32>
      %106 = vector.broadcast %105 : vector<8x1xf32> to vector<8x8xf32>
      %107 = arith.subf %103, %106 : vector<8x8xf32>
      %108 = math.exp %107 : vector<8x8xf32>
      %cst_54 = arith.constant dense<0.000000e+00> : vector<8xf32>
      %109 = vector.multi_reduction <add>, %108, %cst_54 [1] : vector<8x8xf32> to vector<8xf32>
      %110 = vector.shape_cast %109 : vector<8xf32> to vector<8x1xf32>
      %111 = tpu.reciprocal %110 {approx = true} : vector<8x1xf32> -> vector<8x1xf32>
      %112 = vector.broadcast %111 : vector<8x1xf32> to vector<8x8xf32>
      %113 = arith.mulf %108, %112 : vector<8x8xf32>
      %114 = vector.extract_strided_slice %46 {offsets = [0, 16], sizes = [8, 8], strides = [1, 1]} : vector<8x32xf32> to vector<8x8xf32>
      %115 = arith.truncf %113 : vector<8x8xf32> to vector<8x8xbf16>
      %116 = arith.truncf %114 : vector<8x8xf32> to vector<8x8xbf16>
      %cst_55 = arith.constant dense<0.000000e+00> : vector<8x8xf32>
      %117 = tpu.matmul %115, %116, %cst_55 {dimension_numbers = #tpu.dot_dimension_numbers<[1], [0], [0], [1], [0, 0, 1, 1], [], []>} : vector<8x8xbf16>, vector<8x8xbf16>, vector<8x8xf32> -> vector<8x8xf32>
      %c0_56 = arith.constant 0 : index
      %c16 = arith.constant 16 : index
      %118 = vector.load %arg28[%c0_56, %c16] : memref<8x32xf32, #tpu.memory_space<vmem>>, vector<8x8xf32>
      tpu.vector_store %arg28[%c0_56, %c16], %117 {strides = array<i32>} : memref<8x32xf32, #tpu.memory_space<vmem>>, vector<8x8xf32>,
      %119 = vector.extract_strided_slice %44 {offsets = [0, 24], sizes = [8, 8], strides = [1, 1]} : vector<8x32xf32> to vector<8x8xf32>
      %120 = vector.extract_strided_slice %45 {offsets = [0, 24], sizes = [8, 8], strides = [1, 1]} : vector<8x32xf32> to vector<8x8xf32>
      %121 = arith.truncf %119 : vector<8x8xf32> to vector<8x8xbf16>
      %122 = arith.truncf %120 : vector<8x8xf32> to vector<8x8xbf16>
      %cst_57 = arith.constant dense<0.000000e+00> : vector<8x8xf32>
      %123 = tpu.matmul %121, %122, %cst_57 {dimension_numbers = #tpu.dot_dimension_numbers<[1], [1], [0], [0], [0, 0, 1, 0], [], []>} : vector<8x8xbf16>, vector<8x8xbf16>, vector<8x8xf32> -> vector<8x8xf32>
      %cst_58 = arith.constant 0.353553385 : f32
      %124 = vector.broadcast %cst_58 : f32 to vector<8x8xf32>
      %125 = arith.mulf %123, %124 : vector<8x8xf32>
      %cst_59 = arith.constant -1.000000e+10 : f32
      %126 = vector.broadcast %cst_59 : f32 to vector<8x8xf32>
      %127 = arith.select %32, %125, %126 : vector<8x8xi1>, vector<8x8xf32>
      %cst_60 = arith.constant dense<0xFF800000> : vector<8xf32>
      %128 = vector.multi_reduction <maximumf>, %127, %cst_60 [1] : vector<8x8xf32> to vector<8xf32>
      %129 = vector.shape_cast %128 : vector<8xf32> to vector<8x1xf32>
      %130 = vector.broadcast %129 : vector<8x1xf32> to vector<8x8xf32>
      %131 = arith.subf %127, %130 : vector<8x8xf32>
      %132 = math.exp %131 : vector<8x8xf32>
      %cst_61 = arith.constant dense<0.000000e+00> : vector<8xf32>
      %133 = vector.multi_reduction <add>, %132, %cst_61 [1] : vector<8x8xf32> to vector<8xf32>
      %134 = vector.shape_cast %133 : vector<8xf32> to vector<8x1xf32>
      %135 = tpu.reciprocal %134 {approx = true} : vector<8x1xf32> -> vector<8x1xf32>
      %136 = vector.broadcast %135 : vector<8x1xf32> to vector<8x8xf32>
      %137 = arith.mulf %132, %136 : vector<8x8xf32>
      %138 = vector.extract_strided_slice %46 {offsets = [0, 24], sizes = [8, 8], strides = [1, 1]} : vector<8x32xf32> to vector<8x8xf32>
      %139 = arith.truncf %137 : vector<8x8xf32> to vector<8x8xbf16>
      %140 = arith.truncf %138 : vector<8x8xf32> to vector<8x8xbf16>
      %cst_62 = arith.constant dense<0.000000e+00> : vector<8x8xf32>
      %141 = tpu.matmul %139, %140, %cst_62 {dimension_numbers = #tpu.dot_dimension_numbers<[1], [0], [0], [1], [0, 0, 1, 1], [], []>} : vector<8x8xbf16>, vector<8x8xbf16>, vector<8x8xf32> -> vector<8x8xf32>
      %c0_63 = arith.constant 0 : index
      %c24 = arith.constant 24 : index
      %142 = vector.load %arg28[%c0_63, %c24] : memref<8x32xf32, #tpu.memory_space<vmem>>, vector<8x8xf32>
      tpu.vector_store %arg28[%c0_63, %c24], %141 {strides = array<i32>} : memref<8x32xf32, #tpu.memory_space<vmem>>, vector<8x8xf32>,
      %c0_64 = arith.constant 0 : index
      %c0_65 = arith.constant 0 : index
      %143 = vector.load %arg28[%c0_64, %c0_65] : memref<8x32xf32, #tpu.memory_space<vmem>>, vector<8x32xf32>
      %c0_66 = arith.constant 0 : index
      %c0_67 = arith.constant 0 : index
      %144 = vector.load %arg8[%c0_66, %c0_67] : memref<32x32xbf16, #tpu.memory_space<vmem>>, vector<32x32xbf16>
      %145 = arith.truncf %143 : vector<8x32xf32> to vector<8x32xbf16>
      %cst_68 = arith.constant dense<0.000000e+00> : vector<8x32xf32>
      %146 = tpu.matmul %145, %144, %cst_68 {dimension_numbers = #tpu.dot_dimension_numbers<[1], [0], [0], [1], [0, 0, 1, 1], [], []>} : vector<8x32xbf16>, vector<32x32xbf16>, vector<8x32xf32> -> vector<8x32xf32>
      %c0_69 = arith.constant 0 : index
      %c0_70 = arith.constant 0 : index
      %147 = vector.load %arg9[%c0_69, %c0_70] : memref<1x32xf32, #tpu.memory_space<vmem>>, vector<1x32xf32>
      %148 = vector.broadcast %147 : vector<1x32xf32> to vector<8x32xf32>
      %149 = arith.addf %146, %148 : vector<8x32xf32>
      %150 = arith.addf %23, %149 : vector<8x32xf32>
      %c0_71 = arith.constant 0 : index
      %c0_72 = arith.constant 0 : index
      %151 = vector.load %arg10[%c0_71, %c0_72] : memref<1x32xf32, #tpu.memory_space<vmem>>, vector<1x32xf32>
      %c0_73 = arith.constant 0 : index
      %c0_74 = arith.constant 0 : index
      %152 = vector.load %arg11[%c0_73, %c0_74] : memref<1x32xf32, #tpu.memory_space<vmem>>, vector<1x32xf32>
      %cst_75 = arith.constant dense<0.000000e+00> : vector<8xf32>
      %153 = vector.multi_reduction <add>, %150, %cst_75 [1] : vector<8x32xf32> to vector<8xf32>
      %154 = vector.shape_cast %153 : vector<8xf32> to vector<8x1xf32>
      %cst_76 = arith.constant 3.200000e+01 : f32
      %155 = vector.broadcast %cst_76 : f32 to vector<8x1xf32>
      %156 = arith.divf %154, %155 : vector<8x1xf32>
      %157 = vector.broadcast %156 : vector<8x1xf32> to vector<8x32xf32>
      %158 = arith.subf %150, %157 : vector<8x32xf32>
      %159 = arith.mulf %158, %158 : vector<8x32xf32>
      %cst_77 = arith.constant dense<0.000000e+00> : vector<8xf32>
      %160 = vector.multi_reduction <add>, %159, %cst_77 [1] : vector<8x32xf32> to vector<8xf32>
      %161 = vector.shape_cast %160 : vector<8xf32> to vector<8x1xf32>
      %cst_78 = arith.constant 3.200000e+01 : f32
      %162 = vector.broadcast %cst_78 : f32 to vector<8x1xf32>
      %163 = arith.divf %161, %162 : vector<8x1xf32>
      %164 = vector.broadcast %156 : vector<8x1xf32> to vector<8x32xf32>
      %165 = arith.subf %150, %164 : vector<8x32xf32>
      %cst_79 = arith.constant 9.99999974E-6 : f32
      %166 = vector.broadcast %cst_79 : f32 to vector<8x1xf32>
      %167 = arith.addf %163, %166 : vector<8x1xf32>
      %168 = math.rsqrt %167 : vector<8x1xf32>
      %169 = vector.broadcast %168 : vector<8x1xf32> to vector<8x32xf32>
      %170 = arith.mulf %165, %169 : vector<8x32xf32>
      %171 = vector.broadcast %151 : vector<1x32xf32> to vector<8x32xf32>
      %172 = arith.mulf %170, %171 : vector<8x32xf32>
      %173 = vector.broadcast %152 : vector<1x32xf32> to vector<8x32xf32>
      %174 = arith.addf %172, %173 : vector<8x32xf32>
      %c0_80 = arith.constant 0 : index
      %c0_81 = arith.constant 0 : index
      %175 = vector.load %arg12[%c0_80, %c0_81] : memref<32x32xbf16, #tpu.memory_space<vmem>>, vector<32x32xbf16>
      %176 = arith.truncf %174 : vector<8x32xf32> to vector<8x32xbf16>
      %cst_82 = arith.constant dense<0.000000e+00> : vector<8x32xf32>
      %177 = tpu.matmul %176, %175, %cst_82 {dimension_numbers = #tpu.dot_dimension_numbers<[1], [0], [0], [1], [0, 0, 1, 1], [], []>} : vector<8x32xbf16>, vector<32x32xbf16>, vector<8x32xf32> -> vector<8x32xf32>
      %c0_83 = arith.constant 0 : index
      %c0_84 = arith.constant 0 : index
      %178 = vector.load %arg13[%c0_83, %c0_84] : memref<1x32xf32, #tpu.memory_space<vmem>>, vector<1x32xf32>
      %179 = vector.broadcast %178 : vector<1x32xf32> to vector<8x32xf32>
      %180 = arith.addf %177, %179 : vector<8x32xf32>
      %c0_85 = arith.constant 0 : index
      %c0_86 = arith.constant 0 : index
      %c0_87 = arith.constant 0 : index
      %181 = vector.load %arg3[%c0_85, %c0_86, %c0_87] : memref<1x8x32xbf16, #tpu.memory_space<vmem>>, vector<1x8x32xbf16>
      %182 = vector.shape_cast %181 : vector<1x8x32xbf16> to vector<8x32xbf16>
      %c0_88 = arith.constant 0 : index
      %c0_89 = arith.constant 0 : index
      %183 = vector.load %arg14[%c0_88, %c0_89] : memref<32x64xbf16, #tpu.memory_space<vmem>>, vector<32x64xbf16>
      %cst_90 = arith.constant dense<0.000000e+00> : vector<8x64xf32>
      %184 = tpu.matmul %182, %183, %cst_90 {dimension_numbers = #tpu.dot_dimension_numbers<[1], [0], [0], [1], [0, 0, 1, 1], [], []>} : vector<8x32xbf16>, vector<32x64xbf16>, vector<8x64xf32> -> vector<8x64xf32>
      %c0_91 = arith.constant 0 : index
      %c0_92 = arith.constant 0 : index
      %185 = vector.load %arg15[%c0_91, %c0_92] : memref<1x64xf32, #tpu.memory_space<vmem>>, vector<1x64xf32>
      %186 = vector.broadcast %185 : vector<1x64xf32> to vector<8x64xf32>
      %187 = arith.addf %184, %186 : vector<8x64xf32>
      %188 = vector.extract_strided_slice %187 {offsets = [0, 0], sizes = [8, 32], strides = [1, 1]} : vector<8x64xf32> to vector<8x32xf32>
      %189 = vector.extract_strided_slice %187 {offsets = [0, 32], sizes = [8, 32], strides = [1, 1]} : vector<8x64xf32> to vector<8x32xf32>
      %190 = vector.extract_strided_slice %180 {offsets = [0, 0], sizes = [8, 8], strides = [1, 1]} : vector<8x32xf32> to vector<8x8xf32>
      %191 = vector.extract_strided_slice %188 {offsets = [0, 0], sizes = [8, 8], strides = [1, 1]} : vector<8x32xf32> to vector<8x8xf32>
      %192 = arith.truncf %190 : vector<8x8xf32> to vector<8x8xbf16>
      %193 = arith.truncf %191 : vector<8x8xf32> to vector<8x8xbf16>
      %cst_93 = arith.constant dense<0.000000e+00> : vector<8x8xf32>
      %194 = tpu.matmul %192, %193, %cst_93 {dimension_numbers = #tpu.dot_dimension_numbers<[1], [1], [0], [0], [0, 0, 1, 0], [], []>} : vector<8x8xbf16>, vector<8x8xbf16>, vector<8x8xf32> -> vector<8x8xf32>
      %cst_94 = arith.constant 0.353553385 : f32
      %195 = vector.broadcast %cst_94 : f32 to vector<8x8xf32>
      %196 = arith.mulf %194, %195 : vector<8x8xf32>
      %cst_95 = arith.constant -1.000000e+10 : f32
      %197 = vector.shape_cast %36 : vector<1x8xi1> to vector<1x8xi1>
      %198 = vector.broadcast %197 : vector<1x8xi1> to vector<8x8xi1>
      %199 = vector.broadcast %cst_95 : f32 to vector<8x8xf32>
      %200 = arith.select %198, %196, %199 : vector<8x8xi1>, vector<8x8xf32>
      %cst_96 = arith.constant dense<0xFF800000> : vector<8xf32>
      %201 = vector.multi_reduction <maximumf>, %200, %cst_96 [1] : vector<8x8xf32> to vector<8xf32>
      %202 = vector.shape_cast %201 : vector<8xf32> to vector<8x1xf32>
      %203 = vector.broadcast %202 : vector<8x1xf32> to vector<8x8xf32>
      %204 = arith.subf %200, %203 : vector<8x8xf32>
      %205 = math.exp %204 : vector<8x8xf32>
      %cst_97 = arith.constant dense<0.000000e+00> : vector<8xf32>
      %206 = vector.multi_reduction <add>, %205, %cst_97 [1] : vector<8x8xf32> to vector<8xf32>
      %207 = vector.shape_cast %206 : vector<8xf32> to vector<8x1xf32>
      %208 = tpu.reciprocal %207 {approx = true} : vector<8x1xf32> -> vector<8x1xf32>
      %209 = vector.broadcast %208 : vector<8x1xf32> to vector<8x8xf32>
      %210 = arith.mulf %205, %209 : vector<8x8xf32>
      %211 = vector.extract_strided_slice %189 {offsets = [0, 0], sizes = [8, 8], strides = [1, 1]} : vector<8x32xf32> to vector<8x8xf32>
      %212 = arith.truncf %210 : vector<8x8xf32> to vector<8x8xbf16>
      %213 = arith.truncf %211 : vector<8x8xf32> to vector<8x8xbf16>
      %cst_98 = arith.constant dense<0.000000e+00> : vector<8x8xf32>
      %214 = tpu.matmul %212, %213, %cst_98 {dimension_numbers = #tpu.dot_dimension_numbers<[1], [0], [0], [1], [0, 0, 1, 1], [], []>} : vector<8x8xbf16>, vector<8x8xbf16>, vector<8x8xf32> -> vector<8x8xf32>
      %c0_99 = arith.constant 0 : index
      %c0_100 = arith.constant 0 : index
      %215 = vector.load %arg28[%c0_99, %c0_100] : memref<8x32xf32, #tpu.memory_space<vmem>>, vector<8x8xf32>
      tpu.vector_store %arg28[%c0_99, %c0_100], %214 {strides = array<i32>} : memref<8x32xf32, #tpu.memory_space<vmem>>, vector<8x8xf32>,
      %216 = vector.extract_strided_slice %180 {offsets = [0, 8], sizes = [8, 8], strides = [1, 1]} : vector<8x32xf32> to vector<8x8xf32>
      %217 = vector.extract_strided_slice %188 {offsets = [0, 8], sizes = [8, 8], strides = [1, 1]} : vector<8x32xf32> to vector<8x8xf32>
      %218 = arith.truncf %216 : vector<8x8xf32> to vector<8x8xbf16>
      %219 = arith.truncf %217 : vector<8x8xf32> to vector<8x8xbf16>
      %cst_101 = arith.constant dense<0.000000e+00> : vector<8x8xf32>
      %220 = tpu.matmul %218, %219, %cst_101 {dimension_numbers = #tpu.dot_dimension_numbers<[1], [1], [0], [0], [0, 0, 1, 0], [], []>} : vector<8x8xbf16>, vector<8x8xbf16>, vector<8x8xf32> -> vector<8x8xf32>
      %cst_102 = arith.constant 0.353553385 : f32
      %221 = vector.broadcast %cst_102 : f32 to vector<8x8xf32>
      %222 = arith.mulf %220, %221 : vector<8x8xf32>
      %cst_103 = arith.constant -1.000000e+10 : f32
      %223 = vector.shape_cast %36 : vector<1x8xi1> to vector<1x8xi1>
      %224 = vector.broadcast %223 : vector<1x8xi1> to vector<8x8xi1>
      %225 = vector.broadcast %cst_103 : f32 to vector<8x8xf32>
      %226 = arith.select %224, %222, %225 : vector<8x8xi1>, vector<8x8xf32>
      %cst_104 = arith.constant dense<0xFF800000> : vector<8xf32>
      %227 = vector.multi_reduction <maximumf>, %226, %cst_104 [1] : vector<8x8xf32> to vector<8xf32>
      %228 = vector.shape_cast %227 : vector<8xf32> to vector<8x1xf32>
      %229 = vector.broadcast %228 : vector<8x1xf32> to vector<8x8xf32>
      %230 = arith.subf %226, %229 : vector<8x8xf32>
      %231 = math.exp %230 : vector<8x8xf32>
      %cst_105 = arith.constant dense<0.000000e+00> : vector<8xf32>
      %232 = vector.multi_reduction <add>, %231, %cst_105 [1] : vector<8x8xf32> to vector<8xf32>
      %233 = vector.shape_cast %232 : vector<8xf32> to vector<8x1xf32>
      %234 = tpu.reciprocal %233 {approx = true} : vector<8x1xf32> -> vector<8x1xf32>
      %235 = vector.broadcast %234 : vector<8x1xf32> to vector<8x8xf32>
      %236 = arith.mulf %231, %235 : vector<8x8xf32>
      %237 = vector.extract_strided_slice %189 {offsets = [0, 8], sizes = [8, 8], strides = [1, 1]} : vector<8x32xf32> to vector<8x8xf32>
      %238 = arith.truncf %236 : vector<8x8xf32> to vector<8x8xbf16>
      %239 = arith.truncf %237 : vector<8x8xf32> to vector<8x8xbf16>
      %cst_106 = arith.constant dense<0.000000e+00> : vector<8x8xf32>
      %240 = tpu.matmul %238, %239, %cst_106 {dimension_numbers = #tpu.dot_dimension_numbers<[1], [0], [0], [1], [0, 0, 1, 1], [], []>} : vector<8x8xbf16>, vector<8x8xbf16>, vector<8x8xf32> -> vector<8x8xf32>
      %c0_107 = arith.constant 0 : index
      %c8_108 = arith.constant 8 : index
      %241 = vector.load %arg28[%c0_107, %c8_108] : memref<8x32xf32, #tpu.memory_space<vmem>>, vector<8x8xf32>
      tpu.vector_store %arg28[%c0_107, %c8_108], %240 {strides = array<i32>} : memref<8x32xf32, #tpu.memory_space<vmem>>, vector<8x8xf32>,
      %242 = vector.extract_strided_slice %180 {offsets = [0, 16], sizes = [8, 8], strides = [1, 1]} : vector<8x32xf32> to vector<8x8xf32>
      %243 = vector.extract_strided_slice %188 {offsets = [0, 16], sizes = [8, 8], strides = [1, 1]} : vector<8x32xf32> to vector<8x8xf32>
      %244 = arith.truncf %242 : vector<8x8xf32> to vector<8x8xbf16>
      %245 = arith.truncf %243 : vector<8x8xf32> to vector<8x8xbf16>
      %cst_109 = arith.constant dense<0.000000e+00> : vector<8x8xf32>
      %246 = tpu.matmul %244, %245, %cst_109 {dimension_numbers = #tpu.dot_dimension_numbers<[1], [1], [0], [0], [0, 0, 1, 0], [], []>} : vector<8x8xbf16>, vector<8x8xbf16>, vector<8x8xf32> -> vector<8x8xf32>
      %cst_110 = arith.constant 0.353553385 : f32
      %247 = vector.broadcast %cst_110 : f32 to vector<8x8xf32>
      %248 = arith.mulf %246, %247 : vector<8x8xf32>
      %cst_111 = arith.constant -1.000000e+10 : f32
      %249 = vector.shape_cast %36 : vector<1x8xi1> to vector<1x8xi1>
      %250 = vector.broadcast %249 : vector<1x8xi1> to vector<8x8xi1>
      %251 = vector.broadcast %cst_111 : f32 to vector<8x8xf32>
      %252 = arith.select %250, %248, %251 : vector<8x8xi1>, vector<8x8xf32>
      %cst_112 = arith.constant dense<0xFF800000> : vector<8xf32>
      %253 = vector.multi_reduction <maximumf>, %252, %cst_112 [1] : vector<8x8xf32> to vector<8xf32>
      %254 = vector.shape_cast %253 : vector<8xf32> to vector<8x1xf32>
      %255 = vector.broadcast %254 : vector<8x1xf32> to vector<8x8xf32>
      %256 = arith.subf %252, %255 : vector<8x8xf32>
      %257 = math.exp %256 : vector<8x8xf32>
      %cst_113 = arith.constant dense<0.000000e+00> : vector<8xf32>
      %258 = vector.multi_reduction <add>, %257, %cst_113 [1] : vector<8x8xf32> to vector<8xf32>
      %259 = vector.shape_cast %258 : vector<8xf32> to vector<8x1xf32>
      %260 = tpu.reciprocal %259 {approx = true} : vector<8x1xf32> -> vector<8x1xf32>
      %261 = vector.broadcast %260 : vector<8x1xf32> to vector<8x8xf32>
      %262 = arith.mulf %257, %261 : vector<8x8xf32>
      %263 = vector.extract_strided_slice %189 {offsets = [0, 16], sizes = [8, 8], strides = [1, 1]} : vector<8x32xf32> to vector<8x8xf32>
      %264 = arith.truncf %262 : vector<8x8xf32> to vector<8x8xbf16>
      %265 = arith.truncf %263 : vector<8x8xf32> to vector<8x8xbf16>
      %cst_114 = arith.constant dense<0.000000e+00> : vector<8x8xf32>
      %266 = tpu.matmul %264, %265, %cst_114 {dimension_numbers = #tpu.dot_dimension_numbers<[1], [0], [0], [1], [0, 0, 1, 1], [], []>} : vector<8x8xbf16>, vector<8x8xbf16>, vector<8x8xf32> -> vector<8x8xf32>
      %c0_115 = arith.constant 0 : index
      %c16_116 = arith.constant 16 : index
      %267 = vector.load %arg28[%c0_115, %c16_116] : memref<8x32xf32, #tpu.memory_space<vmem>>, vector<8x8xf32>
      tpu.vector_store %arg28[%c0_115, %c16_116], %266 {strides = array<i32>} : memref<8x32xf32, #tpu.memory_space<vmem>>, vector<8x8xf32>,
      %268 = vector.extract_strided_slice %180 {offsets = [0, 24], sizes = [8, 8], strides = [1, 1]} : vector<8x32xf32> to vector<8x8xf32>
      %269 = vector.extract_strided_slice %188 {offsets = [0, 24], sizes = [8, 8], strides = [1, 1]} : vector<8x32xf32> to vector<8x8xf32>
      %270 = arith.truncf %268 : vector<8x8xf32> to vector<8x8xbf16>
      %271 = arith.truncf %269 : vector<8x8xf32> to vector<8x8xbf16>
      %cst_117 = arith.constant dense<0.000000e+00> : vector<8x8xf32>
      %272 = tpu.matmul %270, %271, %cst_117 {dimension_numbers = #tpu.dot_dimension_numbers<[1], [1], [0], [0], [0, 0, 1, 0], [], []>} : vector<8x8xbf16>, vector<8x8xbf16>, vector<8x8xf32> -> vector<8x8xf32>
      %cst_118 = arith.constant 0.353553385 : f32
      %273 = vector.broadcast %cst_118 : f32 to vector<8x8xf32>
      %274 = arith.mulf %272, %273 : vector<8x8xf32>
      %cst_119 = arith.constant -1.000000e+10 : f32
      %275 = vector.shape_cast %36 : vector<1x8xi1> to vector<1x8xi1>
      %276 = vector.broadcast %275 : vector<1x8xi1> to vector<8x8xi1>
      %277 = vector.broadcast %cst_119 : f32 to vector<8x8xf32>
      %278 = arith.select %276, %274, %277 : vector<8x8xi1>, vector<8x8xf32>
      %cst_120 = arith.constant dense<0xFF800000> : vector<8xf32>
      %279 = vector.multi_reduction <maximumf>, %278, %cst_120 [1] : vector<8x8xf32> to vector<8xf32>
      %280 = vector.shape_cast %279 : vector<8xf32> to vector<8x1xf32>
      %281 = vector.broadcast %280 : vector<8x1xf32> to vector<8x8xf32>
      %282 = arith.subf %278, %281 : vector<8x8xf32>
      %283 = math.exp %282 : vector<8x8xf32>
      %cst_121 = arith.constant dense<0.000000e+00> : vector<8xf32>
      %284 = vector.multi_reduction <add>, %283, %cst_121 [1] : vector<8x8xf32> to vector<8xf32>
      %285 = vector.shape_cast %284 : vector<8xf32> to vector<8x1xf32>
      %286 = tpu.reciprocal %285 {approx = true} : vector<8x1xf32> -> vector<8x1xf32>
      %287 = vector.broadcast %286 : vector<8x1xf32> to vector<8x8xf32>
      %288 = arith.mulf %283, %287 : vector<8x8xf32>
      %289 = vector.extract_strided_slice %189 {offsets = [0, 24], sizes = [8, 8], strides = [1, 1]} : vector<8x32xf32> to vector<8x8xf32>
      %290 = arith.truncf %288 : vector<8x8xf32> to vector<8x8xbf16>
      %291 = arith.truncf %289 : vector<8x8xf32> to vector<8x8xbf16>
      %cst_122 = arith.constant dense<0.000000e+00> : vector<8x8xf32>
      %292 = tpu.matmul %290, %291, %cst_122 {dimension_numbers = #tpu.dot_dimension_numbers<[1], [0], [0], [1], [0, 0, 1, 1], [], []>} : vector<8x8xbf16>, vector<8x8xbf16>, vector<8x8xf32> -> vector<8x8xf32>
      %c0_123 = arith.constant 0 : index
      %c24_124 = arith.constant 24 : index
      %293 = vector.load %arg28[%c0_123, %c24_124] : memref<8x32xf32, #tpu.memory_space<vmem>>, vector<8x8xf32>
      tpu.vector_store %arg28[%c0_123, %c24_124], %292 {strides = array<i32>} : memref<8x32xf32, #tpu.memory_space<vmem>>, vector<8x8xf32>,
      %c0_125 = arith.constant 0 : index
      %c0_126 = arith.constant 0 : index
      %294 = vector.load %arg28[%c0_125, %c0_126] : memref<8x32xf32, #tpu.memory_space<vmem>>, vector<8x32xf32>
      %c0_127 = arith.constant 0 : index
      %c0_128 = arith.constant 0 : index
      %295 = vector.load %arg16[%c0_127, %c0_128] : memref<32x32xbf16, #tpu.memory_space<vmem>>, vector<32x32xbf16>
      %296 = arith.truncf %294 : vector<8x32xf32> to vector<8x32xbf16>
      %cst_129 = arith.constant dense<0.000000e+00> : vector<8x32xf32>
      %297 = tpu.matmul %296, %295, %cst_129 {dimension_numbers = #tpu.dot_dimension_numbers<[1], [0], [0], [1], [0, 0, 1, 1], [], []>} : vector<8x32xbf16>, vector<32x32xbf16>, vector<8x32xf32> -> vector<8x32xf32>
      %c0_130 = arith.constant 0 : index
      %c0_131 = arith.constant 0 : index
      %298 = vector.load %arg17[%c0_130, %c0_131] : memref<1x32xf32, #tpu.memory_space<vmem>>, vector<1x32xf32>
      %299 = vector.broadcast %298 : vector<1x32xf32> to vector<8x32xf32>
      %300 = arith.addf %297, %299 : vector<8x32xf32>
      %301 = arith.addf %174, %300 : vector<8x32xf32>
      %c0_132 = arith.constant 0 : index
      %c0_133 = arith.constant 0 : index
      %302 = vector.load %arg18[%c0_132, %c0_133] : memref<1x32xf32, #tpu.memory_space<vmem>>, vector<1x32xf32>
      %c0_134 = arith.constant 0 : index
      %c0_135 = arith.constant 0 : index
      %303 = vector.load %arg19[%c0_134, %c0_135] : memref<1x32xf32, #tpu.memory_space<vmem>>, vector<1x32xf32>
      %cst_136 = arith.constant dense<0.000000e+00> : vector<8xf32>
      %304 = vector.multi_reduction <add>, %301, %cst_136 [1] : vector<8x32xf32> to vector<8xf32>
      %305 = vector.shape_cast %304 : vector<8xf32> to vector<8x1xf32>
      %cst_137 = arith.constant 3.200000e+01 : f32
      %306 = vector.broadcast %cst_137 : f32 to vector<8x1xf32>
      %307 = arith.divf %305, %306 : vector<8x1xf32>
      %308 = vector.broadcast %307 : vector<8x1xf32> to vector<8x32xf32>
      %309 = arith.subf %301, %308 : vector<8x32xf32>
      %310 = arith.mulf %309, %309 : vector<8x32xf32>
      %cst_138 = arith.constant dense<0.000000e+00> : vector<8xf32>
      %311 = vector.multi_reduction <add>, %310, %cst_138 [1] : vector<8x32xf32> to vector<8xf32>
      %312 = vector.shape_cast %311 : vector<8xf32> to vector<8x1xf32>
      %cst_139 = arith.constant 3.200000e+01 : f32
      %313 = vector.broadcast %cst_139 : f32 to vector<8x1xf32>
      %314 = arith.divf %312, %313 : vector<8x1xf32>
      %315 = vector.broadcast %307 : vector<8x1xf32> to vector<8x32xf32>
      %316 = arith.subf %301, %315 : vector<8x32xf32>
      %cst_140 = arith.constant 9.99999974E-6 : f32
      %317 = vector.broadcast %cst_140 : f32 to vector<8x1xf32>
      %318 = arith.addf %314, %317 : vector<8x1xf32>
      %319 = math.rsqrt %318 : vector<8x1xf32>
      %320 = vector.broadcast %319 : vector<8x1xf32> to vector<8x32xf32>
      %321 = arith.mulf %316, %320 : vector<8x32xf32>
      %322 = vector.broadcast %302 : vector<1x32xf32> to vector<8x32xf32>
      %323 = arith.mulf %321, %322 : vector<8x32xf32>
      %324 = vector.broadcast %303 : vector<1x32xf32> to vector<8x32xf32>
      %325 = arith.addf %323, %324 : vector<8x32xf32>
      %c0_141 = arith.constant 0 : index
      %c0_142 = arith.constant 0 : index
      %326 = vector.load %arg27[%c0_141, %c0_142] : memref<8x32xf32, #tpu.memory_space<vmem>>, vector<8x32xf32>
      tpu.vector_store %arg27[%c0_141, %c0_142], %325 {strides = array<i32>} : memref<8x32xf32, #tpu.memory_space<vmem>>, vector<8x32xf32>,
      %cst_143 = arith.constant 0.000000e+00 : f32
      %327 = vector.broadcast %cst_143 : f32 to vector<8x32xf32>
      %c0_144 = arith.constant 0 : index
      %c0_145 = arith.constant 0 : index
      %328 = vector.load %arg28[%c0_144, %c0_145] : memref<8x32xf32, #tpu.memory_space<vmem>>, vector<8x32xf32>
      tpu.vector_store %arg28[%c0_144, %c0_145], %327 {strides = array<i32>} : memref<8x32xf32, #tpu.memory_space<vmem>>, vector<8x32xf32>,
    } else {
    }
    %c0 = arith.constant 0 : index
    %c0_1 = arith.constant 0 : index
    %3 = vector.load %arg27[%c0, %c0_1] : memref<8x32xf32, #tpu.memory_space<vmem>>, vector<8x32xf32>
    %c0_2 = arith.constant 0 : index
    %c0_3 = arith.constant 0 : index
    %4 = vector.load %arg20[%c0_2, %c0_3] : memref<32x64xbf16, #tpu.memory_space<vmem>>, vector<32x64xbf16>
    %5 = arith.truncf %3 : vector<8x32xf32> to vector<8x32xbf16>
    %cst = arith.constant dense<0.000000e+00> : vector<8x64xf32>
    %6 = tpu.matmul %5, %4, %cst {dimension_numbers = #tpu.dot_dimension_numbers<[1], [0], [0], [1], [0, 0, 1, 1], [], []>} : vector<8x32xbf16>, vector<32x64xbf16>, vector<8x64xf32> -> vector<8x64xf32>
    %c0_4 = arith.constant 0 : index
    %c0_5 = arith.constant 0 : index
    %7 = vector.load %arg21[%c0_4, %c0_5] : memref<1x64xf32, #tpu.memory_space<vmem>>, vector<1x64xf32>
    %8 = vector.broadcast %7 : vector<1x64xf32> to vector<8x64xf32>
    %9 = arith.addf %6, %8 : vector<8x64xf32>
    %cst_6 = arith.constant 0.000000e+00 : f32
    %10 = vector.broadcast %cst_6 : f32 to vector<8x64xf32>
    %11 = arith.maximumf %9, %10 : vector<8x64xf32>
    %c0_7 = arith.constant 0 : index
    %c0_8 = arith.constant 0 : index
    %12 = vector.load %arg28[%c0_7, %c0_8] : memref<8x32xf32, #tpu.memory_space<vmem>>, vector<8x32xf32>
    %c0_9 = arith.constant 0 : index
    %c0_10 = arith.constant 0 : index
    %13 = vector.load %arg22[%c0_9, %c0_10] : memref<64x32xbf16, #tpu.memory_space<vmem>>, vector<64x32xbf16>
    %14 = arith.truncf %11 : vector<8x64xf32> to vector<8x64xbf16>
    %cst_11 = arith.constant dense<0.000000e+00> : vector<8x32xf32>
    %15 = tpu.matmul %14, %13, %cst_11 {dimension_numbers = #tpu.dot_dimension_numbers<[1], [0], [0], [1], [0, 0, 1, 1], [], []>} : vector<8x64xbf16>, vector<64x32xbf16>, vector<8x32xf32> -> vector<8x32xf32>
    %16 = arith.addf %12, %15 : vector<8x32xf32>
    %c0_12 = arith.constant 0 : index
    %c0_13 = arith.constant 0 : index
    %17 = vector.load %arg28[%c0_12, %c0_13] : memref<8x32xf32, #tpu.memory_space<vmem>>, vector<8x32xf32>
    tpu.vector_store %arg28[%c0_12, %c0_13], %16 {strides = array<i32>} : memref<8x32xf32, #tpu.memory_space<vmem>>, vector<8x32xf32>,
    %c0_i32_14 = arith.constant 0 : i32
    %18 = arith.cmpi eq, %arg1, %c0_i32_14 : i32
    %19 = arith.extui %18 : i1 to i32
    %c0_i32_15 = arith.constant 0 : i32
    %20 = arith.cmpi ne, %19, %c0_i32_15 : i32
    scf.if %20 {
      %c0_16 = arith.constant 0 : index
      %c0_17 = arith.constant 0 : index
      %21 = vector.load %arg27[%c0_16, %c0_17] : memref<8x32xf32, #tpu.memory_space<vmem>>, vector<8x32xf32>
      %c0_18 = arith.constant 0 : index
      %c0_19 = arith.constant 0 : index
      %22 = vector.load %arg28[%c0_18, %c0_19] : memref<8x32xf32, #tpu.memory_space<vmem>>, vector<8x32xf32>
      %23 = arith.addf %21, %22 : vector<8x32xf32>
      %c0_20 = arith.constant 0 : index
      %c0_21 = arith.constant 0 : index
      %24 = vector.load %arg23[%c0_20, %c0_21] : memref<1x32xf32, #tpu.memory_space<vmem>>, vector<1x32xf32>
      %25 = vector.broadcast %24 : vector<1x32xf32> to vector<8x32xf32>
      %26 = arith.addf %23, %25 : vector<8x32xf32>
      %c0_22 = arith.constant 0 : index
      %c0_23 = arith.constant 0 : index
      %27 = vector.load %arg24[%c0_22, %c0_23] : memref<1x32xf32, #tpu.memory_space<vmem>>, vector<1x32xf32>
      %c0_24 = arith.constant 0 : index
      %c0_25 = arith.constant 0 : index
      %28 = vector.load %arg25[%c0_24, %c0_25] : memref<1x32xf32, #tpu.memory_space<vmem>>, vector<1x32xf32>
      %cst_26 = arith.constant dense<0.000000e+00> : vector<8xf32>
      %29 = vector.multi_reduction <add>, %26, %cst_26 [1] : vector<8x32xf32> to vector<8xf32>
      %30 = vector.shape_cast %29 : vector<8xf32> to vector<8x1xf32>
      %cst_27 = arith.constant 3.200000e+01 : f32
      %31 = vector.broadcast %cst_27 : f32 to vector<8x1xf32>
      %32 = arith.divf %30, %31 : vector<8x1xf32>
      %33 = vector.broadcast %32 : vector<8x1xf32> to vector<8x32xf32>
      %34 = arith.subf %26, %33 : vector<8x32xf32>
      %35 = arith.mulf %34, %34 : vector<8x32xf32>
      %cst_28 = arith.constant dense<0.000000e+00> : vector<8xf32>
      %36 = vector.multi_reduction <add>, %35, %cst_28 [1] : vector<8x32xf32> to vector<8xf32>
      %37 = vector.shape_cast %36 : vector<8xf32> to vector<8x1xf32>
      %cst_29 = arith.constant 3.200000e+01 : f32
      %38 = vector.broadcast %cst_29 : f32 to vector<8x1xf32>
      %39 = arith.divf %37, %38 : vector<8x1xf32>
      %40 = vector.broadcast %32 : vector<8x1xf32> to vector<8x32xf32>
      %41 = arith.subf %26, %40 : vector<8x32xf32>
      %cst_30 = arith.constant 9.99999974E-6 : f32
      %42 = vector.broadcast %cst_30 : f32 to vector<8x1xf32>
      %43 = arith.addf %39, %42 : vector<8x1xf32>
      %44 = math.rsqrt %43 : vector<8x1xf32>
      %45 = vector.broadcast %44 : vector<8x1xf32> to vector<8x32xf32>
      %46 = arith.mulf %41, %45 : vector<8x32xf32>
      %47 = vector.broadcast %27 : vector<1x32xf32> to vector<8x32xf32>
      %48 = arith.mulf %46, %47 : vector<8x32xf32>
      %49 = vector.broadcast %28 : vector<1x32xf32> to vector<8x32xf32>
      %50 = arith.addf %48, %49 : vector<8x32xf32>
      %51 = arith.truncf %50 : vector<8x32xf32> to vector<8x32xbf16>
      %c0_31 = arith.constant 0 : index
      %c0_32 = arith.constant 0 : index
      %c0_33 = arith.constant 0 : index
      %52 = vector.load %arg26[%c0_31, %c0_32, %c0_33] : memref<1x8x32xbf16, #tpu.memory_space<vmem>>, vector<1x8x32xbf16>
      %53 = vector.shape_cast %52 : vector<1x8x32xbf16> to vector<8x32xbf16>
      %54 = vector.shape_cast %51 : vector<8x32xbf16> to vector<1x8x32xbf16>
      tpu.vector_store %arg26[%c0_31, %c0_32, %c0_33], %54 {strides = array<i32>} : memref<1x8x32xbf16, #tpu.memory_space<vmem>>, vector<1x8x32xbf16>,
    } else {
    }
    return
  }
  func.func @transform_0(%arg0: i32, %arg1: i32) -> (i32, i32, i32) {
    %c0_i32 = arith.constant 0 : i32
    %c0_i32_0 = arith.constant 0 : i32
    %c0_i32_1 = arith.constant 0 : i32
    return %arg0, %c0_i32, %c0_i32_0 : i32, i32, i32
  }
  func.func @transform_1(%arg0: i32, %arg1: i32) -> (i32, i32, i32) {
    %c0_i32 = arith.constant 0 : i32
    %c0_i32_0 = arith.constant 0 : i32
    %c0_i32_1 = arith.constant 0 : i32
    return %arg0, %c0_i32, %c0_i32_0 : i32, i32, i32
  }
  func.func @transform_2(%arg0: i32, %arg1: i32) -> (i32, i32, i32) {
    %c0_i32 = arith.constant 0 : i32
    %c0_i32_0 = arith.constant 0 : i32
    %c0_i32_1 = arith.constant 0 : i32
    return %arg0, %c0_i32, %c0_i32_0 : i32, i32, i32
  }
  func.func @transform_3(%arg0: i32, %arg1: i32) -> (i32, i32, i32) {
    %c0_i32 = arith.constant 0 : i32
    %c0_i32_0 = arith.constant 0 : i32
    %c0_i32_1 = arith.constant 0 : i32
    return %arg0, %c0_i32, %c0_i32_0 : i32, i32, i32
  }
  func.func @transform_4(%arg0: i32, %arg1: i32) -> (i32, i32) {
    %c0_i32 = arith.constant 0 : i32
    %c0_i32_0 = arith.constant 0 : i32
    %c0_i32_1 = arith.constant 0 : i32
    return %c0_i32, %c0_i32_0 : i32, i32
  }
  func.func @transform_5(%arg0: i32, %arg1: i32) -> (i32, i32) {
    %c0_i32 = arith.constant 0 : i32
    %c0_i32_0 = arith.constant 0 : i32
    %c0_i32_1 = arith.constant 0 : i32
    return %c0_i32, %c0_i32_0 : i32, i32
  }
  func.func @transform_6(%arg0: i32, %arg1: i32) -> (i32, i32) {
    %c0_i32 = arith.constant 0 : i32
    %c0_i32_0 = arith.constant 0 : i32
    %c0_i32_1 = arith.constant 0 : i32
    return %c0_i32, %c0_i32_0 : i32, i32
  }
  func.func @transform_7(%arg0: i32, %arg1: i32) -> (i32, i32) {
    %c0_i32 = arith.constant 0 : i32
    %c0_i32_0 = arith.constant 0 : i32
    %c0_i32_1 = arith.constant 0 : i32
    return %c0_i32, %c0_i32_0 : i32, i32
  }
  func.func @transform_8(%arg0: i32, %arg1: i32) -> (i32, i32) {
    %c0_i32 = arith.constant 0 : i32
    %c0_i32_0 = arith.constant 0 : i32
    %c0_i32_1 = arith.constant 0 : i32
    return %c0_i32, %c0_i32_0 : i32, i32
  }
  func.func @transform_9(%arg0: i32, %arg1: i32) -> (i32, i32) {
    %c0_i32 = arith.constant 0 : i32
    %c0_i32_0 = arith.constant 0 : i32
    %c0_i32_1 = arith.constant 0 : i32
    return %c0_i32, %c0_i32_0 : i32, i32
  }
  func.func @transform_10(%arg0: i32, %arg1: i32) -> (i32, i32) {
    %c0_i32 = arith.constant 0 : i32
    %c0_i32_0 = arith.constant 0 : i32
    %c0_i32_1 = arith.constant 0 : i32
    return %c0_i32, %c0_i32_0 : i32, i32
  }
  func.func @transform_11(%arg0: i32, %arg1: i32) -> (i32, i32) {
    %c0_i32 = arith.constant 0 : i32
    %c0_i32_0 = arith.constant 0 : i32
    %c0_i32_1 = arith.constant 0 : i32
    return %c0_i32, %c0_i32_0 : i32, i32
  }
  func.func @transform_12(%arg0: i32, %arg1: i32) -> (i32, i32) {
    %c0_i32 = arith.constant 0 : i32
    %c0_i32_0 = arith.constant 0 : i32
    %c0_i32_1 = arith.constant 0 : i32
    return %c0_i32, %c0_i32_0 : i32, i32
  }
  func.func @transform_13(%arg0: i32, %arg1: i32) -> (i32, i32) {
    %c0_i32 = arith.constant 0 : i32
    %c0_i32_0 = arith.constant 0 : i32
    %c0_i32_1 = arith.constant 0 : i32
    return %c0_i32, %c0_i32_0 : i32, i32
  }
  func.func @transform_14(%arg0: i32, %arg1: i32) -> (i32, i32) {
    %c0_i32 = arith.constant 0 : i32
    %c0_i32_0 = arith.constant 0 : i32
    %c0_i32_1 = arith.constant 0 : i32
    return %c0_i32, %c0_i32_0 : i32, i32
  }
  func.func @transform_15(%arg0: i32, %arg1: i32) -> (i32, i32) {
    %c0_i32 = arith.constant 0 : i32
    %c0_i32_0 = arith.constant 0 : i32
    %c0_i32_1 = arith.constant 0 : i32
    return %c0_i32, %c0_i32_0 : i32, i32
  }
  func.func @transform_16(%arg0: i32, %arg1: i32) -> (i32, i32) {
    %c0_i32 = arith.constant 0 : i32
    %c0_i32_0 = arith.constant 0 : i32
    %c0_i32_1 = arith.constant 0 : i32
    return %c0_i32, %c0_i32_0 : i32, i32
  }
  func.func @transform_17(%arg0: i32, %arg1: i32) -> (i32, i32) {
    %c0_i32 = arith.constant 0 : i32
    %c0_i32_0 = arith.constant 0 : i32
    %c0_i32_1 = arith.constant 0 : i32
    return %c0_i32, %c0_i32_0 : i32, i32
  }
  func.func @transform_18(%arg0: i32, %arg1: i32) -> (i32, i32) {
    %c0_i32 = arith.constant 0 : i32
    %c0_i32_0 = arith.constant 0 : i32
    return %c0_i32, %arg1 : i32, i32
  }
  func.func @transform_19(%arg0: i32, %arg1: i32) -> (i32, i32) {
    %c0_i32 = arith.constant 0 : i32
    %c0_i32_0 = arith.constant 0 : i32
    return %c0_i32, %arg1 : i32, i32
  }
  func.func @transform_20(%arg0: i32, %arg1: i32) -> (i32, i32) {
    %c0_i32 = arith.constant 0 : i32
    %c0_i32_0 = arith.constant 0 : i32
    return %arg1, %c0_i32 : i32, i32
  }
  func.func @transform_21(%arg0: i32, %arg1: i32) -> (i32, i32) {
    %c0_i32 = arith.constant 0 : i32
    %c0_i32_0 = arith.constant 0 : i32
    %c0_i32_1 = arith.constant 0 : i32
    return %c0_i32, %c0_i32_0 : i32, i32
  }
  func.func @transform_22(%arg0: i32, %arg1: i32) -> (i32, i32) {
    %c0_i32 = arith.constant 0 : i32
    %c0_i32_0 = arith.constant 0 : i32
    %c0_i32_1 = arith.constant 0 : i32
    return %c0_i32, %c0_i32_0 : i32, i32
  }
  func.func @transform_23(%arg0: i32, %arg1: i32) -> (i32, i32) {
    %c0_i32 = arith.constant 0 : i32
    %c0_i32_0 = arith.constant 0 : i32
    %c0_i32_1 = arith.constant 0 : i32
    return %c0_i32, %c0_i32_0 : i32, i32
  }
  func.func @transform_24(%arg0: i32, %arg1: i32) -> (i32, i32, i32) {
    %c0_i32 = arith.constant 0 : i32
    %c0_i32_0 = arith.constant 0 : i32
    %c0_i32_1 = arith.constant 0 : i32
    return %arg0, %c0_i32, %c0_i32_0 : i32, i32, i32
  }
}

module attributes {stable_mosaic.version = 11 : i64} {
  func.func @_decoder_layer_kernel(%arg0: i32, %arg1: i32, %arg2: memref<1x8x32xbf16, #tpu.memory_space<vmem>>, %arg3: memref<1x8x32xbf16, #tpu.memory_space<vmem>>, %arg4: memref<1x1x8xf32, #tpu.memory_space<vmem>>, %arg5: memref<1x1x8xf32, #tpu.memory_space<vmem>>, %arg6: memref<32x96xbf16, #tpu.memory_space<vmem>>, %arg7: memref<1x96xf32, #tpu.memory_space<vmem>>, %arg8: memref<32x32xbf16, #tpu.memory_space<vmem>>, %arg9: memref<1x32xf32, #tpu.memory_space<vmem>>, %arg10: memref<1x32xf32, #tpu.memory_space<vmem>>, %arg11: memref<1x32xf32, #tpu.memory_space<vmem>>, %arg12: memref<32x32xbf16, #tpu.memory_space<vmem>>, %arg13: memref<1x32xf32, #tpu.memory_space<vmem>>, %arg14: memref<32x64xbf16, #tpu.memory_space<vmem>>, %arg15: memref<1x64xf32, #tpu.memory_space<vmem>>, %arg16: memref<32x32xbf16, #tpu.memory_space<vmem>>, %arg17: memref<1x32xf32, #tpu.memory_space<vmem>>, %arg18: memref<1x32xf32, #tpu.memory_space<vmem>>, %arg19: memref<1x32xf32, #tpu.memory_space<vmem>>, %arg20: memref<32x64xbf16, #tpu.memory_space<vmem>>, %arg21: memref<1x64xf32, #tpu.memory_space<vmem>>, %arg22: memref<64x32xbf16, #tpu.memory_space<vmem>>, %arg23: memref<1x32xf32, #tpu.memory_space<vmem>>, %arg24: memref<1x32xf32, #tpu.memory_space<vmem>>, %arg25: memref<1x32xf32, #tpu.memory_space<vmem>>, %arg26: memref<1x8x32xbf16, #tpu.memory_space<vmem>>, %arg27: memref<1x4x8x8xbf16, #tpu.memory_space<vmem>>, %arg28: memref<8x32xf32, #tpu.memory_space<vmem>>, %arg29: memref<8x32xf32, #tpu.memory_space<vmem>>) attributes {dimension_semantics = [#tpu.dimension_semantics<parallel>, #tpu.dimension_semantics<arbitrary>], iteration_bounds = array<i64: 2, 1>, scalar_prefetch = 0 : i64, scratch_operands = 2 : i64, tpu.core_type = #tpu.core_type<tc>, window_params = [{transform_indices = @transform_0, window_bounds = array<i64: 1, 8, 32>}, {transform_indices = @transform_1, window_bounds = array<i64: 1, 8, 32>}, {transform_indices = @transform_2, window_bounds = array<i64: 1, 1, 8>}, {transform_indices = @transform_3, window_bounds = array<i64: 1, 1, 8>}, {pipeline_mode = #tpu.pipeline_mode<synchronous>, transform_indices = @transform_4, window_bounds = array<i64: 32, 96>}, {pipeline_mode = #tpu.pipeline_mode<synchronous>, transform_indices = @transform_5, window_bounds = array<i64: 1, 96>}, {pipeline_mode = #tpu.pipeline_mode<synchronous>, transform_indices = @transform_6, window_bounds = array<i64: 32, 32>}, {pipeline_mode = #tpu.pipeline_mode<synchronous>, transform_indices = @transform_7, window_bounds = array<i64: 1, 32>}, {pipeline_mode = #tpu.pipeline_mode<synchronous>, transform_indices = @transform_8, window_bounds = array<i64: 1, 32>}, {pipeline_mode = #tpu.pipeline_mode<synchronous>, transform_indices = @transform_9, window_bounds = array<i64: 1, 32>}, {pipeline_mode = #tpu.pipeline_mode<synchronous>, transform_indices = @transform_10, window_bounds = array<i64: 32, 32>}, {pipeline_mode = #tpu.pipeline_mode<synchronous>, transform_indices = @transform_11, window_bounds = array<i64: 1, 32>}, {pipeline_mode = #tpu.pipeline_mode<synchronous>, transform_indices = @transform_12, window_bounds = array<i64: 32, 64>}, {pipeline_mode = #tpu.pipeline_mode<synchronous>, transform_indices = @transform_13, window_bounds = array<i64: 1, 64>}, {pipeline_mode = #tpu.pipeline_mode<synchronous>, transform_indices = @transform_14, window_bounds = array<i64: 32, 32>}, {pipeline_mode = #tpu.pipeline_mode<synchronous>, transform_indices = @transform_15, window_bounds = array<i64: 1, 32>}, {pipeline_mode = #tpu.pipeline_mode<synchronous>, transform_indices = @transform_16, window_bounds = array<i64: 1, 32>}, {pipeline_mode = #tpu.pipeline_mode<synchronous>, transform_indices = @transform_17, window_bounds = array<i64: 1, 32>}, {transform_indices = @transform_18, window_bounds = array<i64: 32, 64>}, {transform_indices = @transform_19, window_bounds = array<i64: 1, 64>}, {transform_indices = @transform_20, window_bounds = array<i64: 64, 32>}, {pipeline_mode = #tpu.pipeline_mode<synchronous>, transform_indices = @transform_21, window_bounds = array<i64: 1, 32>}, {pipeline_mode = #tpu.pipeline_mode<synchronous>, transform_indices = @transform_22, window_bounds = array<i64: 1, 32>}, {pipeline_mode = #tpu.pipeline_mode<synchronous>, transform_indices = @transform_23, window_bounds = array<i64: 1, 32>}, {transform_indices = @transform_24, window_bounds = array<i64: 1, 8, 32>}, {transform_indices = @transform_25, window_bounds = array<i64: 1, 4, 8, 8>}]} {
    %c0_i32 = arith.constant 0 : i32
    %0 = arith.cmpi eq, %arg1, %c0_i32 : i32
    %1 = arith.extui %0 : i1 to i32
    %c0_i32_0 = arith.constant 0 : i32
    %2 = arith.cmpi ne, %1, %c0_i32_0 : i32
    scf.if %2 {
      %c0_16 = arith.constant 0 : index
      %c0_17 = arith.constant 0 : index
      %c0_18 = arith.constant 0 : index
      %21 = vector.load %arg2[%c0_16, %c0_17, %c0_18] : memref<1x8x32xbf16, #tpu.memory_space<vmem>>, vector<1x8x32xbf16>
      %22 = vector.shape_cast %21 : vector<1x8x32xbf16> to vector<8x32xbf16>
      %23 = arith.extf %22 : vector<8x32xbf16> to vector<8x32xf32>
      %24 = tpu.iota {dimensions = array<i32: 0>} : vector<8x8xi32>
      %25 = tpu.iota {dimensions = array<i32: 1>} : vector<8x8xi32>
      %26 = arith.cmpi sle, %25, %24 : vector<8x8xi32>
      %c0_19 = arith.constant 0 : index
      %c0_20 = arith.constant 0 : index
      %c0_21 = arith.constant 0 : index
      %27 = vector.load %arg4[%c0_19, %c0_20, %c0_21] : memref<1x1x8xf32, #tpu.memory_space<vmem>>, vector<1x1x8xf32>
      %28 = vector.shape_cast %27 : vector<1x1x8xf32> to vector<1x8xf32>
      %cst_22 = arith.constant 5.000000e-01 : f32
      %29 = vector.broadcast %cst_22 : f32 to vector<1x8xf32>
      %30 = arith.cmpf ogt, %28, %29 : vector<1x8xf32>
      %31 = vector.broadcast %30 : vector<1x8xi1> to vector<8x8xi1>
      %32 = arith.andi %26, %31 : vector<8x8xi1>
      %c0_23 = arith.constant 0 : index
      %c0_24 = arith.constant 0 : index
      %c0_25 = arith.constant 0 : index
      %33 = vector.load %arg5[%c0_23, %c0_24, %c0_25] : memref<1x1x8xf32, #tpu.memory_space<vmem>>, vector<1x1x8xf32>
      %34 = vector.shape_cast %33 : vector<1x1x8xf32> to vector<1x8xf32>
      %cst_26 = arith.constant 5.000000e-01 : f32
      %35 = vector.broadcast %cst_26 : f32 to vector<1x8xf32>
      %36 = arith.cmpf ogt, %34, %35 : vector<1x8xf32>
      %c0_27 = arith.constant 0 : index
      %c0_28 = arith.constant 0 : index
      %c0_29 = arith.constant 0 : index
      %37 = vector.load %arg2[%c0_27, %c0_28, %c0_29] : memref<1x8x32xbf16, #tpu.memory_space<vmem>>, vector<1x8x32xbf16>
      %38 = vector.shape_cast %37 : vector<1x8x32xbf16> to vector<8x32xbf16>
      %c0_30 = arith.constant 0 : index
      %c0_31 = arith.constant 0 : index
      %39 = vector.load %arg6[%c0_30, %c0_31] : memref<32x96xbf16, #tpu.memory_space<vmem>>, vector<32x96xbf16>
      %cst_32 = arith.constant dense<0.000000e+00> : vector<8x96xf32>
      %40 = tpu.matmul %38, %39, %cst_32 {dimension_numbers = #tpu.dot_dimension_numbers<[1], [0], [0], [1], [0, 0, 1, 1], [], []>} : vector<8x32xbf16>, vector<32x96xbf16>, vector<8x96xf32> -> vector<8x96xf32>
      %c0_33 = arith.constant 0 : index
      %c0_34 = arith.constant 0 : index
      %41 = vector.load %arg7[%c0_33, %c0_34] : memref<1x96xf32, #tpu.memory_space<vmem>>, vector<1x96xf32>
      %42 = vector.broadcast %41 : vector<1x96xf32> to vector<8x96xf32>
      %43 = arith.addf %40, %42 : vector<8x96xf32>
      %44 = vector.extract_strided_slice %43 {offsets = [0, 0], sizes = [8, 32], strides = [1, 1]} : vector<8x96xf32> to vector<8x32xf32>
      %45 = vector.extract_strided_slice %43 {offsets = [0, 32], sizes = [8, 32], strides = [1, 1]} : vector<8x96xf32> to vector<8x32xf32>
      %46 = vector.extract_strided_slice %43 {offsets = [0, 64], sizes = [8, 32], strides = [1, 1]} : vector<8x96xf32> to vector<8x32xf32>
      %47 = vector.extract_strided_slice %44 {offsets = [0, 0], sizes = [8, 8], strides = [1, 1]} : vector<8x32xf32> to vector<8x8xf32>
      %48 = vector.extract_strided_slice %45 {offsets = [0, 0], sizes = [8, 8], strides = [1, 1]} : vector<8x32xf32> to vector<8x8xf32>
      %49 = arith.truncf %47 : vector<8x8xf32> to vector<8x8xbf16>
      %50 = arith.truncf %48 : vector<8x8xf32> to vector<8x8xbf16>
      %cst_35 = arith.constant dense<0.000000e+00> : vector<8x8xf32>
      %51 = tpu.matmul %49, %50, %cst_35 {dimension_numbers = #tpu.dot_dimension_numbers<[1], [1], [0], [0], [0, 0, 1, 0], [], []>} : vector<8x8xbf16>, vector<8x8xbf16>, vector<8x8xf32> -> vector<8x8xf32>
      %cst_36 = arith.constant 0.353553385 : f32
      %52 = vector.broadcast %cst_36 : f32 to vector<8x8xf32>
      %53 = arith.mulf %51, %52 : vector<8x8xf32>
      %cst_37 = arith.constant -1.000000e+10 : f32
      %54 = vector.broadcast %cst_37 : f32 to vector<8x8xf32>
      %55 = arith.select %32, %53, %54 : vector<8x8xi1>, vector<8x8xf32>
      %cst_38 = arith.constant dense<0xFF800000> : vector<8xf32>
      %56 = vector.multi_reduction <maximumf>, %55, %cst_38 [1] : vector<8x8xf32> to vector<8xf32>
      %57 = vector.shape_cast %56 : vector<8xf32> to vector<8x1xf32>
      %58 = vector.broadcast %57 : vector<8x1xf32> to vector<8x8xf32>
      %59 = arith.subf %55, %58 : vector<8x8xf32>
      %60 = math.exp %59 : vector<8x8xf32>
      %cst_39 = arith.constant dense<0.000000e+00> : vector<8xf32>
      %61 = vector.multi_reduction <add>, %60, %cst_39 [1] : vector<8x8xf32> to vector<8xf32>
      %62 = vector.shape_cast %61 : vector<8xf32> to vector<8x1xf32>
      %63 = tpu.reciprocal %62 {approx = true} : vector<8x1xf32> -> vector<8x1xf32>
      %64 = vector.broadcast %63 : vector<8x1xf32> to vector<8x8xf32>
      %65 = arith.mulf %60, %64 : vector<8x8xf32>
      %66 = vector.extract_strided_slice %46 {offsets = [0, 0], sizes = [8, 8], strides = [1, 1]} : vector<8x32xf32> to vector<8x8xf32>
      %67 = arith.truncf %65 : vector<8x8xf32> to vector<8x8xbf16>
      %68 = arith.truncf %66 : vector<8x8xf32> to vector<8x8xbf16>
      %cst_40 = arith.constant dense<0.000000e+00> : vector<8x8xf32>
      %69 = tpu.matmul %67, %68, %cst_40 {dimension_numbers = #tpu.dot_dimension_numbers<[1], [0], [0], [1], [0, 0, 1, 1], [], []>} : vector<8x8xbf16>, vector<8x8xbf16>, vector<8x8xf32> -> vector<8x8xf32>
      %c0_41 = arith.constant 0 : index
      %c0_42 = arith.constant 0 : index
      %70 = vector.load %arg29[%c0_41, %c0_42] : memref<8x32xf32, #tpu.memory_space<vmem>>, vector<8x8xf32>
      tpu.vector_store %arg29[%c0_41, %c0_42], %69 {strides = array<i32>} : memref<8x32xf32, #tpu.memory_space<vmem>>, vector<8x8xf32>,
      %71 = vector.extract_strided_slice %44 {offsets = [0, 8], sizes = [8, 8], strides = [1, 1]} : vector<8x32xf32> to vector<8x8xf32>
      %72 = vector.extract_strided_slice %45 {offsets = [0, 8], sizes = [8, 8], strides = [1, 1]} : vector<8x32xf32> to vector<8x8xf32>
      %73 = arith.truncf %71 : vector<8x8xf32> to vector<8x8xbf16>
      %74 = arith.truncf %72 : vector<8x8xf32> to vector<8x8xbf16>
      %cst_43 = arith.constant dense<0.000000e+00> : vector<8x8xf32>
      %75 = tpu.matmul %73, %74, %cst_43 {dimension_numbers = #tpu.dot_dimension_numbers<[1], [1], [0], [0], [0, 0, 1, 0], [], []>} : vector<8x8xbf16>, vector<8x8xbf16>, vector<8x8xf32> -> vector<8x8xf32>
      %cst_44 = arith.constant 0.353553385 : f32
      %76 = vector.broadcast %cst_44 : f32 to vector<8x8xf32>
      %77 = arith.mulf %75, %76 : vector<8x8xf32>
      %cst_45 = arith.constant -1.000000e+10 : f32
      %78 = vector.broadcast %cst_45 : f32 to vector<8x8xf32>
      %79 = arith.select %32, %77, %78 : vector<8x8xi1>, vector<8x8xf32>
      %cst_46 = arith.constant dense<0xFF800000> : vector<8xf32>
      %80 = vector.multi_reduction <maximumf>, %79, %cst_46 [1] : vector<8x8xf32> to vector<8xf32>
      %81 = vector.shape_cast %80 : vector<8xf32> to vector<8x1xf32>
      %82 = vector.broadcast %81 : vector<8x1xf32> to vector<8x8xf32>
      %83 = arith.subf %79, %82 : vector<8x8xf32>
      %84 = math.exp %83 : vector<8x8xf32>
      %cst_47 = arith.constant dense<0.000000e+00> : vector<8xf32>
      %85 = vector.multi_reduction <add>, %84, %cst_47 [1] : vector<8x8xf32> to vector<8xf32>
      %86 = vector.shape_cast %85 : vector<8xf32> to vector<8x1xf32>
      %87 = tpu.reciprocal %86 {approx = true} : vector<8x1xf32> -> vector<8x1xf32>
      %88 = vector.broadcast %87 : vector<8x1xf32> to vector<8x8xf32>
      %89 = arith.mulf %84, %88 : vector<8x8xf32>
      %90 = vector.extract_strided_slice %46 {offsets = [0, 8], sizes = [8, 8], strides = [1, 1]} : vector<8x32xf32> to vector<8x8xf32>
      %91 = arith.truncf %89 : vector<8x8xf32> to vector<8x8xbf16>
      %92 = arith.truncf %90 : vector<8x8xf32> to vector<8x8xbf16>
      %cst_48 = arith.constant dense<0.000000e+00> : vector<8x8xf32>
      %93 = tpu.matmul %91, %92, %cst_48 {dimension_numbers = #tpu.dot_dimension_numbers<[1], [0], [0], [1], [0, 0, 1, 1], [], []>} : vector<8x8xbf16>, vector<8x8xbf16>, vector<8x8xf32> -> vector<8x8xf32>
      %c0_49 = arith.constant 0 : index
      %c8 = arith.constant 8 : index
      %94 = vector.load %arg29[%c0_49, %c8] : memref<8x32xf32, #tpu.memory_space<vmem>>, vector<8x8xf32>
      tpu.vector_store %arg29[%c0_49, %c8], %93 {strides = array<i32>} : memref<8x32xf32, #tpu.memory_space<vmem>>, vector<8x8xf32>,
      %95 = vector.extract_strided_slice %44 {offsets = [0, 16], sizes = [8, 8], strides = [1, 1]} : vector<8x32xf32> to vector<8x8xf32>
      %96 = vector.extract_strided_slice %45 {offsets = [0, 16], sizes = [8, 8], strides = [1, 1]} : vector<8x32xf32> to vector<8x8xf32>
      %97 = arith.truncf %95 : vector<8x8xf32> to vector<8x8xbf16>
      %98 = arith.truncf %96 : vector<8x8xf32> to vector<8x8xbf16>
      %cst_50 = arith.constant dense<0.000000e+00> : vector<8x8xf32>
      %99 = tpu.matmul %97, %98, %cst_50 {dimension_numbers = #tpu.dot_dimension_numbers<[1], [1], [0], [0], [0, 0, 1, 0], [], []>} : vector<8x8xbf16>, vector<8x8xbf16>, vector<8x8xf32> -> vector<8x8xf32>
      %cst_51 = arith.constant 0.353553385 : f32
      %100 = vector.broadcast %cst_51 : f32 to vector<8x8xf32>
      %101 = arith.mulf %99, %100 : vector<8x8xf32>
      %cst_52 = arith.constant -1.000000e+10 : f32
      %102 = vector.broadcast %cst_52 : f32 to vector<8x8xf32>
      %103 = arith.select %32, %101, %102 : vector<8x8xi1>, vector<8x8xf32>
      %cst_53 = arith.constant dense<0xFF800000> : vector<8xf32>
      %104 = vector.multi_reduction <maximumf>, %103, %cst_53 [1] : vector<8x8xf32> to vector<8xf32>
      %105 = vector.shape_cast %104 : vector<8xf32> to vector<8x1xf32>
      %106 = vector.broadcast %105 : vector<8x1xf32> to vector<8x8xf32>
      %107 = arith.subf %103, %106 : vector<8x8xf32>
      %108 = math.exp %107 : vector<8x8xf32>
      %cst_54 = arith.constant dense<0.000000e+00> : vector<8xf32>
      %109 = vector.multi_reduction <add>, %108, %cst_54 [1] : vector<8x8xf32> to vector<8xf32>
      %110 = vector.shape_cast %109 : vector<8xf32> to vector<8x1xf32>
      %111 = tpu.reciprocal %110 {approx = true} : vector<8x1xf32> -> vector<8x1xf32>
      %112 = vector.broadcast %111 : vector<8x1xf32> to vector<8x8xf32>
      %113 = arith.mulf %108, %112 : vector<8x8xf32>
      %114 = vector.extract_strided_slice %46 {offsets = [0, 16], sizes = [8, 8], strides = [1, 1]} : vector<8x32xf32> to vector<8x8xf32>
      %115 = arith.truncf %113 : vector<8x8xf32> to vector<8x8xbf16>
      %116 = arith.truncf %114 : vector<8x8xf32> to vector<8x8xbf16>
      %cst_55 = arith.constant dense<0.000000e+00> : vector<8x8xf32>
      %117 = tpu.matmul %115, %116, %cst_55 {dimension_numbers = #tpu.dot_dimension_numbers<[1], [0], [0], [1], [0, 0, 1, 1], [], []>} : vector<8x8xbf16>, vector<8x8xbf16>, vector<8x8xf32> -> vector<8x8xf32>
      %c0_56 = arith.constant 0 : index
      %c16 = arith.constant 16 : index
      %118 = vector.load %arg29[%c0_56, %c16] : memref<8x32xf32, #tpu.memory_space<vmem>>, vector<8x8xf32>
      tpu.vector_store %arg29[%c0_56, %c16], %117 {strides = array<i32>} : memref<8x32xf32, #tpu.memory_space<vmem>>, vector<8x8xf32>,
      %119 = vector.extract_strided_slice %44 {offsets = [0, 24], sizes = [8, 8], strides = [1, 1]} : vector<8x32xf32> to vector<8x8xf32>
      %120 = vector.extract_strided_slice %45 {offsets = [0, 24], sizes = [8, 8], strides = [1, 1]} : vector<8x32xf32> to vector<8x8xf32>
      %121 = arith.truncf %119 : vector<8x8xf32> to vector<8x8xbf16>
      %122 = arith.truncf %120 : vector<8x8xf32> to vector<8x8xbf16>
      %cst_57 = arith.constant dense<0.000000e+00> : vector<8x8xf32>
      %123 = tpu.matmul %121, %122, %cst_57 {dimension_numbers = #tpu.dot_dimension_numbers<[1], [1], [0], [0], [0, 0, 1, 0], [], []>} : vector<8x8xbf16>, vector<8x8xbf16>, vector<8x8xf32> -> vector<8x8xf32>
      %cst_58 = arith.constant 0.353553385 : f32
      %124 = vector.broadcast %cst_58 : f32 to vector<8x8xf32>
      %125 = arith.mulf %123, %124 : vector<8x8xf32>
      %cst_59 = arith.constant -1.000000e+10 : f32
      %126 = vector.broadcast %cst_59 : f32 to vector<8x8xf32>
      %127 = arith.select %32, %125, %126 : vector<8x8xi1>, vector<8x8xf32>
      %cst_60 = arith.constant dense<0xFF800000> : vector<8xf32>
      %128 = vector.multi_reduction <maximumf>, %127, %cst_60 [1] : vector<8x8xf32> to vector<8xf32>
      %129 = vector.shape_cast %128 : vector<8xf32> to vector<8x1xf32>
      %130 = vector.broadcast %129 : vector<8x1xf32> to vector<8x8xf32>
      %131 = arith.subf %127, %130 : vector<8x8xf32>
      %132 = math.exp %131 : vector<8x8xf32>
      %cst_61 = arith.constant dense<0.000000e+00> : vector<8xf32>
      %133 = vector.multi_reduction <add>, %132, %cst_61 [1] : vector<8x8xf32> to vector<8xf32>
      %134 = vector.shape_cast %133 : vector<8xf32> to vector<8x1xf32>
      %135 = tpu.reciprocal %134 {approx = true} : vector<8x1xf32> -> vector<8x1xf32>
      %136 = vector.broadcast %135 : vector<8x1xf32> to vector<8x8xf32>
      %137 = arith.mulf %132, %136 : vector<8x8xf32>
      %138 = vector.extract_strided_slice %46 {offsets = [0, 24], sizes = [8, 8], strides = [1, 1]} : vector<8x32xf32> to vector<8x8xf32>
      %139 = arith.truncf %137 : vector<8x8xf32> to vector<8x8xbf16>
      %140 = arith.truncf %138 : vector<8x8xf32> to vector<8x8xbf16>
      %cst_62 = arith.constant dense<0.000000e+00> : vector<8x8xf32>
      %141 = tpu.matmul %139, %140, %cst_62 {dimension_numbers = #tpu.dot_dimension_numbers<[1], [0], [0], [1], [0, 0, 1, 1], [], []>} : vector<8x8xbf16>, vector<8x8xbf16>, vector<8x8xf32> -> vector<8x8xf32>
      %c0_63 = arith.constant 0 : index
      %c24 = arith.constant 24 : index
      %142 = vector.load %arg29[%c0_63, %c24] : memref<8x32xf32, #tpu.memory_space<vmem>>, vector<8x8xf32>
      tpu.vector_store %arg29[%c0_63, %c24], %141 {strides = array<i32>} : memref<8x32xf32, #tpu.memory_space<vmem>>, vector<8x8xf32>,
      %c0_64 = arith.constant 0 : index
      %c0_65 = arith.constant 0 : index
      %143 = vector.load %arg29[%c0_64, %c0_65] : memref<8x32xf32, #tpu.memory_space<vmem>>, vector<8x32xf32>
      %c0_66 = arith.constant 0 : index
      %c0_67 = arith.constant 0 : index
      %144 = vector.load %arg8[%c0_66, %c0_67] : memref<32x32xbf16, #tpu.memory_space<vmem>>, vector<32x32xbf16>
      %145 = arith.truncf %143 : vector<8x32xf32> to vector<8x32xbf16>
      %cst_68 = arith.constant dense<0.000000e+00> : vector<8x32xf32>
      %146 = tpu.matmul %145, %144, %cst_68 {dimension_numbers = #tpu.dot_dimension_numbers<[1], [0], [0], [1], [0, 0, 1, 1], [], []>} : vector<8x32xbf16>, vector<32x32xbf16>, vector<8x32xf32> -> vector<8x32xf32>
      %c0_69 = arith.constant 0 : index
      %c0_70 = arith.constant 0 : index
      %147 = vector.load %arg9[%c0_69, %c0_70] : memref<1x32xf32, #tpu.memory_space<vmem>>, vector<1x32xf32>
      %148 = vector.broadcast %147 : vector<1x32xf32> to vector<8x32xf32>
      %149 = arith.addf %146, %148 : vector<8x32xf32>
      %150 = arith.addf %23, %149 : vector<8x32xf32>
      %c0_71 = arith.constant 0 : index
      %c0_72 = arith.constant 0 : index
      %151 = vector.load %arg10[%c0_71, %c0_72] : memref<1x32xf32, #tpu.memory_space<vmem>>, vector<1x32xf32>
      %c0_73 = arith.constant 0 : index
      %c0_74 = arith.constant 0 : index
      %152 = vector.load %arg11[%c0_73, %c0_74] : memref<1x32xf32, #tpu.memory_space<vmem>>, vector<1x32xf32>
      %cst_75 = arith.constant dense<0.000000e+00> : vector<8xf32>
      %153 = vector.multi_reduction <add>, %150, %cst_75 [1] : vector<8x32xf32> to vector<8xf32>
      %154 = vector.shape_cast %153 : vector<8xf32> to vector<8x1xf32>
      %cst_76 = arith.constant 3.200000e+01 : f32
      %155 = vector.broadcast %cst_76 : f32 to vector<8x1xf32>
      %156 = arith.divf %154, %155 : vector<8x1xf32>
      %157 = vector.broadcast %156 : vector<8x1xf32> to vector<8x32xf32>
      %158 = arith.subf %150, %157 : vector<8x32xf32>
      %159 = arith.mulf %158, %158 : vector<8x32xf32>
      %cst_77 = arith.constant dense<0.000000e+00> : vector<8xf32>
      %160 = vector.multi_reduction <add>, %159, %cst_77 [1] : vector<8x32xf32> to vector<8xf32>
      %161 = vector.shape_cast %160 : vector<8xf32> to vector<8x1xf32>
      %cst_78 = arith.constant 3.200000e+01 : f32
      %162 = vector.broadcast %cst_78 : f32 to vector<8x1xf32>
      %163 = arith.divf %161, %162 : vector<8x1xf32>
      %164 = vector.broadcast %156 : vector<8x1xf32> to vector<8x32xf32>
      %165 = arith.subf %150, %164 : vector<8x32xf32>
      %cst_79 = arith.constant 9.99999974E-6 : f32
      %166 = vector.broadcast %cst_79 : f32 to vector<8x1xf32>
      %167 = arith.addf %163, %166 : vector<8x1xf32>
      %168 = math.rsqrt %167 : vector<8x1xf32>
      %169 = vector.broadcast %168 : vector<8x1xf32> to vector<8x32xf32>
      %170 = arith.mulf %165, %169 : vector<8x32xf32>
      %171 = vector.broadcast %151 : vector<1x32xf32> to vector<8x32xf32>
      %172 = arith.mulf %170, %171 : vector<8x32xf32>
      %173 = vector.broadcast %152 : vector<1x32xf32> to vector<8x32xf32>
      %174 = arith.addf %172, %173 : vector<8x32xf32>
      %c0_80 = arith.constant 0 : index
      %c0_81 = arith.constant 0 : index
      %175 = vector.load %arg12[%c0_80, %c0_81] : memref<32x32xbf16, #tpu.memory_space<vmem>>, vector<32x32xbf16>
      %176 = arith.truncf %174 : vector<8x32xf32> to vector<8x32xbf16>
      %cst_82 = arith.constant dense<0.000000e+00> : vector<8x32xf32>
      %177 = tpu.matmul %176, %175, %cst_82 {dimension_numbers = #tpu.dot_dimension_numbers<[1], [0], [0], [1], [0, 0, 1, 1], [], []>} : vector<8x32xbf16>, vector<32x32xbf16>, vector<8x32xf32> -> vector<8x32xf32>
      %c0_83 = arith.constant 0 : index
      %c0_84 = arith.constant 0 : index
      %178 = vector.load %arg13[%c0_83, %c0_84] : memref<1x32xf32, #tpu.memory_space<vmem>>, vector<1x32xf32>
      %179 = vector.broadcast %178 : vector<1x32xf32> to vector<8x32xf32>
      %180 = arith.addf %177, %179 : vector<8x32xf32>
      %c0_85 = arith.constant 0 : index
      %c0_86 = arith.constant 0 : index
      %c0_87 = arith.constant 0 : index
      %181 = vector.load %arg3[%c0_85, %c0_86, %c0_87] : memref<1x8x32xbf16, #tpu.memory_space<vmem>>, vector<1x8x32xbf16>
      %182 = vector.shape_cast %181 : vector<1x8x32xbf16> to vector<8x32xbf16>
      %c0_88 = arith.constant 0 : index
      %c0_89 = arith.constant 0 : index
      %183 = vector.load %arg14[%c0_88, %c0_89] : memref<32x64xbf16, #tpu.memory_space<vmem>>, vector<32x64xbf16>
      %cst_90 = arith.constant dense<0.000000e+00> : vector<8x64xf32>
      %184 = tpu.matmul %182, %183, %cst_90 {dimension_numbers = #tpu.dot_dimension_numbers<[1], [0], [0], [1], [0, 0, 1, 1], [], []>} : vector<8x32xbf16>, vector<32x64xbf16>, vector<8x64xf32> -> vector<8x64xf32>
      %c0_91 = arith.constant 0 : index
      %c0_92 = arith.constant 0 : index
      %185 = vector.load %arg15[%c0_91, %c0_92] : memref<1x64xf32, #tpu.memory_space<vmem>>, vector<1x64xf32>
      %186 = vector.broadcast %185 : vector<1x64xf32> to vector<8x64xf32>
      %187 = arith.addf %184, %186 : vector<8x64xf32>
      %188 = vector.extract_strided_slice %187 {offsets = [0, 0], sizes = [8, 32], strides = [1, 1]} : vector<8x64xf32> to vector<8x32xf32>
      %189 = vector.extract_strided_slice %187 {offsets = [0, 32], sizes = [8, 32], strides = [1, 1]} : vector<8x64xf32> to vector<8x32xf32>
      %190 = vector.extract_strided_slice %180 {offsets = [0, 0], sizes = [8, 8], strides = [1, 1]} : vector<8x32xf32> to vector<8x8xf32>
      %191 = vector.extract_strided_slice %188 {offsets = [0, 0], sizes = [8, 8], strides = [1, 1]} : vector<8x32xf32> to vector<8x8xf32>
      %192 = arith.truncf %190 : vector<8x8xf32> to vector<8x8xbf16>
      %193 = arith.truncf %191 : vector<8x8xf32> to vector<8x8xbf16>
      %cst_93 = arith.constant dense<0.000000e+00> : vector<8x8xf32>
      %194 = tpu.matmul %192, %193, %cst_93 {dimension_numbers = #tpu.dot_dimension_numbers<[1], [1], [0], [0], [0, 0, 1, 0], [], []>} : vector<8x8xbf16>, vector<8x8xbf16>, vector<8x8xf32> -> vector<8x8xf32>
      %cst_94 = arith.constant 0.353553385 : f32
      %195 = vector.broadcast %cst_94 : f32 to vector<8x8xf32>
      %196 = arith.mulf %194, %195 : vector<8x8xf32>
      %cst_95 = arith.constant -1.000000e+10 : f32
      %197 = vector.shape_cast %36 : vector<1x8xi1> to vector<1x8xi1>
      %198 = vector.broadcast %197 : vector<1x8xi1> to vector<8x8xi1>
      %199 = vector.broadcast %cst_95 : f32 to vector<8x8xf32>
      %200 = arith.select %198, %196, %199 : vector<8x8xi1>, vector<8x8xf32>
      %cst_96 = arith.constant dense<0xFF800000> : vector<8xf32>
      %201 = vector.multi_reduction <maximumf>, %200, %cst_96 [1] : vector<8x8xf32> to vector<8xf32>
      %202 = vector.shape_cast %201 : vector<8xf32> to vector<8x1xf32>
      %203 = vector.broadcast %202 : vector<8x1xf32> to vector<8x8xf32>
      %204 = arith.subf %200, %203 : vector<8x8xf32>
      %205 = math.exp %204 : vector<8x8xf32>
      %cst_97 = arith.constant dense<0.000000e+00> : vector<8xf32>
      %206 = vector.multi_reduction <add>, %205, %cst_97 [1] : vector<8x8xf32> to vector<8xf32>
      %207 = vector.shape_cast %206 : vector<8xf32> to vector<8x1xf32>
      %208 = tpu.reciprocal %207 {approx = true} : vector<8x1xf32> -> vector<8x1xf32>
      %209 = vector.broadcast %208 : vector<8x1xf32> to vector<8x8xf32>
      %210 = arith.mulf %205, %209 : vector<8x8xf32>
      %211 = vector.extract_strided_slice %189 {offsets = [0, 0], sizes = [8, 8], strides = [1, 1]} : vector<8x32xf32> to vector<8x8xf32>
      %212 = arith.truncf %210 : vector<8x8xf32> to vector<8x8xbf16>
      %213 = arith.truncf %211 : vector<8x8xf32> to vector<8x8xbf16>
      %cst_98 = arith.constant dense<0.000000e+00> : vector<8x8xf32>
      %214 = tpu.matmul %212, %213, %cst_98 {dimension_numbers = #tpu.dot_dimension_numbers<[1], [0], [0], [1], [0, 0, 1, 1], [], []>} : vector<8x8xbf16>, vector<8x8xbf16>, vector<8x8xf32> -> vector<8x8xf32>
      %c0_99 = arith.constant 0 : index
      %c0_100 = arith.constant 0 : index
      %215 = vector.load %arg29[%c0_99, %c0_100] : memref<8x32xf32, #tpu.memory_space<vmem>>, vector<8x8xf32>
      tpu.vector_store %arg29[%c0_99, %c0_100], %214 {strides = array<i32>} : memref<8x32xf32, #tpu.memory_space<vmem>>, vector<8x8xf32>,
      %216 = vector.extract_strided_slice %180 {offsets = [0, 8], sizes = [8, 8], strides = [1, 1]} : vector<8x32xf32> to vector<8x8xf32>
      %217 = vector.extract_strided_slice %188 {offsets = [0, 8], sizes = [8, 8], strides = [1, 1]} : vector<8x32xf32> to vector<8x8xf32>
      %218 = arith.truncf %216 : vector<8x8xf32> to vector<8x8xbf16>
      %219 = arith.truncf %217 : vector<8x8xf32> to vector<8x8xbf16>
      %cst_101 = arith.constant dense<0.000000e+00> : vector<8x8xf32>
      %220 = tpu.matmul %218, %219, %cst_101 {dimension_numbers = #tpu.dot_dimension_numbers<[1], [1], [0], [0], [0, 0, 1, 0], [], []>} : vector<8x8xbf16>, vector<8x8xbf16>, vector<8x8xf32> -> vector<8x8xf32>
      %cst_102 = arith.constant 0.353553385 : f32
      %221 = vector.broadcast %cst_102 : f32 to vector<8x8xf32>
      %222 = arith.mulf %220, %221 : vector<8x8xf32>
      %cst_103 = arith.constant -1.000000e+10 : f32
      %223 = vector.shape_cast %36 : vector<1x8xi1> to vector<1x8xi1>
      %224 = vector.broadcast %223 : vector<1x8xi1> to vector<8x8xi1>
      %225 = vector.broadcast %cst_103 : f32 to vector<8x8xf32>
      %226 = arith.select %224, %222, %225 : vector<8x8xi1>, vector<8x8xf32>
      %cst_104 = arith.constant dense<0xFF800000> : vector<8xf32>
      %227 = vector.multi_reduction <maximumf>, %226, %cst_104 [1] : vector<8x8xf32> to vector<8xf32>
      %228 = vector.shape_cast %227 : vector<8xf32> to vector<8x1xf32>
      %229 = vector.broadcast %228 : vector<8x1xf32> to vector<8x8xf32>
      %230 = arith.subf %226, %229 : vector<8x8xf32>
      %231 = math.exp %230 : vector<8x8xf32>
      %cst_105 = arith.constant dense<0.000000e+00> : vector<8xf32>
      %232 = vector.multi_reduction <add>, %231, %cst_105 [1] : vector<8x8xf32> to vector<8xf32>
      %233 = vector.shape_cast %232 : vector<8xf32> to vector<8x1xf32>
      %234 = tpu.reciprocal %233 {approx = true} : vector<8x1xf32> -> vector<8x1xf32>
      %235 = vector.broadcast %234 : vector<8x1xf32> to vector<8x8xf32>
      %236 = arith.mulf %231, %235 : vector<8x8xf32>
      %237 = vector.extract_strided_slice %189 {offsets = [0, 8], sizes = [8, 8], strides = [1, 1]} : vector<8x32xf32> to vector<8x8xf32>
      %238 = arith.truncf %236 : vector<8x8xf32> to vector<8x8xbf16>
      %239 = arith.truncf %237 : vector<8x8xf32> to vector<8x8xbf16>
      %cst_106 = arith.constant dense<0.000000e+00> : vector<8x8xf32>
      %240 = tpu.matmul %238, %239, %cst_106 {dimension_numbers = #tpu.dot_dimension_numbers<[1], [0], [0], [1], [0, 0, 1, 1], [], []>} : vector<8x8xbf16>, vector<8x8xbf16>, vector<8x8xf32> -> vector<8x8xf32>
      %c0_107 = arith.constant 0 : index
      %c8_108 = arith.constant 8 : index
      %241 = vector.load %arg29[%c0_107, %c8_108] : memref<8x32xf32, #tpu.memory_space<vmem>>, vector<8x8xf32>
      tpu.vector_store %arg29[%c0_107, %c8_108], %240 {strides = array<i32>} : memref<8x32xf32, #tpu.memory_space<vmem>>, vector<8x8xf32>,
      %242 = vector.extract_strided_slice %180 {offsets = [0, 16], sizes = [8, 8], strides = [1, 1]} : vector<8x32xf32> to vector<8x8xf32>
      %243 = vector.extract_strided_slice %188 {offsets = [0, 16], sizes = [8, 8], strides = [1, 1]} : vector<8x32xf32> to vector<8x8xf32>
      %244 = arith.truncf %242 : vector<8x8xf32> to vector<8x8xbf16>
      %245 = arith.truncf %243 : vector<8x8xf32> to vector<8x8xbf16>
      %cst_109 = arith.constant dense<0.000000e+00> : vector<8x8xf32>
      %246 = tpu.matmul %244, %245, %cst_109 {dimension_numbers = #tpu.dot_dimension_numbers<[1], [1], [0], [0], [0, 0, 1, 0], [], []>} : vector<8x8xbf16>, vector<8x8xbf16>, vector<8x8xf32> -> vector<8x8xf32>
      %cst_110 = arith.constant 0.353553385 : f32
      %247 = vector.broadcast %cst_110 : f32 to vector<8x8xf32>
      %248 = arith.mulf %246, %247 : vector<8x8xf32>
      %cst_111 = arith.constant -1.000000e+10 : f32
      %249 = vector.shape_cast %36 : vector<1x8xi1> to vector<1x8xi1>
      %250 = vector.broadcast %249 : vector<1x8xi1> to vector<8x8xi1>
      %251 = vector.broadcast %cst_111 : f32 to vector<8x8xf32>
      %252 = arith.select %250, %248, %251 : vector<8x8xi1>, vector<8x8xf32>
      %cst_112 = arith.constant dense<0xFF800000> : vector<8xf32>
      %253 = vector.multi_reduction <maximumf>, %252, %cst_112 [1] : vector<8x8xf32> to vector<8xf32>
      %254 = vector.shape_cast %253 : vector<8xf32> to vector<8x1xf32>
      %255 = vector.broadcast %254 : vector<8x1xf32> to vector<8x8xf32>
      %256 = arith.subf %252, %255 : vector<8x8xf32>
      %257 = math.exp %256 : vector<8x8xf32>
      %cst_113 = arith.constant dense<0.000000e+00> : vector<8xf32>
      %258 = vector.multi_reduction <add>, %257, %cst_113 [1] : vector<8x8xf32> to vector<8xf32>
      %259 = vector.shape_cast %258 : vector<8xf32> to vector<8x1xf32>
      %260 = tpu.reciprocal %259 {approx = true} : vector<8x1xf32> -> vector<8x1xf32>
      %261 = vector.broadcast %260 : vector<8x1xf32> to vector<8x8xf32>
      %262 = arith.mulf %257, %261 : vector<8x8xf32>
      %263 = vector.extract_strided_slice %189 {offsets = [0, 16], sizes = [8, 8], strides = [1, 1]} : vector<8x32xf32> to vector<8x8xf32>
      %264 = arith.truncf %262 : vector<8x8xf32> to vector<8x8xbf16>
      %265 = arith.truncf %263 : vector<8x8xf32> to vector<8x8xbf16>
      %cst_114 = arith.constant dense<0.000000e+00> : vector<8x8xf32>
      %266 = tpu.matmul %264, %265, %cst_114 {dimension_numbers = #tpu.dot_dimension_numbers<[1], [0], [0], [1], [0, 0, 1, 1], [], []>} : vector<8x8xbf16>, vector<8x8xbf16>, vector<8x8xf32> -> vector<8x8xf32>
      %c0_115 = arith.constant 0 : index
      %c16_116 = arith.constant 16 : index
      %267 = vector.load %arg29[%c0_115, %c16_116] : memref<8x32xf32, #tpu.memory_space<vmem>>, vector<8x8xf32>
      tpu.vector_store %arg29[%c0_115, %c16_116], %266 {strides = array<i32>} : memref<8x32xf32, #tpu.memory_space<vmem>>, vector<8x8xf32>,
      %268 = vector.extract_strided_slice %180 {offsets = [0, 24], sizes = [8, 8], strides = [1, 1]} : vector<8x32xf32> to vector<8x8xf32>
      %269 = vector.extract_strided_slice %188 {offsets = [0, 24], sizes = [8, 8], strides = [1, 1]} : vector<8x32xf32> to vector<8x8xf32>
      %270 = arith.truncf %268 : vector<8x8xf32> to vector<8x8xbf16>
      %271 = arith.truncf %269 : vector<8x8xf32> to vector<8x8xbf16>
      %cst_117 = arith.constant dense<0.000000e+00> : vector<8x8xf32>
      %272 = tpu.matmul %270, %271, %cst_117 {dimension_numbers = #tpu.dot_dimension_numbers<[1], [1], [0], [0], [0, 0, 1, 0], [], []>} : vector<8x8xbf16>, vector<8x8xbf16>, vector<8x8xf32> -> vector<8x8xf32>
      %cst_118 = arith.constant 0.353553385 : f32
      %273 = vector.broadcast %cst_118 : f32 to vector<8x8xf32>
      %274 = arith.mulf %272, %273 : vector<8x8xf32>
      %cst_119 = arith.constant -1.000000e+10 : f32
      %275 = vector.shape_cast %36 : vector<1x8xi1> to vector<1x8xi1>
      %276 = vector.broadcast %275 : vector<1x8xi1> to vector<8x8xi1>
      %277 = vector.broadcast %cst_119 : f32 to vector<8x8xf32>
      %278 = arith.select %276, %274, %277 : vector<8x8xi1>, vector<8x8xf32>
      %cst_120 = arith.constant dense<0xFF800000> : vector<8xf32>
      %279 = vector.multi_reduction <maximumf>, %278, %cst_120 [1] : vector<8x8xf32> to vector<8xf32>
      %280 = vector.shape_cast %279 : vector<8xf32> to vector<8x1xf32>
      %281 = vector.broadcast %280 : vector<8x1xf32> to vector<8x8xf32>
      %282 = arith.subf %278, %281 : vector<8x8xf32>
      %283 = math.exp %282 : vector<8x8xf32>
      %cst_121 = arith.constant dense<0.000000e+00> : vector<8xf32>
      %284 = vector.multi_reduction <add>, %283, %cst_121 [1] : vector<8x8xf32> to vector<8xf32>
      %285 = vector.shape_cast %284 : vector<8xf32> to vector<8x1xf32>
      %286 = tpu.reciprocal %285 {approx = true} : vector<8x1xf32> -> vector<8x1xf32>
      %287 = vector.broadcast %286 : vector<8x1xf32> to vector<8x8xf32>
      %288 = arith.mulf %283, %287 : vector<8x8xf32>
      %289 = vector.extract_strided_slice %189 {offsets = [0, 24], sizes = [8, 8], strides = [1, 1]} : vector<8x32xf32> to vector<8x8xf32>
      %290 = arith.truncf %288 : vector<8x8xf32> to vector<8x8xbf16>
      %291 = arith.truncf %289 : vector<8x8xf32> to vector<8x8xbf16>
      %cst_122 = arith.constant dense<0.000000e+00> : vector<8x8xf32>
      %292 = tpu.matmul %290, %291, %cst_122 {dimension_numbers = #tpu.dot_dimension_numbers<[1], [0], [0], [1], [0, 0, 1, 1], [], []>} : vector<8x8xbf16>, vector<8x8xbf16>, vector<8x8xf32> -> vector<8x8xf32>
      %c0_123 = arith.constant 0 : index
      %c24_124 = arith.constant 24 : index
      %293 = vector.load %arg29[%c0_123, %c24_124] : memref<8x32xf32, #tpu.memory_space<vmem>>, vector<8x8xf32>
      tpu.vector_store %arg29[%c0_123, %c24_124], %292 {strides = array<i32>} : memref<8x32xf32, #tpu.memory_space<vmem>>, vector<8x8xf32>,
      %c0_125 = arith.constant 0 : index
      %c0_126 = arith.constant 0 : index
      %294 = vector.load %arg29[%c0_125, %c0_126] : memref<8x32xf32, #tpu.memory_space<vmem>>, vector<8x32xf32>
      %c0_127 = arith.constant 0 : index
      %c0_128 = arith.constant 0 : index
      %295 = vector.load %arg16[%c0_127, %c0_128] : memref<32x32xbf16, #tpu.memory_space<vmem>>, vector<32x32xbf16>
      %296 = arith.truncf %294 : vector<8x32xf32> to vector<8x32xbf16>
      %cst_129 = arith.constant dense<0.000000e+00> : vector<8x32xf32>
      %297 = tpu.matmul %296, %295, %cst_129 {dimension_numbers = #tpu.dot_dimension_numbers<[1], [0], [0], [1], [0, 0, 1, 1], [], []>} : vector<8x32xbf16>, vector<32x32xbf16>, vector<8x32xf32> -> vector<8x32xf32>
      %c0_130 = arith.constant 0 : index
      %c0_131 = arith.constant 0 : index
      %298 = vector.load %arg17[%c0_130, %c0_131] : memref<1x32xf32, #tpu.memory_space<vmem>>, vector<1x32xf32>
      %299 = vector.broadcast %298 : vector<1x32xf32> to vector<8x32xf32>
      %300 = arith.addf %297, %299 : vector<8x32xf32>
      %301 = arith.addf %174, %300 : vector<8x32xf32>
      %c0_132 = arith.constant 0 : index
      %c0_133 = arith.constant 0 : index
      %302 = vector.load %arg18[%c0_132, %c0_133] : memref<1x32xf32, #tpu.memory_space<vmem>>, vector<1x32xf32>
      %c0_134 = arith.constant 0 : index
      %c0_135 = arith.constant 0 : index
      %303 = vector.load %arg19[%c0_134, %c0_135] : memref<1x32xf32, #tpu.memory_space<vmem>>, vector<1x32xf32>
      %cst_136 = arith.constant dense<0.000000e+00> : vector<8xf32>
      %304 = vector.multi_reduction <add>, %301, %cst_136 [1] : vector<8x32xf32> to vector<8xf32>
      %305 = vector.shape_cast %304 : vector<8xf32> to vector<8x1xf32>
      %cst_137 = arith.constant 3.200000e+01 : f32
      %306 = vector.broadcast %cst_137 : f32 to vector<8x1xf32>
      %307 = arith.divf %305, %306 : vector<8x1xf32>
      %308 = vector.broadcast %307 : vector<8x1xf32> to vector<8x32xf32>
      %309 = arith.subf %301, %308 : vector<8x32xf32>
      %310 = arith.mulf %309, %309 : vector<8x32xf32>
      %cst_138 = arith.constant dense<0.000000e+00> : vector<8xf32>
      %311 = vector.multi_reduction <add>, %310, %cst_138 [1] : vector<8x32xf32> to vector<8xf32>
      %312 = vector.shape_cast %311 : vector<8xf32> to vector<8x1xf32>
      %cst_139 = arith.constant 3.200000e+01 : f32
      %313 = vector.broadcast %cst_139 : f32 to vector<8x1xf32>
      %314 = arith.divf %312, %313 : vector<8x1xf32>
      %315 = vector.broadcast %307 : vector<8x1xf32> to vector<8x32xf32>
      %316 = arith.subf %301, %315 : vector<8x32xf32>
      %cst_140 = arith.constant 9.99999974E-6 : f32
      %317 = vector.broadcast %cst_140 : f32 to vector<8x1xf32>
      %318 = arith.addf %314, %317 : vector<8x1xf32>
      %319 = math.rsqrt %318 : vector<8x1xf32>
      %320 = vector.broadcast %319 : vector<8x1xf32> to vector<8x32xf32>
      %321 = arith.mulf %316, %320 : vector<8x32xf32>
      %322 = vector.broadcast %302 : vector<1x32xf32> to vector<8x32xf32>
      %323 = arith.mulf %321, %322 : vector<8x32xf32>
      %324 = vector.broadcast %303 : vector<1x32xf32> to vector<8x32xf32>
      %325 = arith.addf %323, %324 : vector<8x32xf32>
      %c0_141 = arith.constant 0 : index
      %c0_142 = arith.constant 0 : index
      %326 = vector.load %arg28[%c0_141, %c0_142] : memref<8x32xf32, #tpu.memory_space<vmem>>, vector<8x32xf32>
      tpu.vector_store %arg28[%c0_141, %c0_142], %325 {strides = array<i32>} : memref<8x32xf32, #tpu.memory_space<vmem>>, vector<8x32xf32>,
      %cst_143 = arith.constant 0.000000e+00 : f32
      %327 = vector.broadcast %cst_143 : f32 to vector<8x32xf32>
      %c0_144 = arith.constant 0 : index
      %c0_145 = arith.constant 0 : index
      %328 = vector.load %arg29[%c0_144, %c0_145] : memref<8x32xf32, #tpu.memory_space<vmem>>, vector<8x32xf32>
      tpu.vector_store %arg29[%c0_144, %c0_145], %327 {strides = array<i32>} : memref<8x32xf32, #tpu.memory_space<vmem>>, vector<8x32xf32>,
      %329 = arith.truncf %210 : vector<8x8xf32> to vector<8x8xbf16>
      %c0_146 = arith.constant 0 : index
      %c0_147 = arith.constant 0 : index
      %c0_148 = arith.constant 0 : index
      %c0_149 = arith.constant 0 : index
      %330 = vector.load %arg27[%c0_146, %c0_147, %c0_148, %c0_149] : memref<1x4x8x8xbf16, #tpu.memory_space<vmem>>, vector<1x1x8x8xbf16>
      %331 = vector.shape_cast %330 : vector<1x1x8x8xbf16> to vector<8x8xbf16>
      %332 = vector.shape_cast %329 : vector<8x8xbf16> to vector<1x1x8x8xbf16>
      tpu.vector_store %arg27[%c0_146, %c0_147, %c0_148, %c0_149], %332 {strides = array<i32>} : memref<1x4x8x8xbf16, #tpu.memory_space<vmem>>, vector<1x1x8x8xbf16>,
      %333 = arith.truncf %236 : vector<8x8xf32> to vector<8x8xbf16>
      %c0_150 = arith.constant 0 : index
      %c1 = arith.constant 1 : index
      %c0_151 = arith.constant 0 : index
      %c0_152 = arith.constant 0 : index
      %334 = vector.load %arg27[%c0_150, %c1, %c0_151, %c0_152] : memref<1x4x8x8xbf16, #tpu.memory_space<vmem>>, vector<1x1x8x8xbf16>
      %335 = vector.shape_cast %334 : vector<1x1x8x8xbf16> to vector<8x8xbf16>
      %336 = vector.shape_cast %333 : vector<8x8xbf16> to vector<1x1x8x8xbf16>
      tpu.vector_store %arg27[%c0_150, %c1, %c0_151, %c0_152], %336 {strides = array<i32>} : memref<1x4x8x8xbf16, #tpu.memory_space<vmem>>, vector<1x1x8x8xbf16>,
      %337 = arith.truncf %262 : vector<8x8xf32> to vector<8x8xbf16>
      %c0_153 = arith.constant 0 : index
      %c2 = arith.constant 2 : index
      %c0_154 = arith.constant 0 : index
      %c0_155 = arith.constant 0 : index
      %338 = vector.load %arg27[%c0_153, %c2, %c0_154, %c0_155] : memref<1x4x8x8xbf16, #tpu.memory_space<vmem>>, vector<1x1x8x8xbf16>
      %339 = vector.shape_cast %338 : vector<1x1x8x8xbf16> to vector<8x8xbf16>
      %340 = vector.shape_cast %337 : vector<8x8xbf16> to vector<1x1x8x8xbf16>
      tpu.vector_store %arg27[%c0_153, %c2, %c0_154, %c0_155], %340 {strides = array<i32>} : memref<1x4x8x8xbf16, #tpu.memory_space<vmem>>, vector<1x1x8x8xbf16>,
      %341 = arith.truncf %288 : vector<8x8xf32> to vector<8x8xbf16>
      %c0_156 = arith.constant 0 : index
      %c3 = arith.constant 3 : index
      %c0_157 = arith.constant 0 : index
      %c0_158 = arith.constant 0 : index
      %342 = vector.load %arg27[%c0_156, %c3, %c0_157, %c0_158] : memref<1x4x8x8xbf16, #tpu.memory_space<vmem>>, vector<1x1x8x8xbf16>
      %343 = vector.shape_cast %342 : vector<1x1x8x8xbf16> to vector<8x8xbf16>
      %344 = vector.shape_cast %341 : vector<8x8xbf16> to vector<1x1x8x8xbf16>
      tpu.vector_store %arg27[%c0_156, %c3, %c0_157, %c0_158], %344 {strides = array<i32>} : memref<1x4x8x8xbf16, #tpu.memory_space<vmem>>, vector<1x1x8x8xbf16>,
    } else {
    }
    %c0 = arith.constant 0 : index
    %c0_1 = arith.constant 0 : index
    %3 = vector.load %arg28[%c0, %c0_1] : memref<8x32xf32, #tpu.memory_space<vmem>>, vector<8x32xf32>
    %c0_2 = arith.constant 0 : index
    %c0_3 = arith.constant 0 : index
    %4 = vector.load %arg20[%c0_2, %c0_3] : memref<32x64xbf16, #tpu.memory_space<vmem>>, vector<32x64xbf16>
    %5 = arith.truncf %3 : vector<8x32xf32> to vector<8x32xbf16>
    %cst = arith.constant dense<0.000000e+00> : vector<8x64xf32>
    %6 = tpu.matmul %5, %4, %cst {dimension_numbers = #tpu.dot_dimension_numbers<[1], [0], [0], [1], [0, 0, 1, 1], [], []>} : vector<8x32xbf16>, vector<32x64xbf16>, vector<8x64xf32> -> vector<8x64xf32>
    %c0_4 = arith.constant 0 : index
    %c0_5 = arith.constant 0 : index
    %7 = vector.load %arg21[%c0_4, %c0_5] : memref<1x64xf32, #tpu.memory_space<vmem>>, vector<1x64xf32>
    %8 = vector.broadcast %7 : vector<1x64xf32> to vector<8x64xf32>
    %9 = arith.addf %6, %8 : vector<8x64xf32>
    %cst_6 = arith.constant 0.000000e+00 : f32
    %10 = vector.broadcast %cst_6 : f32 to vector<8x64xf32>
    %11 = arith.maximumf %9, %10 : vector<8x64xf32>
    %c0_7 = arith.constant 0 : index
    %c0_8 = arith.constant 0 : index
    %12 = vector.load %arg29[%c0_7, %c0_8] : memref<8x32xf32, #tpu.memory_space<vmem>>, vector<8x32xf32>
    %c0_9 = arith.constant 0 : index
    %c0_10 = arith.constant 0 : index
    %13 = vector.load %arg22[%c0_9, %c0_10] : memref<64x32xbf16, #tpu.memory_space<vmem>>, vector<64x32xbf16>
    %14 = arith.truncf %11 : vector<8x64xf32> to vector<8x64xbf16>
    %cst_11 = arith.constant dense<0.000000e+00> : vector<8x32xf32>
    %15 = tpu.matmul %14, %13, %cst_11 {dimension_numbers = #tpu.dot_dimension_numbers<[1], [0], [0], [1], [0, 0, 1, 1], [], []>} : vector<8x64xbf16>, vector<64x32xbf16>, vector<8x32xf32> -> vector<8x32xf32>
    %16 = arith.addf %12, %15 : vector<8x32xf32>
    %c0_12 = arith.constant 0 : index
    %c0_13 = arith.constant 0 : index
    %17 = vector.load %arg29[%c0_12, %c0_13] : memref<8x32xf32, #tpu.memory_space<vmem>>, vector<8x32xf32>
    tpu.vector_store %arg29[%c0_12, %c0_13], %16 {strides = array<i32>} : memref<8x32xf32, #tpu.memory_space<vmem>>, vector<8x32xf32>,
    %c0_i32_14 = arith.constant 0 : i32
    %18 = arith.cmpi eq, %arg1, %c0_i32_14 : i32
    %19 = arith.extui %18 : i1 to i32
    %c0_i32_15 = arith.constant 0 : i32
    %20 = arith.cmpi ne, %19, %c0_i32_15 : i32
    scf.if %20 {
      %c0_16 = arith.constant 0 : index
      %c0_17 = arith.constant 0 : index
      %21 = vector.load %arg28[%c0_16, %c0_17] : memref<8x32xf32, #tpu.memory_space<vmem>>, vector<8x32xf32>
      %c0_18 = arith.constant 0 : index
      %c0_19 = arith.constant 0 : index
      %22 = vector.load %arg29[%c0_18, %c0_19] : memref<8x32xf32, #tpu.memory_space<vmem>>, vector<8x32xf32>
      %23 = arith.addf %21, %22 : vector<8x32xf32>
      %c0_20 = arith.constant 0 : index
      %c0_21 = arith.constant 0 : index
      %24 = vector.load %arg23[%c0_20, %c0_21] : memref<1x32xf32, #tpu.memory_space<vmem>>, vector<1x32xf32>
      %25 = vector.broadcast %24 : vector<1x32xf32> to vector<8x32xf32>
      %26 = arith.addf %23, %25 : vector<8x32xf32>
      %c0_22 = arith.constant 0 : index
      %c0_23 = arith.constant 0 : index
      %27 = vector.load %arg24[%c0_22, %c0_23] : memref<1x32xf32, #tpu.memory_space<vmem>>, vector<1x32xf32>
      %c0_24 = arith.constant 0 : index
      %c0_25 = arith.constant 0 : index
      %28 = vector.load %arg25[%c0_24, %c0_25] : memref<1x32xf32, #tpu.memory_space<vmem>>, vector<1x32xf32>
      %cst_26 = arith.constant dense<0.000000e+00> : vector<8xf32>
      %29 = vector.multi_reduction <add>, %26, %cst_26 [1] : vector<8x32xf32> to vector<8xf32>
      %30 = vector.shape_cast %29 : vector<8xf32> to vector<8x1xf32>
      %cst_27 = arith.constant 3.200000e+01 : f32
      %31 = vector.broadcast %cst_27 : f32 to vector<8x1xf32>
      %32 = arith.divf %30, %31 : vector<8x1xf32>
      %33 = vector.broadcast %32 : vector<8x1xf32> to vector<8x32xf32>
      %34 = arith.subf %26, %33 : vector<8x32xf32>
      %35 = arith.mulf %34, %34 : vector<8x32xf32>
      %cst_28 = arith.constant dense<0.000000e+00> : vector<8xf32>
      %36 = vector.multi_reduction <add>, %35, %cst_28 [1] : vector<8x32xf32> to vector<8xf32>
      %37 = vector.shape_cast %36 : vector<8xf32> to vector<8x1xf32>
      %cst_29 = arith.constant 3.200000e+01 : f32
      %38 = vector.broadcast %cst_29 : f32 to vector<8x1xf32>
      %39 = arith.divf %37, %38 : vector<8x1xf32>
      %40 = vector.broadcast %32 : vector<8x1xf32> to vector<8x32xf32>
      %41 = arith.subf %26, %40 : vector<8x32xf32>
      %cst_30 = arith.constant 9.99999974E-6 : f32
      %42 = vector.broadcast %cst_30 : f32 to vector<8x1xf32>
      %43 = arith.addf %39, %42 : vector<8x1xf32>
      %44 = math.rsqrt %43 : vector<8x1xf32>
      %45 = vector.broadcast %44 : vector<8x1xf32> to vector<8x32xf32>
      %46 = arith.mulf %41, %45 : vector<8x32xf32>
      %47 = vector.broadcast %27 : vector<1x32xf32> to vector<8x32xf32>
      %48 = arith.mulf %46, %47 : vector<8x32xf32>
      %49 = vector.broadcast %28 : vector<1x32xf32> to vector<8x32xf32>
      %50 = arith.addf %48, %49 : vector<8x32xf32>
      %51 = arith.truncf %50 : vector<8x32xf32> to vector<8x32xbf16>
      %c0_31 = arith.constant 0 : index
      %c0_32 = arith.constant 0 : index
      %c0_33 = arith.constant 0 : index
      %52 = vector.load %arg26[%c0_31, %c0_32, %c0_33] : memref<1x8x32xbf16, #tpu.memory_space<vmem>>, vector<1x8x32xbf16>
      %53 = vector.shape_cast %52 : vector<1x8x32xbf16> to vector<8x32xbf16>
      %54 = vector.shape_cast %51 : vector<8x32xbf16> to vector<1x8x32xbf16>
      tpu.vector_store %arg26[%c0_31, %c0_32, %c0_33], %54 {strides = array<i32>} : memref<1x8x32xbf16, #tpu.memory_space<vmem>>, vector<1x8x32xbf16>,
    } else {
    }
    return
  }
  func.func @transform_0(%arg0: i32, %arg1: i32) -> (i32, i32, i32) {
    %c0_i32 = arith.constant 0 : i32
    %c0_i32_0 = arith.constant 0 : i32
    %c0_i32_1 = arith.constant 0 : i32
    return %arg0, %c0_i32, %c0_i32_0 : i32, i32, i32
  }
  func.func @transform_1(%arg0: i32, %arg1: i32) -> (i32, i32, i32) {
    %c0_i32 = arith.constant 0 : i32
    %c0_i32_0 = arith.constant 0 : i32
    %c0_i32_1 = arith.constant 0 : i32
    return %arg0, %c0_i32, %c0_i32_0 : i32, i32, i32
  }
  func.func @transform_2(%arg0: i32, %arg1: i32) -> (i32, i32, i32) {
    %c0_i32 = arith.constant 0 : i32
    %c0_i32_0 = arith.constant 0 : i32
    %c0_i32_1 = arith.constant 0 : i32
    return %arg0, %c0_i32, %c0_i32_0 : i32, i32, i32
  }
  func.func @transform_3(%arg0: i32, %arg1: i32) -> (i32, i32, i32) {
    %c0_i32 = arith.constant 0 : i32
    %c0_i32_0 = arith.constant 0 : i32
    %c0_i32_1 = arith.constant 0 : i32
    return %arg0, %c0_i32, %c0_i32_0 : i32, i32, i32
  }
  func.func @transform_4(%arg0: i32, %arg1: i32) -> (i32, i32) {
    %c0_i32 = arith.constant 0 : i32
    %c0_i32_0 = arith.constant 0 : i32
    %c0_i32_1 = arith.constant 0 : i32
    return %c0_i32, %c0_i32_0 : i32, i32
  }
  func.func @transform_5(%arg0: i32, %arg1: i32) -> (i32, i32) {
    %c0_i32 = arith.constant 0 : i32
    %c0_i32_0 = arith.constant 0 : i32
    %c0_i32_1 = arith.constant 0 : i32
    return %c0_i32, %c0_i32_0 : i32, i32
  }
  func.func @transform_6(%arg0: i32, %arg1: i32) -> (i32, i32) {
    %c0_i32 = arith.constant 0 : i32
    %c0_i32_0 = arith.constant 0 : i32
    %c0_i32_1 = arith.constant 0 : i32
    return %c0_i32, %c0_i32_0 : i32, i32
  }
  func.func @transform_7(%arg0: i32, %arg1: i32) -> (i32, i32) {
    %c0_i32 = arith.constant 0 : i32
    %c0_i32_0 = arith.constant 0 : i32
    %c0_i32_1 = arith.constant 0 : i32
    return %c0_i32, %c0_i32_0 : i32, i32
  }
  func.func @transform_8(%arg0: i32, %arg1: i32) -> (i32, i32) {
    %c0_i32 = arith.constant 0 : i32
    %c0_i32_0 = arith.constant 0 : i32
    %c0_i32_1 = arith.constant 0 : i32
    return %c0_i32, %c0_i32_0 : i32, i32
  }
  func.func @transform_9(%arg0: i32, %arg1: i32) -> (i32, i32) {
    %c0_i32 = arith.constant 0 : i32
    %c0_i32_0 = arith.constant 0 : i32
    %c0_i32_1 = arith.constant 0 : i32
    return %c0_i32, %c0_i32_0 : i32, i32
  }
  func.func @transform_10(%arg0: i32, %arg1: i32) -> (i32, i32) {
    %c0_i32 = arith.constant 0 : i32
    %c0_i32_0 = arith.constant 0 : i32
    %c0_i32_1 = arith.constant 0 : i32
    return %c0_i32, %c0_i32_0 : i32, i32
  }
  func.func @transform_11(%arg0: i32, %arg1: i32) -> (i32, i32) {
    %c0_i32 = arith.constant 0 : i32
    %c0_i32_0 = arith.constant 0 : i32
    %c0_i32_1 = arith.constant 0 : i32
    return %c0_i32, %c0_i32_0 : i32, i32
  }
  func.func @transform_12(%arg0: i32, %arg1: i32) -> (i32, i32) {
    %c0_i32 = arith.constant 0 : i32
    %c0_i32_0 = arith.constant 0 : i32
    %c0_i32_1 = arith.constant 0 : i32
    return %c0_i32, %c0_i32_0 : i32, i32
  }
  func.func @transform_13(%arg0: i32, %arg1: i32) -> (i32, i32) {
    %c0_i32 = arith.constant 0 : i32
    %c0_i32_0 = arith.constant 0 : i32
    %c0_i32_1 = arith.constant 0 : i32
    return %c0_i32, %c0_i32_0 : i32, i32
  }
  func.func @transform_14(%arg0: i32, %arg1: i32) -> (i32, i32) {
    %c0_i32 = arith.constant 0 : i32
    %c0_i32_0 = arith.constant 0 : i32
    %c0_i32_1 = arith.constant 0 : i32
    return %c0_i32, %c0_i32_0 : i32, i32
  }
  func.func @transform_15(%arg0: i32, %arg1: i32) -> (i32, i32) {
    %c0_i32 = arith.constant 0 : i32
    %c0_i32_0 = arith.constant 0 : i32
    %c0_i32_1 = arith.constant 0 : i32
    return %c0_i32, %c0_i32_0 : i32, i32
  }
  func.func @transform_16(%arg0: i32, %arg1: i32) -> (i32, i32) {
    %c0_i32 = arith.constant 0 : i32
    %c0_i32_0 = arith.constant 0 : i32
    %c0_i32_1 = arith.constant 0 : i32
    return %c0_i32, %c0_i32_0 : i32, i32
  }
  func.func @transform_17(%arg0: i32, %arg1: i32) -> (i32, i32) {
    %c0_i32 = arith.constant 0 : i32
    %c0_i32_0 = arith.constant 0 : i32
    %c0_i32_1 = arith.constant 0 : i32
    return %c0_i32, %c0_i32_0 : i32, i32
  }
  func.func @transform_18(%arg0: i32, %arg1: i32) -> (i32, i32) {
    %c0_i32 = arith.constant 0 : i32
    %c0_i32_0 = arith.constant 0 : i32
    return %c0_i32, %arg1 : i32, i32
  }
  func.func @transform_19(%arg0: i32, %arg1: i32) -> (i32, i32) {
    %c0_i32 = arith.constant 0 : i32
    %c0_i32_0 = arith.constant 0 : i32
    return %c0_i32, %arg1 : i32, i32
  }
  func.func @transform_20(%arg0: i32, %arg1: i32) -> (i32, i32) {
    %c0_i32 = arith.constant 0 : i32
    %c0_i32_0 = arith.constant 0 : i32
    return %arg1, %c0_i32 : i32, i32
  }
  func.func @transform_21(%arg0: i32, %arg1: i32) -> (i32, i32) {
    %c0_i32 = arith.constant 0 : i32
    %c0_i32_0 = arith.constant 0 : i32
    %c0_i32_1 = arith.constant 0 : i32
    return %c0_i32, %c0_i32_0 : i32, i32
  }
  func.func @transform_22(%arg0: i32, %arg1: i32) -> (i32, i32) {
    %c0_i32 = arith.constant 0 : i32
    %c0_i32_0 = arith.constant 0 : i32
    %c0_i32_1 = arith.constant 0 : i32
    return %c0_i32, %c0_i32_0 : i32, i32
  }
  func.func @transform_23(%arg0: i32, %arg1: i32) -> (i32, i32) {
    %c0_i32 = arith.constant 0 : i32
    %c0_i32_0 = arith.constant 0 : i32
    %c0_i32_1 = arith.constant 0 : i32
    return %c0_i32, %c0_i32_0 : i32, i32
  }
  func.func @transform_24(%arg0: i32, %arg1: i32) -> (i32, i32, i32) {
    %c0_i32 = arith.constant 0 : i32
    %c0_i32_0 = arith.constant 0 : i32
    %c0_i32_1 = arith.constant 0 : i32
    return %arg0, %c0_i32, %c0_i32_0 : i32, i32, i32
  }
  func.func @transform_25(%arg0: i32, %arg1: i32) -> (i32, i32, i32, i32) {
    %c0_i32 = arith.constant 0 : i32
    %c0_i32_0 = arith.constant 0 : i32
    %c0_i32_1 = arith.constant 0 : i32
    %c0_i32_2 = arith.constant 0 : i32
    return %arg0, %c0_i32, %c0_i32_0, %c0_i32_1 : i32, i32, i32, i32
  }
}

</mosaic_0001>

<llo_original>
// kernel: decoder_forward.5
$region0: #{decoder_forward.5}
  #allocation0 [shape = 'u32[]', space=smem, size = 0x4, offset = 0x4, fixed_abs, tag = 'smem constant byte address 0x4 - core index']
  #allocation1 [shape = 'u32[72,128]{1,0:T(1,128)}', space=vmem, size = 0x9000, scoped, tag = 'internal scratch']
  %s0 = inlined_call_operand.vmem [shape: bf16[16,32], index: 0, kind: input, shape index: {}]
  %s1 = inlined_call_operand.vmem [shape: bf16[32,512], index: 1, kind: input, shape index: {}]
  %s2 = inlined_call_operand.vmem [shape: f32[1,512], index: 2, kind: input, shape index: {}]
  %s3 = inlined_call_operand.vmem [shape: f32[16,512], index: 3, kind: output, shape index: {}]
  %s4 = sld [smem:[#allocation0]]
  $region45: #{decoder_forward.5} parent=0
    _
  %s6 = ssub.s32 1, %s4
  %s7 = scalar_select 0, %s6, %s4
  loop: start=0, step=1, limit=4
  $region2: #{decoder_forward.5} parent=0 // loop_pre_header
    _
  $region3: #{decoder_forward.5} parent=0 // loop_header
    %s9 = sphi 0, %s13
    %p10 = scmp.ge.s32.totalorder %s9, 4
    %s16 = sphi 0, %s28
    %s17 = sphi 0, %s24
    %s18 = sphi 0, %s16
    %s19 = sphi 0, %s17
    %s20 = sphi 0, %s18
    %s21 = sphi 0, %s19
    %s31 = sphi 0, %s33
    %s34 = sphi 0, %s31
    %s35 = sphi 0, %s34
    %s51 = sphi 0, %s35
    %s57 = sphi 0, %s59
    %s60 = sphi 0, %s57
    %s61 = sphi 0, %s60
    %s77 = sphi 0, %s61
    %s83 = sphi 0, %s85
    %s86 = sphi 0, %s83
    %s87 = sphi 0, %s86
    %s103 = sphi 0, %s87
    %s111 = sphi 0, %s113
    %s114 = sphi 0, %s111
    %s115 = sphi 0, %s114
    %s131 = sphi 0, %s115
  $region4: #{decoder_forward.5} parent=0 // loop_header_branch
    %12 = sbr.rel (%p10) target = $region8
  $region5: #{decoder_forward.5} parent=0 // loop_body
    %s14 = ssub.s32 %s9, 1
    %s15 = ssub.s32 %s9, 2
    %s22 = sadd.s32 1, %s17
    %p23 = scmp.ge.s32.totalorder %s22, 1
    %s24 = scalar_select %p23, 0, %s22
    %s25 = sadd.s32 1, %s16
    %s26 = scalar_select %p23, %s25, %s16
    %p27 = scmp.ge.s32.totalorder %s26, 2
    %s28 = scalar_select %p27, 0, %s26
    %s29 = ssub.s32 %s16, %s28
    %p30 = scmp.eq.s32.totalorder %s29, 0
    %s32 = sadd.s32 %s31, 1
    %s33 = scalar_select %p30, %s31, %s32
    %p36 = pneg %p30
    %p37 = scmp.eq.s32.totalorder %s9, 1
    %p38 = por %p36, %p37
    %p39 = scmp.ne.s32.totalorder %s31, %s34
    %p40 = scmp.eq.s32.totalorder %s9, 0
    %p41 = por %p39, %p40
    %p42 = scmp.ne.s32.totalorder %s31, %s34
    %p43 = scmp.eq.s32.totalorder %s14, 1
    %p44 = por %p42, %p43
    %p45 = scmp.ne.s32.totalorder %s34, %s35
    %p46 = scmp.eq.s32.totalorder %s14, 0
    %p47 = por %p45, %p46
    %p48 = scmp.ne.s32.totalorder %s34, %s35
    %p49 = scmp.eq.s32.totalorder %s15, 1
    %p50 = por %p48, %p49
    %p52 = scmp.ne.s32.totalorder %s35, %s51
    %p53 = scmp.eq.s32.totalorder %s15, 0
    %p54 = por %p52, %p53
    %s55 = ssub.s32 %s17, %s24
    %p56 = scmp.eq.s32.totalorder %s55, 0
    %s58 = sadd.s32 %s57, 1
    %s59 = scalar_select %p56, %s57, %s58
    %p62 = pneg %p56
    %p63 = scmp.eq.s32.totalorder %s9, 1
    %p64 = por %p62, %p63
    %p65 = scmp.ne.s32.totalorder %s57, %s60
    %p66 = scmp.eq.s32.totalorder %s9, 0
    %p67 = por %p65, %p66
    %p68 = scmp.ne.s32.totalorder %s57, %s60
    %p69 = scmp.eq.s32.totalorder %s14, 1
    %p70 = por %p68, %p69
    %p71 = scmp.ne.s32.totalorder %s60, %s61
    %p72 = scmp.eq.s32.totalorder %s14, 0
    %p73 = por %p71, %p72
    %p74 = scmp.ne.s32.totalorder %s60, %s61
    %p75 = scmp.eq.s32.totalorder %s15, 1
    %p76 = por %p74, %p75
    %p78 = scmp.ne.s32.totalorder %s61, %s77
    %p79 = scmp.eq.s32.totalorder %s15, 0
    %p80 = por %p78, %p79
    %s81 = ssub.s32 %s17, %s24
    %p82 = scmp.eq.s32.totalorder %s81, 0
    %s84 = sadd.s32 %s83, 1
    %s85 = scalar_select %p82, %s83, %s84
    %p88 = pneg %p82
    %p89 = scmp.eq.s32.totalorder %s9, 1
    %p90 = por %p88, %p89
    %p91 = scmp.ne.s32.totalorder %s83, %s86
    %p92 = scmp.eq.s32.totalorder %s9, 0
    %p93 = por %p91, %p92
    %p94 = scmp.ne.s32.totalorder %s83, %s86
    %p95 = scmp.eq.s32.totalorder %s14, 1
    %p96 = por %p94, %p95
    %p97 = scmp.ne.s32.totalorder %s86, %s87
    %p98 = scmp.eq.s32.totalorder %s14, 0
    %p99 = por %p97, %p98
    %p100 = scmp.ne.s32.totalorder %s86, %s87
    %p101 = scmp.eq.s32.totalorder %s15, 1
    %p102 = por %p100, %p101
    %p104 = scmp.ne.s32.totalorder %s87, %s103
    %p105 = scmp.eq.s32.totalorder %s15, 0
    %p106 = por %p104, %p105
    %s107 = ssub.s32 %s16, %s28
    %s108 = ssub.s32 %s17, %s24
    %s109 = sor.u32 %s107, %s108
    %p110 = scmp.eq.s32.totalorder %s109, 0
    %s112 = sadd.s32 %s111, 1
    %s113 = scalar_select %p110, %s111, %s112
    %p116 = pneg %p110
    %p117 = scmp.eq.s32.totalorder %s9, 1
    %p118 = por %p116, %p117
    %p119 = scmp.ne.s32.totalorder %s111, %s114
    %p120 = scmp.eq.s32.totalorder %s9, 0
    %p121 = por %p119, %p120
    %p122 = scmp.ne.s32.totalorder %s111, %s114
    %p123 = scmp.eq.s32.totalorder %s14, 1
    %p124 = por %p122, %p123
    %p125 = scmp.ne.s32.totalorder %s114, %s115
    %p126 = scmp.eq.s32.totalorder %s14, 0
    %p127 = por %p125, %p126
    %p128 = scmp.ne.s32.totalorder %s114, %s115
    %p129 = scmp.eq.s32.totalorder %s15, 1
    %p130 = por %p128, %p129
    %p132 = scmp.ne.s32.totalorder %s115, %s131
    %p133 = scmp.eq.s32.totalorder %s15, 0
    %p134 = por %p132, %p133
    %p135 = scmp.le.s32.totalorder 1, %s9
    %p136 = scmp.lt.s32.totalorder %s9, 3
    %p137 = pnand %p135, %p136
    %p138 = pneg %p137
    // Predicated region
    $region9: #{decoder_forward.5} parent=5 // pred_check
      _
    $region10: #{decoder_forward.5} parent=5 // pred_check_branch
      %140 = sbr.rel (%p137) target = $region12
    $region11: #{decoder_forward.5} parent=5 // pred_region
      %s141 = ssub.s32 %s9, 1
      // Predicated region
      $region13: #{decoder_forward.5} parent=11 // pred_check
        %p142 = pneg %p73
      $region14: #{decoder_forward.5} parent=11 // pred_check_branch
        %144 = sbr.rel (%p142) target = $region16
      $region15: #{decoder_forward.5} parent=11 // pred_region
        %s145 = smul.u32 4, %s19
        %p146 = scmp.lt.s32.totalorder %s145, 3
        %s147 = scalar_select %p146, %s145, 3
        %s148 = smul.addr %s147, 4
        %s149 = scalar_lea.vmem %s1, %s148
        %s150 = smul.u32 4, %s19
      $region16: #{decoder_forward.5} parent=11 // pred_fallthru
        _
      // Predicated region
      $region17: #{decoder_forward.5} parent=11 // pred_check
        %p151 = pneg %p99
      $region18: #{decoder_forward.5} parent=11 // pred_check_branch
        %153 = sbr.rel (%p151) target = $region20
      $region19: #{decoder_forward.5} parent=11 // pred_region
        %s154 = smul.u32 4, %s19
        %p155 = scmp.lt.s32.totalorder %s154, 3
        %s156 = scalar_select %p155, %s154, 3
        %s157 = scalar_lea.vmem %s2, %s156
        %s158 = smul.u32 4, %s19
      $region20: #{decoder_forward.5} parent=11 // pred_fallthru
        _
    $region12: #{decoder_forward.5} parent=5 // pred_fallthru
      _
    %p159 = scmp.lt.s32.totalorder %s9, 2
    // Predicated region
    $region21: #{decoder_forward.5} parent=5 // pred_check
      %p160 = pneg %p159
    $region22: #{decoder_forward.5} parent=5 // pred_check_branch
      %162 = sbr.rel (%p160) target = $region24
    $region23: #{decoder_forward.5} parent=5 // pred_region
      // Predicated region
      $region25: #{decoder_forward.5} parent=23 // pred_check
        %p163 = pneg %p41
      $region26: #{decoder_forward.5} parent=23 // pred_check_branch
        %165 = sbr.rel (%p163) target = $region28
      $region27: #{decoder_forward.5} parent=23 // pred_region
        %p166 = scmp.lt.s32.totalorder %s16, 1
        %s167 = scalar_select %p166, %s16, 1
        %s168 = smul.addr %s167, 4
        %s169 = scalar_lea.vmem %s0, %s168
      $region28: #{decoder_forward.5} parent=23 // pred_fallthru
        _
    $region24: #{decoder_forward.5} parent=5 // pred_fallthru
      _
    %p170 = scmp.le.s32.totalorder 1, %s9
    %p171 = scmp.lt.s32.totalorder %s9, 3
    %p172 = pnand %p170, %p171
    %p173 = pneg %p172
    // Predicated region
    $region29: #{decoder_forward.5} parent=5 // pred_check
      _
    $region30: #{decoder_forward.5} parent=5 // pred_check_branch
      %175 = sbr.rel (%p172) target = $region32
    $region31: #{decoder_forward.5} parent=5 // pred_region
      %s176 = ssub.s32 %s9, 1
      %p177 = scmp.lt.s32.totalorder %s18, 1
      %s178 = scalar_select %p177, %s18, 1
      %s179 = smul.addr %s178, 4
      %s180 = scalar_lea.vmem %s0, %s179
      %p181 = pneg %p47
      %p182 = pneg %p44
      %s183 = smul.u32 4, %s19
      %p184 = scmp.lt.s32.totalorder %s183, 3
      %s185 = scalar_select %p184, %s183, 3
      %s186 = smul.addr %s185, 4
      %s187 = scalar_lea.vmem %s1, %s186
      %p188 = pneg %p73
      %p189 = pneg %p70
      %s190 = smul.u32 4, %s19
      %p191 = scmp.lt.s32.totalorder %s190, 3
      %s192 = scalar_select %p191, %s190, 3
      %s193 = scalar_lea.vmem %s2, %s192
      %p194 = pneg %p99
      %p195 = pneg %p96
      %p196 = pneg %p127
      %p197 = pneg %p124
      %s198 = smul.u32 4, %s19
      %p199 = scmp.lt.s32.totalorder %s18, 1
      %s200 = scalar_select %p199, %s18, 1
      %p201 = scmp.lt.s32.totalorder %s198, 3
      %s202 = scalar_select %p201, %s198, 3
      %s203 = smul.addr %s200, 4
      %s204 = sadd.s32 %s202, %s203
      %s205 = smul.addr %s204, 8
      %s206 = scalar_lea.vmem %s3, %s205
      %p207 = scmp.lt.s32.totalorder %s18, 1
      %s208 = scalar_select %p207, %s18, 1
      %s209 = smul.addr %s208, 4
      %s210 = scalar_lea.vmem %s0, %s209
      %s211 = smul.u32 4, %s19
      %p212 = scmp.lt.s32.totalorder %s211, 3
      %s213 = scalar_select %p212, %s211, 3
      %s214 = smul.addr %s213, 4
      %s215 = scalar_lea.vmem %s1, %s214
      %s216 = smul.u32 4, %s19
      %s217 = smul.u32 4, %s19
      %p218 = scmp.lt.s32.totalorder %s217, 3
      %s219 = scalar_select %p218, %s217, 3
      %s220 = scalar_lea.vmem %s2, %s219
      %s221 = smul.u32 4, %s19
      %s222 = smul.u32 4, %s19
      %p223 = scmp.lt.s32.totalorder %s18, 1
      %s224 = scalar_select %p223, %s18, 1
      %p225 = scmp.lt.s32.totalorder %s222, 3
      %s226 = scalar_select %p225, %s222, 3
      %s227 = smul.addr %s224, 4
      %s228 = sadd.s32 %s226, %s227
      %s229 = smul.addr %s228, 8
      %s230 = scalar_lea.vmem %s3, %s229
      %s231 = smul.u32 4, %s19
      %v233 = vld [vmem:[%s210] sm:$0xf]
      %v234 = vld [vmem:[%s215] sm:$0xff]
      %v235 = vld [vmem:[%s215 + $0x8] sm:$0xff]
      %v236 = vld [vmem:[%s215 + $0x10] sm:$0xff]
      %v237 = vld [vmem:[%s215 + $0x18] sm:$0xff]
      %v238 = vld [vmem:[%s215 + $0x20] sm:$0xff]
      %v239 = vld [vmem:[%s215 + $0x28] sm:$0xff]
      %v240 = vld [vmem:[%s215 + $0x30] sm:$0xff]
      %v241 = vld [vmem:[%s215 + $0x38] sm:$0xff]
      %v242 = vld [vmem:[%s220] sm:$0xf]
      %v244 = vperm.slane %v242, 0
      %v245 = vperm.slane %v242, 1
      %v246 = vperm.slane %v242, 2
      %v247 = vperm.slane %v242, 3
      %v260 = vunpack.c.l.b16 %v234
      %v261 = vunpack.c.h.b16 %v234
      %v262 = vunpack.c.l.b16 %v235
      %v263 = vunpack.c.h.b16 %v235
      %v264 = vunpack.c.l.b16 %v236
      %v265 = vunpack.c.h.b16 %v236
      %v266 = vunpack.c.l.b16 %v237
      %v267 = vunpack.c.h.b16 %v237
      %v268 = vunpack.c.l.b16 %v238
      %v269 = vunpack.c.h.b16 %v238
      %v270 = vunpack.c.l.b16 %v239
      %v271 = vunpack.c.h.b16 %v239
      %v272 = vunpack.c.l.b16 %v240
      %v273 = vunpack.c.h.b16 %v240
      %v274 = vunpack.c.l.b16 %v241
      %v275 = vunpack.c.h.b16 %v241
      %v276 = vpack.c.b16 %v264, %v260
      %v277 = vpack.c.b16 %v265, %v261
      %v278 = vpack.c.b16 %v266, %v262
      %v279 = vpack.c.b16 %v267, %v263
      %v280 = vpack.c.b16 %v272, %v268
      %v281 = vpack.c.b16 %v273, %v269
      %v282 = vpack.c.b16 %v274, %v270
      %v283 = vpack.c.b16 %v275, %v271
      %vm292 = vcmask 261120
      %v294 = vsel %vm292, %v233, 0
      %296 = vmatpush.bf16.msra.mxu0 0
      %297 = vmatpush.bf16.msra.mxu0 0
      %298 = vmatpush.bf16.msra.mxu0 0
      %299 = vmatpush.bf16.msra.mxu0 0
      %300 = vmatpush.bf16.msra.mxu0 0
      %301 = vmatpush.bf16.msra.mxu0 0
      %302 = vmatpush.bf16.msra.mxu0 %v280
      %303 = vmatpush.bf16.msra.mxu0 %v276
      %304 = vmatmul.bf16.gmra.mxu0 %v294
      %v305 = vpop.f32.mrf.mxu0
      %v306 = vadd.f32 %v244, %v305
      %v307 = vpop.f32.mrf.mxu0
      %308 = vdwg.mxu0
      %309 = vmatpush.bf16.msra.mxu0 0
      %310 = vmatpush.bf16.msra.mxu0 0
      %311 = vmatpush.bf16.msra.mxu0 0
      %312 = vmatpush.bf16.msra.mxu0 0
      %313 = vmatpush.bf16.msra.mxu0 0
      %314 = vmatpush.bf16.msra.mxu0 0
      %315 = vmatpush.bf16.msra.mxu0 %v281
      %316 = vmatpush.bf16.msra.mxu0 %v277
      %317 = vmatmul.bf16.gmra.mxu0 %v294
      %v318 = vpop.f32.mrf.mxu0
      %v319 = vadd.f32 %v245, %v318
      %v320 = vpop.f32.mrf.mxu0
      %321 = vdwg.mxu0
      %322 = vmatpush.bf16.msra.mxu0 0
      %323 = vmatpush.bf16.msra.mxu0 0
      %324 = vmatpush.bf16.msra.mxu0 0
      %325 = vmatpush.bf16.msra.mxu0 0
      %326 = vmatpush.bf16.msra.mxu0 0
      %327 = vmatpush.bf16.msra.mxu0 0
      %328 = vmatpush.bf16.msra.mxu0 %v282
      %329 = vmatpush.bf16.msra.mxu0 %v278
      %330 = vmatmul.bf16.gmra.mxu0 %v294
      %v331 = vpop.f32.mrf.mxu0
      %v332 = vadd.f32 %v246, %v331
      %v333 = vpop.f32.mrf.mxu0
      %334 = vdwg.mxu0
      %335 = vmatpush.bf16.msra.mxu0 0
      %336 = vmatpush.bf16.msra.mxu0 0
      %337 = vmatpush.bf16.msra.mxu0 0
      %338 = vmatpush.bf16.msra.mxu0 0
      %339 = vmatpush.bf16.msra.mxu0 0
      %340 = vmatpush.bf16.msra.mxu0 0
      %341 = vmatpush.bf16.msra.mxu0 %v283
      %342 = vmatpush.bf16.msra.mxu0 %v279
      %343 = vmatmul.bf16.gmra.mxu0 %v294
      %v344 = vpop.f32.mrf.mxu0
      %v345 = vadd.f32 %v247, %v344
      %v346 = vpop.f32.mrf.mxu0
      %347 = vdwg.mxu0
      %348 = vst [vmem:[%s230] sm:$0xff] %v306
      %349 = vst [vmem:[%s230 + $0x8] sm:$0xff] %v319
      %350 = vst [vmem:[%s230 + $0x10] sm:$0xff] %v332
      %351 = vst [vmem:[%s230 + $0x18] sm:$0xff] %v345
      %s352 = smul.u32 4, %s19
      %p353 = scmp.lt.s32.totalorder %s18, 1
      %s354 = scalar_select %p353, %s18, 1
      %p355 = scmp.lt.s32.totalorder %s352, 3
      %s356 = scalar_select %p355, %s352, 3
      %s357 = smul.addr %s354, 4
      %s358 = sadd.s32 %s356, %s357
      %s359 = smul.addr %s358, 8
      %s360 = scalar_lea.vmem %s3, %s359
      // Predicated region
      $region33: #{decoder_forward.5} parent=31 // pred_check
        %p361 = pneg %p124
      $region34: #{decoder_forward.5} parent=31 // pred_check_branch
        %363 = sbr.rel (%p361) target = $region36
      $region35: #{decoder_forward.5} parent=31 // pred_region
        %s364 = smul.u32 4, %s19
      $region36: #{decoder_forward.5} parent=31 // pred_fallthru
        _
    $region32: #{decoder_forward.5} parent=5 // pred_fallthru
      _
    %p365 = scmp.le.s32.totalorder 2, %s9
    // Predicated region
    $region37: #{decoder_forward.5} parent=5 // pred_check
      %p366 = pneg %p365
    $region38: #{decoder_forward.5} parent=5 // pred_check_branch
      %368 = sbr.rel (%p366) target = $region40
    $region39: #{decoder_forward.5} parent=5 // pred_region
      %s369 = ssub.s32 %s9, 2
      // Predicated region
      $region41: #{decoder_forward.5} parent=39 // pred_check
        %p370 = pneg %p130
      $region42: #{decoder_forward.5} parent=39 // pred_check_branch
        %372 = sbr.rel (%p370) target = $region44
      $region43: #{decoder_forward.5} parent=39 // pred_region
        %s373 = smul.u32 4, %s21
        %p374 = scmp.lt.s32.totalorder %s20, 1
        %s375 = scalar_select %p374, %s20, 1
        %p376 = scmp.lt.s32.totalorder %s373, 3
        %s377 = scalar_select %p376, %s373, 3
        %s378 = smul.addr %s375, 4
        %s379 = sadd.s32 %s377, %s378
        %s380 = smul.addr %s379, 8
        %s381 = scalar_lea.vmem %s3, %s380
      $region44: #{decoder_forward.5} parent=39 // pred_fallthru
        _
    $region40: #{decoder_forward.5} parent=5 // pred_fallthru
      _
  $region6: #{decoder_forward.5} parent=0 // loop_footer
    %s13 = sadd.s32 1, %s9
  $region7: #{decoder_forward.5} parent=0 // loop_footer_branch
    %8 = sbr.rel target = $region3
  $region8: #{decoder_forward.5} parent=0 // loop_exit
    _

// kernel: decoder_forward.3
$region0: #{decoder_forward.3}
  #allocation0 [shape = 'u32[]', space=smem, size = 0x4, offset = 0x4, fixed_abs, tag = 'smem constant byte address 0x4 - core index']
  #allocation1 [shape = 'u32[72,128]{1,0:T(1,128)}', space=vmem, size = 0x9000, scoped, tag = 'internal scratch']
  #allocation2 [shape = 'f32[8,32]{1,0:T(8,128)}', space=vmem, size = 0x1000, scoped, tag = 'scratch operand']
  #allocation3 [shape = 'f32[8,32]{1,0:T(8,128)}', space=vmem, size = 0x1000, scoped, tag = 'scratch operand']
  %s0 = inlined_call_operand.vmem [shape: bf16[2,8,32], index: 0, kind: input, shape index: {}]
  %s1 = inlined_call_operand.vmem [shape: bf16[2,8,32], index: 1, kind: input, shape index: {}]
  %s2 = inlined_call_operand.vmem [shape: f32[2,1,8], index: 2, kind: input, shape index: {}]
  %s3 = inlined_call_operand.vmem [shape: f32[2,1,8], index: 3, kind: input, shape index: {}]
  %s4 = inlined_call_operand.vmem [shape: bf16[32,96], index: 4, kind: input, shape index: {}]
  %s5 = inlined_call_operand.vmem [shape: f32[1,96], index: 5, kind: input, shape index: {}]
  %s6 = inlined_call_operand.vmem [shape: bf16[32,32], index: 6, kind: input, shape index: {}]
  %s7 = inlined_call_operand.vmem [shape: f32[1,32], index: 7, kind: input, shape index: {}]
  %s8 = inlined_call_operand.vmem [shape: f32[1,32], index: 8, kind: input, shape index: {}]
  %s9 = inlined_call_operand.vmem [shape: f32[1,32], index: 9, kind: input, shape index: {}]
  %s10 = inlined_call_operand.vmem [shape: bf16[32,32], index: 10, kind: input, shape index: {}]
  %s11 = inlined_call_operand.vmem [shape: f32[1,32], index: 11, kind: input, shape index: {}]
  %s12 = inlined_call_operand.vmem [shape: bf16[32,64], index: 12, kind: input, shape index: {}]
  %s13 = inlined_call_operand.vmem [shape: f32[1,64], index: 13, kind: input, shape index: {}]
  %s14 = inlined_call_operand.vmem [shape: bf16[32,32], index: 14, kind: input, shape index: {}]
  %s15 = inlined_call_operand.vmem [shape: f32[1,32], index: 15, kind: input, shape index: {}]
  %s16 = inlined_call_operand.vmem [shape: f32[1,32], index: 16, kind: input, shape index: {}]
  %s17 = inlined_call_operand.vmem [shape: f32[1,32], index: 17, kind: input, shape index: {}]
  %s18 = inlined_call_operand.vmem [shape: bf16[32,64], index: 18, kind: input, shape index: {}]
  %s19 = inlined_call_operand.vmem [shape: f32[1,64], index: 19, kind: input, shape index: {}]
  %s20 = inlined_call_operand.vmem [shape: bf16[64,32], index: 20, kind: input, shape index: {}]
  %s21 = inlined_call_operand.vmem [shape: f32[1,32], index: 21, kind: input, shape index: {}]
  %s22 = inlined_call_operand.vmem [shape: f32[1,32], index: 22, kind: input, shape index: {}]
  %s23 = inlined_call_operand.vmem [shape: f32[1,32], index: 23, kind: input, shape index: {}]
  %s24 = inlined_call_operand.vmem [shape: bf16[2,8,32], index: 24, kind: output, shape index: {}]
  %s25 = sld [smem:[#allocation0]]
  $region137: #{decoder_forward.3} parent=0
    _
  %s27 = ssub.s32 1, %s25
  %s28 = scalar_select 0, %s27, %s25
  loop: start=0, step=1, limit=4
  $region2: #{decoder_forward.3} parent=0 // loop_pre_header
    _
  $region3: #{decoder_forward.3} parent=0 // loop_header
    %s30 = sphi 0, %s34
    %p31 = scmp.ge.s32.totalorder %s30, 4
    %s37 = sphi 0, %s49
    %s38 = sphi 0, %s45
    %s39 = sphi 0, %s37
    %s40 = sphi 0, %s38
    %s41 = sphi 0, %s39
    %s42 = sphi 0, %s40
    %s52 = sphi 0, %s54
    %s55 = sphi 0, %s52
    %s56 = sphi 0, %s55
    %s72 = sphi 0, %s56
    %s78 = sphi 0, %s80
    %s81 = sphi 0, %s78
    %s82 = sphi 0, %s81
    %s98 = sphi 0, %s82
    %s104 = sphi 0, %s106
    %s107 = sphi 0, %s104
    %s108 = sphi 0, %s107
    %s124 = sphi 0, %s108
    %s130 = sphi 0, %s132
    %s133 = sphi 0, %s130
    %s134 = sphi 0, %s133
    %s150 = sphi 0, %s134
    %s154 = sphi 0, %s154
    %s156 = sphi 0, %s154
    %s157 = sphi 0, %s156
    %s171 = sphi 0, %s157
    %s175 = sphi 0, %s175
    %s177 = sphi 0, %s175
    %s178 = sphi 0, %s177
    %s192 = sphi 0, %s178
    %s196 = sphi 0, %s196
    %s198 = sphi 0, %s196
    %s199 = sphi 0, %s198
    %s213 = sphi 0, %s199
    %s217 = sphi 0, %s217
    %s219 = sphi 0, %s217
    %s220 = sphi 0, %s219
    %s234 = sphi 0, %s220
    %s238 = sphi 0, %s238
    %s240 = sphi 0, %s238
    %s241 = sphi 0, %s240
    %s255 = sphi 0, %s241
    %s259 = sphi 0, %s259
    %s261 = sphi 0, %s259
    %s262 = sphi 0, %s261
    %s276 = sphi 0, %s262
    %s280 = sphi 0, %s280
    %s282 = sphi 0, %s280
    %s283 = sphi 0, %s282
    %s297 = sphi 0, %s283
    %s301 = sphi 0, %s301
    %s303 = sphi 0, %s301
    %s304 = sphi 0, %s303
    %s318 = sphi 0, %s304
    %s322 = sphi 0, %s322
    %s324 = sphi 0, %s322
    %s325 = sphi 0, %s324
    %s339 = sphi 0, %s325
    %s343 = sphi 0, %s343
    %s345 = sphi 0, %s343
    %s346 = sphi 0, %s345
    %s360 = sphi 0, %s346
    %s364 = sphi 0, %s364
    %s366 = sphi 0, %s364
    %s367 = sphi 0, %s366
    %s381 = sphi 0, %s367
    %s385 = sphi 0, %s385
    %s387 = sphi 0, %s385
    %s388 = sphi 0, %s387
    %s402 = sphi 0, %s388
    %s406 = sphi 0, %s406
    %s408 = sphi 0, %s406
    %s409 = sphi 0, %s408
    %s423 = sphi 0, %s409
    %s427 = sphi 0, %s427
    %s429 = sphi 0, %s427
    %s430 = sphi 0, %s429
    %s444 = sphi 0, %s430
    %s450 = sphi 0, %s452
    %s453 = sphi 0, %s450
    %s454 = sphi 0, %s453
    %s470 = sphi 0, %s454
    %s476 = sphi 0, %s478
    %s479 = sphi 0, %s476
    %s480 = sphi 0, %s479
    %s496 = sphi 0, %s480
    %s502 = sphi 0, %s504
    %s505 = sphi 0, %s502
    %s506 = sphi 0, %s505
    %s522 = sphi 0, %s506
    %s526 = sphi 0, %s526
    %s528 = sphi 0, %s526
    %s529 = sphi 0, %s528
    %s543 = sphi 0, %s529
    %s547 = sphi 0, %s547
    %s549 = sphi 0, %s547
    %s550 = sphi 0, %s549
    %s564 = sphi 0, %s550
    %s568 = sphi 0, %s568
    %s570 = sphi 0, %s568
    %s571 = sphi 0, %s570
    %s585 = sphi 0, %s571
    %s591 = sphi 0, %s593
    %s594 = sphi 0, %s591
    %s595 = sphi 0, %s594
    %s611 = sphi 0, %s595
  $region4: #{decoder_forward.3} parent=0 // loop_header_branch
    %33 = sbr.rel (%p31) target = $region8
  $region5: #{decoder_forward.3} parent=0 // loop_body
    %s35 = ssub.s32 %s30, 1
    %s36 = ssub.s32 %s30, 2
    %s43 = sadd.s32 1, %s38
    %p44 = scmp.ge.s32.totalorder %s43, 1
    %s45 = scalar_select %p44, 0, %s43
    %s46 = sadd.s32 1, %s37
    %s47 = scalar_select %p44, %s46, %s37
    %p48 = scmp.ge.s32.totalorder %s47, 2
    %s49 = scalar_select %p48, 0, %s47
    %s50 = ssub.s32 %s37, %s49
    %p51 = scmp.eq.s32.totalorder %s50, 0
    %s53 = sadd.s32 %s52, 1
    %s54 = scalar_select %p51, %s52, %s53
    %p57 = pneg %p51
    %p58 = scmp.eq.s32.totalorder %s30, 1
    %p59 = por %p57, %p58
    %p60 = scmp.ne.s32.totalorder %s52, %s55
    %p61 = scmp.eq.s32.totalorder %s30, 0
    %p62 = por %p60, %p61
    %p63 = scmp.ne.s32.totalorder %s52, %s55
    %p64 = scmp.eq.s32.totalorder %s35, 1
    %p65 = por %p63, %p64
    %p66 = scmp.ne.s32.totalorder %s55, %s56
    %p67 = scmp.eq.s32.totalorder %s35, 0
    %p68 = por %p66, %p67
    %p69 = scmp.ne.s32.totalorder %s55, %s56
    %p70 = scmp.eq.s32.totalorder %s36, 1
    %p71 = por %p69, %p70
    %p73 = scmp.ne.s32.totalorder %s56, %s72
    %p74 = scmp.eq.s32.totalorder %s36, 0
    %p75 = por %p73, %p74
    %s76 = ssub.s32 %s37, %s49
    %p77 = scmp.eq.s32.totalorder %s76, 0
    %s79 = sadd.s32 %s78, 1
    %s80 = scalar_select %p77, %s78, %s79
    %p83 = pneg %p77
    %p84 = scmp.eq.s32.totalorder %s30, 1
    %p85 = por %p83, %p84
    %p86 = scmp.ne.s32.totalorder %s78, %s81
    %p87 = scmp.eq.s32.totalorder %s30, 0
    %p88 = por %p86, %p87
    %p89 = scmp.ne.s32.totalorder %s78, %s81
    %p90 = scmp.eq.s32.totalorder %s35, 1
    %p91 = por %p89, %p90
    %p92 = scmp.ne.s32.totalorder %s81, %s82
    %p93 = scmp.eq.s32.totalorder %s35, 0
    %p94 = por %p92, %p93
    %p95 = scmp.ne.s32.totalorder %s81, %s82
    %p96 = scmp.eq.s32.totalorder %s36, 1
    %p97 = por %p95, %p96
    %p99 = scmp.ne.s32.totalorder %s82, %s98
    %p100 = scmp.eq.s32.totalorder %s36, 0
    %p101 = por %p99, %p100
    %s102 = ssub.s32 %s37, %s49
    %p103 = scmp.eq.s32.totalorder %s102, 0
    %s105 = sadd.s32 %s104, 1
    %s106 = scalar_select %p103, %s104, %s105
    %p109 = pneg %p103
    %p110 = scmp.eq.s32.totalorder %s30, 1
    %p111 = por %p109, %p110
    %p112 = scmp.ne.s32.totalorder %s104, %s107
    %p113 = scmp.eq.s32.totalorder %s30, 0
    %p114 = por %p112, %p113
    %p115 = scmp.ne.s32.totalorder %s104, %s107
    %p116 = scmp.eq.s32.totalorder %s35, 1
    %p117 = por %p115, %p116
    %p118 = scmp.ne.s32.totalorder %s107, %s108
    %p119 = scmp.eq.s32.totalorder %s35, 0
    %p120 = por %p118, %p119
    %p121 = scmp.ne.s32.totalorder %s107, %s108
    %p122 = scmp.eq.s32.totalorder %s36, 1
    %p123 = por %p121, %p122
    %p125 = scmp.ne.s32.totalorder %s108, %s124
    %p126 = scmp.eq.s32.totalorder %s36, 0
    %p127 = por %p125, %p126
    %s128 = ssub.s32 %s37, %s49
    %p129 = scmp.eq.s32.totalorder %s128, 0
    %s131 = sadd.s32 %s130, 1
    %s132 = scalar_select %p129, %s130, %s131
    %p135 = pneg %p129
    %p136 = scmp.eq.s32.totalorder %s30, 1
    %p137 = por %p135, %p136
    %p138 = scmp.ne.s32.totalorder %s130, %s133
    %p139 = scmp.eq.s32.totalorder %s30, 0
    %p140 = por %p138, %p139
    %p141 = scmp.ne.s32.totalorder %s130, %s133
    %p142 = scmp.eq.s32.totalorder %s35, 1
    %p143 = por %p141, %p142
    %p144 = scmp.ne.s32.totalorder %s133, %s134
    %p145 = scmp.eq.s32.totalorder %s35, 0
    %p146 = por %p144, %p145
    %p147 = scmp.ne.s32.totalorder %s133, %s134
    %p148 = scmp.eq.s32.totalorder %s36, 1
    %p149 = por %p147, %p148
    %p151 = scmp.ne.s32.totalorder %s134, %s150
    %p152 = scmp.eq.s32.totalorder %s36, 0
    %p153 = por %p151, %p152
    %s155 = sadd.s32 %s154, 1
    %p158 = scmp.eq.s32.totalorder %s30, 1
    %p159 = scmp.ne.s32.totalorder %s154, %s156
    %p160 = scmp.eq.s32.totalorder %s30, 0
    %p161 = por %p159, %p160
    %p162 = scmp.ne.s32.totalorder %s154, %s156
    %p163 = scmp.eq.s32.totalorder %s35, 1
    %p164 = por %p162, %p163
    %p165 = scmp.ne.s32.totalorder %s156, %s157
    %p166 = scmp.eq.s32.totalorder %s35, 0
    %p167 = por %p165, %p166
    %p168 = scmp.ne.s32.totalorder %s156, %s157
    %p169 = scmp.eq.s32.totalorder %s36, 1
    %p170 = por %p168, %p169
    %p172 = scmp.ne.s32.totalorder %s157, %s171
    %p173 = scmp.eq.s32.totalorder %s36, 0
    %p174 = por %p172, %p173
    %s176 = sadd.s32 %s175, 1
    %p179 = scmp.eq.s32.totalorder %s30, 1
    %p180 = scmp.ne.s32.totalorder %s175, %s177
    %p181 = scmp.eq.s32.totalorder %s30, 0
    %p182 = por %p180, %p181
    %p183 = scmp.ne.s32.totalorder %s175, %s177
    %p184 = scmp.eq.s32.totalorder %s35, 1
    %p185 = por %p183, %p184
    %p186 = scmp.ne.s32.totalorder %s177, %s178
    %p187 = scmp.eq.s32.totalorder %s35, 0
    %p188 = por %p186, %p187
    %p189 = scmp.ne.s32.totalorder %s177, %s178
    %p190 = scmp.eq.s32.totalorder %s36, 1
    %p191 = por %p189, %p190
    %p193 = scmp.ne.s32.totalorder %s178, %s192
    %p194 = scmp.eq.s32.totalorder %s36, 0
    %p195 = por %p193, %p194
    %s197 = sadd.s32 %s196, 1
    %p200 = scmp.eq.s32.totalorder %s30, 1
    %p201 = scmp.ne.s32.totalorder %s196, %s198
    %p202 = scmp.eq.s32.totalorder %s30, 0
    %p203 = por %p201, %p202
    %p204 = scmp.ne.s32.totalorder %s196, %s198
    %p205 = scmp.eq.s32.totalorder %s35, 1
    %p206 = por %p204, %p205
    %p207 = scmp.ne.s32.totalorder %s198, %s199
    %p208 = scmp.eq.s32.totalorder %s35, 0
    %p209 = por %p207, %p208
    %p210 = scmp.ne.s32.totalorder %s198, %s199
    %p211 = scmp.eq.s32.totalorder %s36, 1
    %p212 = por %p210, %p211
    %p214 = scmp.ne.s32.totalorder %s199, %s213
    %p215 = scmp.eq.s32.totalorder %s36, 0
    %p216 = por %p214, %p215
    %s218 = sadd.s32 %s217, 1
    %p221 = scmp.eq.s32.totalorder %s30, 1
    %p222 = scmp.ne.s32.totalorder %s217, %s219
    %p223 = scmp.eq.s32.totalorder %s30, 0
    %p224 = por %p222, %p223
    %p225 = scmp.ne.s32.totalorder %s217, %s219
    %p226 = scmp.eq.s32.totalorder %s35, 1
    %p227 = por %p225, %p226
    %p228 = scmp.ne.s32.totalorder %s219, %s220
    %p229 = scmp.eq.s32.totalorder %s35, 0
    %p230 = por %p228, %p229
    %p231 = scmp.ne.s32.totalorder %s219, %s220
    %p232 = scmp.eq.s32.totalorder %s36, 1
    %p233 = por %p231, %p232
    %p235 = scmp.ne.s32.totalorder %s220, %s234
    %p236 = scmp.eq.s32.totalorder %s36, 0
    %p237 = por %p235, %p236
    %s239 = sadd.s32 %s238, 1
    %p242 = scmp.eq.s32.totalorder %s30, 1
    %p243 = scmp.ne.s32.totalorder %s238, %s240
    %p244 = scmp.eq.s32.totalorder %s30, 0
    %p245 = por %p243, %p244
    %p246 = scmp.ne.s32.totalorder %s238, %s240
    %p247 = scmp.eq.s32.totalorder %s35, 1
    %p248 = por %p246, %p247
    %p249 = scmp.ne.s32.totalorder %s240, %s241
    %p250 = scmp.eq.s32.totalorder %s35, 0
    %p251 = por %p249, %p250
    %p252 = scmp.ne.s32.totalorder %s240, %s241
    %p253 = scmp.eq.s32.totalorder %s36, 1
    %p254 = por %p252, %p253
    %p256 = scmp.ne.s32.totalorder %s241, %s255
    %p257 = scmp.eq.s32.totalorder %s36, 0
    %p258 = por %p256, %p257
    %s260 = sadd.s32 %s259, 1
    %p263 = scmp.eq.s32.totalorder %s30, 1
    %p264 = scmp.ne.s32.totalorder %s259, %s261
    %p265 = scmp.eq.s32.totalorder %s30, 0
    %p266 = por %p264, %p265
    %p267 = scmp.ne.s32.totalorder %s259, %s261
    %p268 = scmp.eq.s32.totalorder %s35, 1
    %p269 = por %p267, %p268
    %p270 = scmp.ne.s32.totalorder %s261, %s262
    %p271 = scmp.eq.s32.totalorder %s35, 0
    %p272 = por %p270, %p271
    %p273 = scmp.ne.s32.totalorder %s261, %s262
    %p274 = scmp.eq.s32.totalorder %s36, 1
    %p275 = por %p273, %p274
    %p277 = scmp.ne.s32.totalorder %s262, %s276
    %p278 = scmp.eq.s32.totalorder %s36, 0
    %p279 = por %p277, %p278
    %s281 = sadd.s32 %s280, 1
    %p284 = scmp.eq.s32.totalorder %s30, 1
    %p285 = scmp.ne.s32.totalorder %s280, %s282
    %p286 = scmp.eq.s32.totalorder %s30, 0
    %p287 = por %p285, %p286
    %p288 = scmp.ne.s32.totalorder %s280, %s282
    %p289 = scmp.eq.s32.totalorder %s35, 1
    %p290 = por %p288, %p289
    %p291 = scmp.ne.s32.totalorder %s282, %s283
    %p292 = scmp.eq.s32.totalorder %s35, 0
    %p293 = por %p291, %p292
    %p294 = scmp.ne.s32.totalorder %s282, %s283
    %p295 = scmp.eq.s32.totalorder %s36, 1
    %p296 = por %p294, %p295
    %p298 = scmp.ne.s32.totalorder %s283, %s297
    %p299 = scmp.eq.s32.totalorder %s36, 0
    %p300 = por %p298, %p299
    %s302 = sadd.s32 %s301, 1
    %p305 = scmp.eq.s32.totalorder %s30, 1
    %p306 = scmp.ne.s32.totalorder %s301, %s303
    %p307 = scmp.eq.s32.totalorder %s30, 0
    %p308 = por %p306, %p307
    %p309 = scmp.ne.s32.totalorder %s301, %s303
    %p310 = scmp.eq.s32.totalorder %s35, 1
    %p311 = por %p309, %p310
    %p312 = scmp.ne.s32.totalorder %s303, %s304
    %p313 = scmp.eq.s32.totalorder %s35, 0
    %p314 = por %p312, %p313
    %p315 = scmp.ne.s32.totalorder %s303, %s304
    %p316 = scmp.eq.s32.totalorder %s36, 1
    %p317 = por %p315, %p316
    %p319 = scmp.ne.s32.totalorder %s304, %s318
    %p320 = scmp.eq.s32.totalorder %s36, 0
    %p321 = por %p319, %p320
    %s323 = sadd.s32 %s322, 1
    %p326 = scmp.eq.s32.totalorder %s30, 1
    %p327 = scmp.ne.s32.totalorder %s322, %s324
    %p328 = scmp.eq.s32.totalorder %s30, 0
    %p329 = por %p327, %p328
    %p330 = scmp.ne.s32.totalorder %s322, %s324
    %p331 = scmp.eq.s32.totalorder %s35, 1
    %p332 = por %p330, %p331
    %p333 = scmp.ne.s32.totalorder %s324, %s325
    %p334 = scmp.eq.s32.totalorder %s35, 0
    %p335 = por %p333, %p334
    %p336 = scmp.ne.s32.totalorder %s324, %s325
    %p337 = scmp.eq.s32.totalorder %s36, 1
    %p338 = por %p336, %p337
    %p340 = scmp.ne.s32.totalorder %s325, %s339
    %p341 = scmp.eq.s32.totalorder %s36, 0
    %p342 = por %p340, %p341
    %s344 = sadd.s32 %s343, 1
    %p347 = scmp.eq.s32.totalorder %s30, 1
    %p348 = scmp.ne.s32.totalorder %s343, %s345
    %p349 = scmp.eq.s32.totalorder %s30, 0
    %p350 = por %p348, %p349
    %p351 = scmp.ne.s32.totalorder %s343, %s345
    %p352 = scmp.eq.s32.totalorder %s35, 1
    %p353 = por %p351, %p352
    %p354 = scmp.ne.s32.totalorder %s345, %s346
    %p355 = scmp.eq.s32.totalorder %s35, 0
    %p356 = por %p354, %p355
    %p357 = scmp.ne.s32.totalorder %s345, %s346
    %p358 = scmp.eq.s32.totalorder %s36, 1
    %p359 = por %p357, %p358
    %p361 = scmp.ne.s32.totalorder %s346, %s360
    %p362 = scmp.eq.s32.totalorder %s36, 0
    %p363 = por %p361, %p362
    %s365 = sadd.s32 %s364, 1
    %p368 = scmp.eq.s32.totalorder %s30, 1
    %p369 = scmp.ne.s32.totalorder %s364, %s366
    %p370 = scmp.eq.s32.totalorder %s30, 0
    %p371 = por %p369, %p370
    %p372 = scmp.ne.s32.totalorder %s364, %s366
    %p373 = scmp.eq.s32.totalorder %s35, 1
    %p374 = por %p372, %p373
    %p375 = scmp.ne.s32.totalorder %s366, %s367
    %p376 = scmp.eq.s32.totalorder %s35, 0
    %p377 = por %p375, %p376
    %p378 = scmp.ne.s32.totalorder %s366, %s367
    %p379 = scmp.eq.s32.totalorder %s36, 1
    %p380 = por %p378, %p379
    %p382 = scmp.ne.s32.totalorder %s367, %s381
    %p383 = scmp.eq.s32.totalorder %s36, 0
    %p384 = por %p382, %p383
    %s386 = sadd.s32 %s385, 1
    %p389 = scmp.eq.s32.totalorder %s30, 1
    %p390 = scmp.ne.s32.totalorder %s385, %s387
    %p391 = scmp.eq.s32.totalorder %s30, 0
    %p392 = por %p390, %p391
    %p393 = scmp.ne.s32.totalorder %s385, %s387
    %p394 = scmp.eq.s32.totalorder %s35, 1
    %p395 = por %p393, %p394
    %p396 = scmp.ne.s32.totalorder %s387, %s388
    %p397 = scmp.eq.s32.totalorder %s35, 0
    %p398 = por %p396, %p397
    %p399 = scmp.ne.s32.totalorder %s387, %s388
    %p400 = scmp.eq.s32.totalorder %s36, 1
    %p401 = por %p399, %p400
    %p403 = scmp.ne.s32.totalorder %s388, %s402
    %p404 = scmp.eq.s32.totalorder %s36, 0
    %p405 = por %p403, %p404
    %s407 = sadd.s32 %s406, 1
    %p410 = scmp.eq.s32.totalorder %s30, 1
    %p411 = scmp.ne.s32.totalorder %s406, %s408
    %p412 = scmp.eq.s32.totalorder %s30, 0
    %p413 = por %p411, %p412
    %p414 = scmp.ne.s32.totalorder %s406, %s408
    %p415 = scmp.eq.s32.totalorder %s35, 1
    %p416 = por %p414, %p415
    %p417 = scmp.ne.s32.totalorder %s408, %s409
    %p418 = scmp.eq.s32.totalorder %s35, 0
    %p419 = por %p417, %p418
    %p420 = scmp.ne.s32.totalorder %s408, %s409
    %p421 = scmp.eq.s32.totalorder %s36, 1
    %p422 = por %p420, %p421
    %p424 = scmp.ne.s32.totalorder %s409, %s423
    %p425 = scmp.eq.s32.totalorder %s36, 0
    %p426 = por %p424, %p425
    %s428 = sadd.s32 %s427, 1
    %p431 = scmp.eq.s32.totalorder %s30, 1
    %p432 = scmp.ne.s32.totalorder %s427, %s429
    %p433 = scmp.eq.s32.totalorder %s30, 0
    %p434 = por %p432, %p433
    %p435 = scmp.ne.s32.totalorder %s427, %s429
    %p436 = scmp.eq.s32.totalorder %s35, 1
    %p437 = por %p435, %p436
    %p438 = scmp.ne.s32.totalorder %s429, %s430
    %p439 = scmp.eq.s32.totalorder %s35, 0
    %p440 = por %p438, %p439
    %p441 = scmp.ne.s32.totalorder %s429, %s430
    %p442 = scmp.eq.s32.totalorder %s36, 1
    %p443 = por %p441, %p442
    %p445 = scmp.ne.s32.totalorder %s430, %s444
    %p446 = scmp.eq.s32.totalorder %s36, 0
    %p447 = por %p445, %p446
    %s448 = ssub.s32 %s38, %s45
    %p449 = scmp.eq.s32.totalorder %s448, 0
    %s451 = sadd.s32 %s450, 1
    %s452 = scalar_select %p449, %s450, %s451
    %p455 = pneg %p449
    %p456 = scmp.eq.s32.totalorder %s30, 1
    %p457 = por %p455, %p456
    %p458 = scmp.ne.s32.totalorder %s450, %s453
    %p459 = scmp.eq.s32.totalorder %s30, 0
    %p460 = por %p458, %p459
    %p461 = scmp.ne.s32.totalorder %s450, %s453
    %p462 = scmp.eq.s32.totalorder %s35, 1
    %p463 = por %p461, %p462
    %p464 = scmp.ne.s32.totalorder %s453, %s454
    %p465 = scmp.eq.s32.totalorder %s35, 0
    %p466 = por %p464, %p465
    %p467 = scmp.ne.s32.totalorder %s453, %s454
    %p468 = scmp.eq.s32.totalorder %s36, 1
    %p469 = por %p467, %p468
    %p471 = scmp.ne.s32.totalorder %s454, %s470
    %p472 = scmp.eq.s32.totalorder %s36, 0
    %p473 = por %p471, %p472
    %s474 = ssub.s32 %s38, %s45
    %p475 = scmp.eq.s32.totalorder %s474, 0
    %s477 = sadd.s32 %s476, 1
    %s478 = scalar_select %p475, %s476, %s477
    %p481 = pneg %p475
    %p482 = scmp.eq.s32.totalorder %s30, 1
    %p483 = por %p481, %p482
    %p484 = scmp.ne.s32.totalorder %s476, %s479
    %p485 = scmp.eq.s32.totalorder %s30, 0
    %p486 = por %p484, %p485
    %p487 = scmp.ne.s32.totalorder %s476, %s479
    %p488 = scmp.eq.s32.totalorder %s35, 1
    %p489 = por %p487, %p488
    %p490 = scmp.ne.s32.totalorder %s479, %s480
    %p491 = scmp.eq.s32.totalorder %s35, 0
    %p492 = por %p490, %p491
    %p493 = scmp.ne.s32.totalorder %s479, %s480
    %p494 = scmp.eq.s32.totalorder %s36, 1
    %p495 = por %p493, %p494
    %p497 = scmp.ne.s32.totalorder %s480, %s496
    %p498 = scmp.eq.s32.totalorder %s36, 0
    %p499 = por %p497, %p498
    %s500 = ssub.s32 %s38, %s45
    %p501 = scmp.eq.s32.totalorder %s500, 0
    %s503 = sadd.s32 %s502, 1
    %s504 = scalar_select %p501, %s502, %s503
    %p507 = pneg %p501
    %p508 = scmp.eq.s32.totalorder %s30, 1
    %p509 = por %p507, %p508
    %p510 = scmp.ne.s32.totalorder %s502, %s505
    %p511 = scmp.eq.s32.totalorder %s30, 0
    %p512 = por %p510, %p511
    %p513 = scmp.ne.s32.totalorder %s502, %s505
    %p514 = scmp.eq.s32.totalorder %s35, 1
    %p515 = por %p513, %p514
    %p516 = scmp.ne.s32.totalorder %s505, %s506
    %p517 = scmp.eq.s32.totalorder %s35, 0
    %p518 = por %p516, %p517
    %p519 = scmp.ne.s32.totalorder %s505, %s506
    %p520 = scmp.eq.s32.totalorder %s36, 1
    %p521 = por %p519, %p520
    %p523 = scmp.ne.s32.totalorder %s506, %s522
    %p524 = scmp.eq.s32.totalorder %s36, 0
    %p525 = por %p523, %p524
    %s527 = sadd.s32 %s526, 1
    %p530 = scmp.eq.s32.totalorder %s30, 1
    %p531 = scmp.ne.s32.totalorder %s526, %s528
    %p532 = scmp.eq.s32.totalorder %s30, 0
    %p533 = por %p531, %p532
    %p534 = scmp.ne.s32.totalorder %s526, %s528
    %p535 = scmp.eq.s32.totalorder %s35, 1
    %p536 = por %p534, %p535
    %p537 = scmp.ne.s32.totalorder %s528, %s529
    %p538 = scmp.eq.s32.totalorder %s35, 0
    %p539 = por %p537, %p538
    %p540 = scmp.ne.s32.totalorder %s528, %s529
    %p541 = scmp.eq.s32.totalorder %s36, 1
    %p542 = por %p540, %p541
    %p544 = scmp.ne.s32.totalorder %s529, %s543
    %p545 = scmp.eq.s32.totalorder %s36, 0
    %p546 = por %p544, %p545
    %s548 = sadd.s32 %s547, 1
    %p551 = scmp.eq.s32.totalorder %s30, 1
    %p552 = scmp.ne.s32.totalorder %s547, %s549
    %p553 = scmp.eq.s32.totalorder %s30, 0
    %p554 = por %p552, %p553
    %p555 = scmp.ne.s32.totalorder %s547, %s549
    %p556 = scmp.eq.s32.totalorder %s35, 1
    %p557 = por %p555, %p556
    %p558 = scmp.ne.s32.totalorder %s549, %s550
    %p559 = scmp.eq.s32.totalorder %s35, 0
    %p560 = por %p558, %p559
    %p561 = scmp.ne.s32.totalorder %s549, %s550
    %p562 = scmp.eq.s32.totalorder %s36, 1
    %p563 = por %p561, %p562
    %p565 = scmp.ne.s32.totalorder %s550, %s564
    %p566 = scmp.eq.s32.totalorder %s36, 0
    %p567 = por %p565, %p566
    %s569 = sadd.s32 %s568, 1
    %p572 = scmp.eq.s32.totalorder %s30, 1
    %p573 = scmp.ne.s32.totalorder %s568, %s570
    %p574 = scmp.eq.s32.totalorder %s30, 0
    %p575 = por %p573, %p574
    %p576 = scmp.ne.s32.totalorder %s568, %s570
    %p577 = scmp.eq.s32.totalorder %s35, 1
    %p578 = por %p576, %p577
    %p579 = scmp.ne.s32.totalorder %s570, %s571
    %p580 = scmp.eq.s32.totalorder %s35, 0
    %p581 = por %p579, %p580
    %p582 = scmp.ne.s32.totalorder %s570, %s571
    %p583 = scmp.eq.s32.totalorder %s36, 1
    %p584 = por %p582, %p583
    %p586 = scmp.ne.s32.totalorder %s571, %s585
    %p587 = scmp.eq.s32.totalorder %s36, 0
    %p588 = por %p586, %p587
    %s589 = ssub.s32 %s37, %s49
    %p590 = scmp.eq.s32.totalorder %s589, 0
    %s592 = sadd.s32 %s591, 1
    %s593 = scalar_select %p590, %s591, %s592
    %p596 = pneg %p590
    %p597 = scmp.eq.s32.totalorder %s30, 1
    %p598 = por %p596, %p597
    %p599 = scmp.ne.s32.totalorder %s591, %s594
    %p600 = scmp.eq.s32.totalorder %s30, 0
    %p601 = por %p599, %p600
    %p602 = scmp.ne.s32.totalorder %s591, %s594
    %p603 = scmp.eq.s32.totalorder %s35, 1
    %p604 = por %p602, %p603
    %p605 = scmp.ne.s32.totalorder %s594, %s595
    %p606 = scmp.eq.s32.totalorder %s35, 0
    %p607 = por %p605, %p606
    %p608 = scmp.ne.s32.totalorder %s594, %s595
    %p609 = scmp.eq.s32.totalorder %s36, 1
    %p610 = por %p608, %p609
    %p612 = scmp.ne.s32.totalorder %s595, %s611
    %p613 = scmp.eq.s32.totalorder %s36, 0
    %p614 = por %p612, %p613
    %p615 = scmp.le.s32.totalorder 1, %s30
    %p616 = scmp.lt.s32.totalorder %s30, 3
    %p617 = pnand %p615, %p616
    %p618 = pneg %p617
    // Predicated region
    $region9: #{decoder_forward.3} parent=5 // pred_check
      _
    $region10: #{decoder_forward.3} parent=5 // pred_check_branch
      %620 = sbr.rel (%p617) target = $region12
    $region11: #{decoder_forward.3} parent=5 // pred_region
      %s621 = ssub.s32 %s30, 1
      // Predicated region
      $region13: #{decoder_forward.3} parent=11 // pred_check
        %p622 = pneg %p167
      $region14: #{decoder_forward.3} parent=11 // pred_check_branch
        %624 = sbr.rel (%p622) target = $region16
      $region15: #{decoder_forward.3} parent=11 // pred_region
        _
      $region16: #{decoder_forward.3} parent=11 // pred_fallthru
        _
      // Predicated region
      $region17: #{decoder_forward.3} parent=11 // pred_check
        %p625 = pneg %p188
      $region18: #{decoder_forward.3} parent=11 // pred_check_branch
        %627 = sbr.rel (%p625) target = $region20
      $region19: #{decoder_forward.3} parent=11 // pred_region
        _
      $region20: #{decoder_forward.3} parent=11 // pred_fallthru
        _
      // Predicated region
      $region21: #{decoder_forward.3} parent=11 // pred_check
        %p628 = pneg %p209
      $region22: #{decoder_forward.3} parent=11 // pred_check_branch
        %630 = sbr.rel (%p628) target = $region24
      $region23: #{decoder_forward.3} parent=11 // pred_region
        _
      $region24: #{decoder_forward.3} parent=11 // pred_fallthru
        _
      // Predicated region
      $region25: #{decoder_forward.3} parent=11 // pred_check
        %p631 = pneg %p230
      $region26: #{decoder_forward.3} parent=11 // pred_check_branch
        %633 = sbr.rel (%p631) target = $region28
      $region27: #{decoder_forward.3} parent=11 // pred_region
        _
      $region28: #{decoder_forward.3} parent=11 // pred_fallthru
        _
      // Predicated region
      $region29: #{decoder_forward.3} parent=11 // pred_check
        %p634 = pneg %p251
      $region30: #{decoder_forward.3} parent=11 // pred_check_branch
        %636 = sbr.rel (%p634) target = $region32
      $region31: #{decoder_forward.3} parent=11 // pred_region
        _
      $region32: #{decoder_forward.3} parent=11 // pred_fallthru
        _
      // Predicated region
      $region33: #{decoder_forward.3} parent=11 // pred_check
        %p637 = pneg %p272
      $region34: #{decoder_forward.3} parent=11 // pred_check_branch
        %639 = sbr.rel (%p637) target = $region36
      $region35: #{decoder_forward.3} parent=11 // pred_region
        _
      $region36: #{decoder_forward.3} parent=11 // pred_fallthru
        _
      // Predicated region
      $region37: #{decoder_forward.3} parent=11 // pred_check
        %p640 = pneg %p293
      $region38: #{decoder_forward.3} parent=11 // pred_check_branch
        %642 = sbr.rel (%p640) target = $region40
      $region39: #{decoder_forward.3} parent=11 // pred_region
        _
      $region40: #{decoder_forward.3} parent=11 // pred_fallthru
        _
      // Predicated region
      $region41: #{decoder_forward.3} parent=11 // pred_check
        %p643 = pneg %p314
      $region42: #{decoder_forward.3} parent=11 // pred_check_branch
        %645 = sbr.rel (%p643) target = $region44
      $region43: #{decoder_forward.3} parent=11 // pred_region
        _
      $region44: #{decoder_forward.3} parent=11 // pred_fallthru
        _
      // Predicated region
      $region45: #{decoder_forward.3} parent=11 // pred_check
        %p646 = pneg %p335
      $region46: #{decoder_forward.3} parent=11 // pred_check_branch
        %648 = sbr.rel (%p646) target = $region48
      $region47: #{decoder_forward.3} parent=11 // pred_region
        _
      $region48: #{decoder_forward.3} parent=11 // pred_fallthru
        _
      // Predicated region
      $region49: #{decoder_forward.3} parent=11 // pred_check
        %p649 = pneg %p356
      $region50: #{decoder_forward.3} parent=11 // pred_check_branch
        %651 = sbr.rel (%p649) target = $region52
      $region51: #{decoder_forward.3} parent=11 // pred_region
        _
      $region52: #{decoder_forward.3} parent=11 // pred_fallthru
        _
      // Predicated region
      $region53: #{decoder_forward.3} parent=11 // pred_check
        %p652 = pneg %p377
      $region54: #{decoder_forward.3} parent=11 // pred_check_branch
        %654 = sbr.rel (%p652) target = $region56
      $region55: #{decoder_forward.3} parent=11 // pred_region
        _
      $region56: #{decoder_forward.3} parent=11 // pred_fallthru
        _
      // Predicated region
      $region57: #{decoder_forward.3} parent=11 // pred_check
        %p655 = pneg %p398
      $region58: #{decoder_forward.3} parent=11 // pred_check_branch
        %657 = sbr.rel (%p655) target = $region60
      $region59: #{decoder_forward.3} parent=11 // pred_region
        _
      $region60: #{decoder_forward.3} parent=11 // pred_fallthru
        _
      // Predicated region
      $region61: #{decoder_forward.3} parent=11 // pred_check
        %p658 = pneg %p419
      $region62: #{decoder_forward.3} parent=11 // pred_check_branch
        %660 = sbr.rel (%p658) target = $region64
      $region63: #{decoder_forward.3} parent=11 // pred_region
        _
      $region64: #{decoder_forward.3} parent=11 // pred_fallthru
        _
      // Predicated region
      $region65: #{decoder_forward.3} parent=11 // pred_check
        %p661 = pneg %p440
      $region66: #{decoder_forward.3} parent=11 // pred_check_branch
        %663 = sbr.rel (%p661) target = $region68
      $region67: #{decoder_forward.3} parent=11 // pred_region
        _
      $region68: #{decoder_forward.3} parent=11 // pred_fallthru
        _
      // Predicated region
      $region69: #{decoder_forward.3} parent=11 // pred_check
        %p664 = pneg %p466
      $region70: #{decoder_forward.3} parent=11 // pred_check_branch
        %666 = sbr.rel (%p664) target = $region72
      $region71: #{decoder_forward.3} parent=11 // pred_region
        %p667 = scmp.lt.s32.totalorder %s40, 0
        %s668 = scalar_select %p667, %s40, 0
        %s669 = smul.addr %s668, 4
        %s670 = scalar_lea.vmem %s18, %s669
      $region72: #{decoder_forward.3} parent=11 // pred_fallthru
        _
      // Predicated region
      $region73: #{decoder_forward.3} parent=11 // pred_check
        %p671 = pneg %p492
      $region74: #{decoder_forward.3} parent=11 // pred_check_branch
        %673 = sbr.rel (%p671) target = $region76
      $region75: #{decoder_forward.3} parent=11 // pred_region
        %p674 = scmp.lt.s32.totalorder %s40, 0
        %s675 = scalar_select %p674, %s40, 0
        %s676 = scalar_lea.vmem %s19, %s675
      $region76: #{decoder_forward.3} parent=11 // pred_fallthru
        _
      // Predicated region
      $region77: #{decoder_forward.3} parent=11 // pred_check
        %p677 = pneg %p518
      $region78: #{decoder_forward.3} parent=11 // pred_check_branch
        %679 = sbr.rel (%p677) target = $region80
      $region79: #{decoder_forward.3} parent=11 // pred_region
        %s680 = smul.u32 8, %s40
        %p681 = scmp.lt.s32.totalorder %s680, 7
        %s682 = scalar_select %p681, %s680, 7
        %s683 = smul.addr %s682, 4
        %s684 = scalar_lea.vmem %s20, %s683
        %s685 = smul.u32 8, %s40
      $region80: #{decoder_forward.3} parent=11 // pred_fallthru
        _
      // Predicated region
      $region81: #{decoder_forward.3} parent=11 // pred_check
        %p686 = pneg %p539
      $region82: #{decoder_forward.3} parent=11 // pred_check_branch
        %688 = sbr.rel (%p686) target = $region84
      $region83: #{decoder_forward.3} parent=11 // pred_region
        _
      $region84: #{decoder_forward.3} parent=11 // pred_fallthru
        _
      // Predicated region
      $region85: #{decoder_forward.3} parent=11 // pred_check
        %p689 = pneg %p560
      $region86: #{decoder_forward.3} parent=11 // pred_check_branch
        %691 = sbr.rel (%p689) target = $region88
      $region87: #{decoder_forward.3} parent=11 // pred_region
        _
      $region88: #{decoder_forward.3} parent=11 // pred_fallthru
        _
      // Predicated region
      $region89: #{decoder_forward.3} parent=11 // pred_check
        %p692 = pneg %p581
      $region90: #{decoder_forward.3} parent=11 // pred_check_branch
        %694 = sbr.rel (%p692) target = $region92
      $region91: #{decoder_forward.3} parent=11 // pred_region
        _
      $region92: #{decoder_forward.3} parent=11 // pred_fallthru
        _
    $region12: #{decoder_forward.3} parent=5 // pred_fallthru
      _
    %p695 = scmp.lt.s32.totalorder %s30, 2
    // Predicated region
    $region93: #{decoder_forward.3} parent=5 // pred_check
      %p696 = pneg %p695
    $region94: #{decoder_forward.3} parent=5 // pred_check_branch
      %698 = sbr.rel (%p696) target = $region96
    $region95: #{decoder_forward.3} parent=5 // pred_region
      // Predicated region
      $region97: #{decoder_forward.3} parent=95 // pred_check
        %p699 = pneg %p62
      $region98: #{decoder_forward.3} parent=95 // pred_check_branch
        %701 = sbr.rel (%p699) target = $region100
      $region99: #{decoder_forward.3} parent=95 // pred_region
        %p702 = scmp.lt.s32.totalorder %s37, 1
        %s703 = scalar_select %p702, %s37, 1
        %s704 = smul.addr %s703, 4
        %s705 = scalar_lea.vmem %s0, %s704
      $region100: #{decoder_forward.3} parent=95 // pred_fallthru
        _
      // Predicated region
      $region101: #{decoder_forward.3} parent=95 // pred_check
        %p706 = pneg %p88
      $region102: #{decoder_forward.3} parent=95 // pred_check_branch
        %708 = sbr.rel (%p706) target = $region104
      $region103: #{decoder_forward.3} parent=95 // pred_region
        %p709 = scmp.lt.s32.totalorder %s37, 1
        %s710 = scalar_select %p709, %s37, 1
        %s711 = smul.addr %s710, 4
        %s712 = scalar_lea.vmem %s1, %s711
      $region104: #{decoder_forward.3} parent=95 // pred_fallthru
        _
      // Predicated region
      $region105: #{decoder_forward.3} parent=95 // pred_check
        %p713 = pneg %p114
      $region106: #{decoder_forward.3} parent=95 // pred_check_branch
        %715 = sbr.rel (%p713) target = $region108
      $region107: #{decoder_forward.3} parent=95 // pred_region
        %p716 = scmp.lt.s32.totalorder %s37, 1
        %s717 = scalar_select %p716, %s37, 1
        %s718 = scalar_lea.vmem %s2, %s717
      $region108: #{decoder_forward.3} parent=95 // pred_fallthru
        _
      // Predicated region
      $region109: #{decoder_forward.3} parent=95 // pred_check
        %p719 = pneg %p140
      $region110: #{decoder_forward.3} parent=95 // pred_check_branch
        %721 = sbr.rel (%p719) target = $region112
      $region111: #{decoder_forward.3} parent=95 // pred_region
        %p722 = scmp.lt.s32.totalorder %s37, 1
        %s723 = scalar_select %p722, %s37, 1
        %s724 = scalar_lea.vmem %s3, %s723
      $region112: #{decoder_forward.3} parent=95 // pred_fallthru
        _
    $region96: #{decoder_forward.3} parent=5 // pred_fallthru
      _
    %p725 = scmp.le.s32.totalorder 1, %s30
    %p726 = scmp.lt.s32.totalorder %s30, 3
    %p727 = pnand %p725, %p726
    %p728 = pneg %p727
    // Predicated region
    $region113: #{decoder_forward.3} parent=5 // pred_check
      _
    $region114: #{decoder_forward.3} parent=5 // pred_check_branch
      %730 = sbr.rel (%p727) target = $region116
    $region115: #{decoder_forward.3} parent=5 // pred_region
      %s731 = ssub.s32 %s30, 1
      %p732 = scmp.lt.s32.totalorder %s39, 1
      %s733 = scalar_select %p732, %s39, 1
      %s734 = smul.addr %s733, 4
      %s735 = scalar_lea.vmem %s0, %s734
      %p736 = pneg %p68
      %p737 = pneg %p65
      %p738 = scmp.lt.s32.totalorder %s39, 1
      %s739 = scalar_select %p738, %s39, 1
      %s740 = smul.addr %s739, 4
      %s741 = scalar_lea.vmem %s1, %s740
      %p742 = pneg %p94
      %p743 = pneg %p91
      %p744 = scmp.lt.s32.totalorder %s39, 1
      %s745 = scalar_select %p744, %s39, 1
      %s746 = scalar_lea.vmem %s2, %s745
      %p747 = pneg %p120
      %p748 = pneg %p117
      %p749 = scmp.lt.s32.totalorder %s39, 1
      %s750 = scalar_select %p749, %s39, 1
      %s751 = scalar_lea.vmem %s3, %s750
      %p752 = pneg %p146
      %p753 = pneg %p143
      %p754 = pneg %p167
      %p755 = pneg %p164
      %p756 = pneg %p188
      %p757 = pneg %p185
      %p758 = pneg %p209
      %p759 = pneg %p206
      %p760 = pneg %p230
      %p761 = pneg %p227
      %p762 = pneg %p251
      %p763 = pneg %p248
      %p764 = pneg %p272
      %p765 = pneg %p269
      %p766 = pneg %p293
      %p767 = pneg %p290
      %p768 = pneg %p314
      %p769 = pneg %p311
      %p770 = pneg %p335
      %p771 = pneg %p332
      %p772 = pneg %p356
      %p773 = pneg %p353
      %p774 = pneg %p377
      %p775 = pneg %p374
      %p776 = pneg %p398
      %p777 = pneg %p395
      %p778 = pneg %p419
      %p779 = pneg %p416
      %p780 = pneg %p440
      %p781 = pneg %p437
      %p782 = scmp.lt.s32.totalorder %s40, 0
      %s783 = scalar_select %p782, %s40, 0
      %s784 = smul.addr %s783, 4
      %s785 = scalar_lea.vmem %s18, %s784
      %p786 = pneg %p466
      %p787 = pneg %p463
      %p788 = scmp.lt.s32.totalorder %s40, 0
      %s789 = scalar_select %p788, %s40, 0
      %s790 = scalar_lea.vmem %s19, %s789
      %p791 = pneg %p492
      %p792 = pneg %p489
      %s793 = smul.u32 8, %s40
      %p794 = scmp.lt.s32.totalorder %s793, 7
      %s795 = scalar_select %p794, %s793, 7
      %s796 = smul.addr %s795, 4
      %s797 = scalar_lea.vmem %s20, %s796
      %p798 = pneg %p518
      %p799 = pneg %p515
      %p800 = pneg %p539
      %p801 = pneg %p536
      %p802 = pneg %p560
      %p803 = pneg %p557
      %p804 = pneg %p581
      %p805 = pneg %p578
      %p806 = pneg %p607
      %p807 = pneg %p604
      %p808 = scmp.lt.s32.totalorder %s39, 1
      %s809 = scalar_select %p808, %s39, 1
      %s810 = smul.addr %s809, 4
      %s811 = scalar_lea.vmem %s24, %s810
      %p812 = scmp.lt.s32.totalorder %s39, 1
      %s813 = scalar_select %p812, %s39, 1
      %s814 = smul.addr %s813, 4
      %s815 = scalar_lea.vmem %s0, %s814
      %p816 = scmp.lt.s32.totalorder %s39, 1
      %s817 = scalar_select %p816, %s39, 1
      %s818 = smul.addr %s817, 4
      %s819 = scalar_lea.vmem %s1, %s818
      %p820 = scmp.lt.s32.totalorder %s39, 1
      %s821 = scalar_select %p820, %s39, 1
      %s822 = scalar_lea.vmem %s2, %s821
      %p823 = scmp.lt.s32.totalorder %s39, 1
      %s824 = scalar_select %p823, %s39, 1
      %s825 = scalar_lea.vmem %s3, %s824
      %p826 = scmp.lt.s32.totalorder %s40, 0
      %s827 = scalar_select %p826, %s40, 0
      %s828 = smul.addr %s827, 4
      %s829 = scalar_lea.vmem %s18, %s828
      %p830 = scmp.lt.s32.totalorder %s40, 0
      %s831 = scalar_select %p830, %s40, 0
      %s832 = scalar_lea.vmem %s19, %s831
      %s833 = smul.u32 8, %s40
      %p834 = scmp.lt.s32.totalorder %s833, 7
      %s835 = scalar_select %p834, %s833, 7
      %s836 = smul.addr %s835, 4
      %s837 = scalar_lea.vmem %s20, %s836
      %s838 = smul.u32 8, %s40
      %p839 = scmp.lt.s32.totalorder %s39, 1
      %s840 = scalar_select %p839, %s39, 1
      %s841 = smul.addr %s840, 4
      %s842 = scalar_lea.vmem %s24, %s841
      %p844 = scmp.eq.s32.totalorder %s40, 0
      // Predicated region
      $region117: #{decoder_forward.3} parent=115 // pred_check
        %p845 = pneg %p844
      $region118: #{decoder_forward.3} parent=115 // pred_check_branch
        %847 = sbr.rel (%p845) target = $region120
      $region119: #{decoder_forward.3} parent=115 // pred_region
        %v848 = vld [vmem:[%s815] sm:$0xf]
        %v849 = vunpack.c.l.bf16 %v848
        %v850 = vlaneseq
        %v851 = vshrl.u32 %v850, 7
        %v852 = vlaneseq
        %v853 = vand.u32 %v852, 127
        %vm854 = vcmp.le.s32.totalorder %v853, %v851
        %v855 = vld [vmem:[%s822] sm:$0x1]
        %vm856 = vcmp.gt.f32.partialorder %v855, 0.5
        %v857 = vsel %vm856, 1, 0
        %v858 = vperm.slane %v857, 0
        %vm859 = vcmp.eq.s32.totalorder %v858, 1
        %vm860 = vmand %vm854, %vm859
        %v861 = vld [vmem:[%s825] sm:$0x1]
        %vm862 = vcmp.gt.f32.partialorder %v861, 0.5
        %v863 = vld [vmem:[%s4] sm:$0xf]
        %v864 = vld [vmem:[%s4 + $0x4] sm:$0xf]
        %v865 = vld [vmem:[%s4 + $0x8] sm:$0xf]
        %v866 = vld [vmem:[%s4 + $0xc] sm:$0xf]
        %v867 = vld [vmem:[%s5] sm:$0x1]
        %v869 = vperm.slane %v867, 0
        %v875 = vunpack.c.l.b16 %v863
        %v876 = vunpack.c.l.b16 %v864
        %v877 = vunpack.c.l.b16 %v865
        %v878 = vunpack.c.l.b16 %v866
        %v879 = vpack.c.b16 %v876, %v875
        %v880 = vpack.c.b16 %v878, %v877
        %vm883 = vcmask 261120
        %v885 = vsel %vm883, %v848, 0
        %887 = vmatpush.bf16.msra.mxu0 0
        %888 = vmatpush.bf16.msra.mxu0 0
        %889 = vmatpush.bf16.msra.mxu0 0
        %890 = vmatpush.bf16.msra.mxu0 0
        %891 = vmatpush.bf16.msra.mxu0 0
        %892 = vmatpush.bf16.msra.mxu0 0
        %893 = vmatpush.bf16.msra.mxu0 %v880
        %894 = vmatpush.bf16.msra.mxu0 %v879
        %895 = vmatmul.bf16.gmra.mxu0 %v885
        %v896 = vpop.f32.mrf.mxu0
        %v897 = vadd.f32 %v869, %v896
        %v898 = vpop.f32.mrf.mxu0
        %899 = vdwg.mxu0
        %v900 = vpack.c.bf16 %v897, %v897
        %902 = vrot.lane.b32.xlu0 %v900, 96
        %v903 = vpop.permute.xlu0 %902
        %vm904 = vcmask 64512
        %v906 = vsel %vm904, %v900, 0
        %v909 = vsel %vm904, %v903, 0
        %911 = vmatpush.bf16.xpose.msra.mxu0 0
        %912 = vmatpush.bf16.xpose.msra.mxu0 0
        %913 = vmatpush.bf16.xpose.msra.mxu0 0
        %914 = vmatpush.bf16.xpose.msra.mxu0 0
        %915 = vmatpush.bf16.xpose.msra.mxu0 0
        %916 = vmatpush.bf16.xpose.msra.mxu0 0
        %917 = vmatpush.bf16.xpose.msra.mxu0 0
        %918 = vmatpush.bf16.xpose.msra.mxu0 %v909
        %919 = vmatmul.bf16.gmra.mxu0 %v906
        %v920 = vpop.f32.mrf.mxu0
        %v921 = vadd.f32 0.0, %v920
        %v922 = vpop.f32.mrf.mxu0
        %923 = vdwg.mxu0
        %v924 = vmul.f32 %v921, 0.35355338
        %v925 = vsel %vm860, %v924, -1e+10
        %v926 = vsel %vm904, %v925, -inf
        %927 = vmax.xlane.f32.xlu0 %v926
        %v928 = vpop.xlane.xlu0 %927
        %v929 = vsub.f32 %v925, %v928
        %v930 = vmul.f32 %v929, 1.442695
        %v931 = vpow.pop %v930
        %v932 = vsel %vm904, %v931, 0.0
        %933 = vadd.xlane.f32.xlu0 %v932
        %v934 = vpop.xlane.xlu0 %933
        %v935 = vrcp.pop %v934
        %v936 = vmul.f32 %v931, %v935
        %v937 = vpack.c.bf16 %v936, %v936
        %938 = vrot.lane.b32.xlu0 %v900, 64
        %v939 = vpop.permute.xlu0 %938
        %v941 = vsel %vm904, %v937, 0
        %vm943 = vcmask 1043456
        %v945 = vsel %vm943, %v939, 0
        %947 = vmatpush.bf16.msra.mxu0 0
        %948 = vmatpush.bf16.msra.mxu0 0
        %949 = vmatpush.bf16.msra.mxu0 0
        %950 = vmatpush.bf16.msra.mxu0 0
        %951 = vmatpush.bf16.msra.mxu0 0
        %952 = vmatpush.bf16.msra.mxu0 0
        %953 = vmatpush.bf16.msra.mxu0 0
        %954 = vmatpush.bf16.msra.mxu0 %v945
        %955 = vmatmul.bf16.gmra.mxu0 %v941
        %v956 = vpop.f32.mrf.mxu0
        %v957 = vadd.f32 0.0, %v956
        %v958 = vpop.f32.mrf.mxu0
        %959 = vdwg.mxu0
        %960 = vst.msk [vmem:[#allocation3] sm:$0xff] %vm904, %v957
        %961 = vrot.lane.b32.xlu0 %v900, 120
        %v962 = vpop.permute.xlu0 %961
        %963 = vrot.lane.b32.xlu0 %v900, 88
        %v964 = vpop.permute.xlu0 %963
        %v966 = vsel %vm904, %v962, 0
        %v969 = vsel %vm904, %v964, 0
        %971 = vmatpush.bf16.xpose.msra.mxu0 0
        %972 = vmatpush.bf16.xpose.msra.mxu0 0
        %973 = vmatpush.bf16.xpose.msra.mxu0 0
        %974 = vmatpush.bf16.xpose.msra.mxu0 0
        %975 = vmatpush.bf16.xpose.msra.mxu0 0
        %976 = vmatpush.bf16.xpose.msra.mxu0 0
        %977 = vmatpush.bf16.xpose.msra.mxu0 0
        %978 = vmatpush.bf16.xpose.msra.mxu0 %v969
        %979 = vmatmul.bf16.gmra.mxu0 %v966
        %v980 = vpop.f32.mrf.mxu0
        %v981 = vadd.f32 0.0, %v980
        %v982 = vpop.f32.mrf.mxu0
        %983 = vdwg.mxu0
        %v984 = vmul.f32 %v981, 0.35355338
        %v985 = vsel %vm860, %v984, -1e+10
        %v986 = vsel %vm904, %v985, -inf
        %987 = vmax.xlane.f32.xlu0 %v986
        %v988 = vpop.xlane.xlu0 %987
        %v989 = vsub.f32 %v985, %v988
        %v990 = vmul.f32 %v989, 1.442695
        %v991 = vpow.pop %v990
        %v992 = vsel %vm904, %v991, 0.0
        %993 = vadd.xlane.f32.xlu0 %v992
        %v994 = vpop.xlane.xlu0 %993
        %v995 = vrcp.pop %v994
        %v996 = vmul.f32 %v991, %v995
        %v997 = vpack.c.bf16 %v996, %v996
        %998 = vrot.lane.b32.xlu0 %v900, 56
        %v999 = vpop.permute.xlu0 %998
        %v1001 = vsel %vm904, %v997, 0
        %v1004 = vsel %vm943, %v999, 0
        %1006 = vmatpush.bf16.msra.mxu0 0
        %1007 = vmatpush.bf16.msra.mxu0 0
        %1008 = vmatpush.bf16.msra.mxu0 0
        %1009 = vmatpush.bf16.msra.mxu0 0
        %1010 = vmatpush.bf16.msra.mxu0 0
        %1011 = vmatpush.bf16.msra.mxu0 0
        %1012 = vmatpush.bf16.msra.mxu0 0
        %1013 = vmatpush.bf16.msra.mxu0 %v1004
        %1014 = vmatmul.bf16.gmra.mxu0 %v1001
        %v1015 = vpop.f32.mrf.mxu0
        %v1016 = vadd.f32 0.0, %v1015
        %v1017 = vpop.f32.mrf.mxu0
        %1018 = vdwg.mxu0
        %1020 = vrot.lane.b32.xlu0 %v1016, 8
        %v1021 = vpop.permute.xlu0 %1020
        %vm1023 = vcmask 130112
        %1024 = vst.msk [vmem:[#allocation3] sm:$0xff] %vm1023, %v1021
        %1025 = vrot.lane.b32.xlu0 %v900, 112
        %v1026 = vpop.permute.xlu0 %1025
        %1027 = vrot.lane.b32.xlu0 %v900, 80
        %v1028 = vpop.permute.xlu0 %1027
        %v1030 = vsel %vm904, %v1026, 0
        %v1033 = vsel %vm904, %v1028, 0
        %1035 = vmatpush.bf16.xpose.msra.mxu0 0
        %1036 = vmatpush.bf16.xpose.msra.mxu0 0
        %1037 = vmatpush.bf16.xpose.msra.mxu0 0
        %1038 = vmatpush.bf16.xpose.msra.mxu0 0
        %1039 = vmatpush.bf16.xpose.msra.mxu0 0
        %1040 = vmatpush.bf16.xpose.msra.mxu0 0
        %1041 = vmatpush.bf16.xpose.msra.mxu0 0
        %1042 = vmatpush.bf16.xpose.msra.mxu0 %v1033
        %1043 = vmatmul.bf16.gmra.mxu0 %v1030
        %v1044 = vpop.f32.mrf.mxu0
        %v1045 = vadd.f32 0.0, %v1044
        %v1046 = vpop.f32.mrf.mxu0
        %1047 = vdwg.mxu0
        %v1048 = vmul.f32 %v1045, 0.35355338
        %v1049 = vsel %vm860, %v1048, -1e+10
        %v1050 = vsel %vm904, %v1049, -inf
        %1051 = vmax.xlane.f32.xlu0 %v1050
        %v1052 = vpop.xlane.xlu0 %1051
        %v1053 = vsub.f32 %v1049, %v1052
        %v1054 = vmul.f32 %v1053, 1.442695
        %v1055 = vpow.pop %v1054
        %v1056 = vsel %vm904, %v1055, 0.0
        %1057 = vadd.xlane.f32.xlu0 %v1056
        %v1058 = vpop.xlane.xlu0 %1057
        %v1059 = vrcp.pop %v1058
        %v1060 = vmul.f32 %v1055, %v1059
        %v1061 = vpack.c.bf16 %v1060, %v1060
        %1062 = vrot.lane.b32.xlu0 %v900, 48
        %v1063 = vpop.permute.xlu0 %1062
        %v1065 = vsel %vm904, %v1061, 0
        %v1068 = vsel %vm943, %v1063, 0
        %1070 = vmatpush.bf16.msra.mxu0 0
        %1071 = vmatpush.bf16.msra.mxu0 0
        %1072 = vmatpush.bf16.msra.mxu0 0
        %1073 = vmatpush.bf16.msra.mxu0 0
        %1074 = vmatpush.bf16.msra.mxu0 0
        %1075 = vmatpush.bf16.msra.mxu0 0
        %1076 = vmatpush.bf16.msra.mxu0 0
        %1077 = vmatpush.bf16.msra.mxu0 %v1068
        %1078 = vmatmul.bf16.gmra.mxu0 %v1065
        %v1079 = vpop.f32.mrf.mxu0
        %v1080 = vadd.f32 0.0, %v1079
        %v1081 = vpop.f32.mrf.mxu0
        %1082 = vdwg.mxu0
        %1084 = vrot.lane.b32.xlu0 %v1080, 16
        %v1085 = vpop.permute.xlu0 %1084
        %vm1087 = vcmask 195712
        %1088 = vst.msk [vmem:[#allocation3] sm:$0xff] %vm1087, %v1085
        %1089 = vrot.lane.b32.xlu0 %v900, 104
        %v1090 = vpop.permute.xlu0 %1089
        %1091 = vrot.lane.b32.xlu0 %v900, 72
        %v1092 = vpop.permute.xlu0 %1091
        %v1094 = vsel %vm904, %v1090, 0
        %v1097 = vsel %vm904, %v1092, 0
        %1099 = vmatpush.bf16.xpose.msra.mxu0 0
        %1100 = vmatpush.bf16.xpose.msra.mxu0 0
        %1101 = vmatpush.bf16.xpose.msra.mxu0 0
        %1102 = vmatpush.bf16.xpose.msra.mxu0 0
        %1103 = vmatpush.bf16.xpose.msra.mxu0 0
        %1104 = vmatpush.bf16.xpose.msra.mxu0 0
        %1105 = vmatpush.bf16.xpose.msra.mxu0 0
        %1106 = vmatpush.bf16.xpose.msra.mxu0 %v1097
        %1107 = vmatmul.bf16.gmra.mxu0 %v1094
        %v1108 = vpop.f32.mrf.mxu0
        %v1109 = vadd.f32 0.0, %v1108
        %v1110 = vpop.f32.mrf.mxu0
        %1111 = vdwg.mxu0
        %v1112 = vmul.f32 %v1109, 0.35355338
        %v1113 = vsel %vm860, %v1112, -1e+10
        %v1114 = vsel %vm904, %v1113, -inf
        %1115 = vmax.xlane.f32.xlu0 %v1114
        %v1116 = vpop.xlane.xlu0 %1115
        %v1117 = vsub.f32 %v1113, %v1116
        %v1118 = vmul.f32 %v1117, 1.442695
        %v1119 = vpow.pop %v1118
        %v1120 = vsel %vm904, %v1119, 0.0
        %1121 = vadd.xlane.f32.xlu0 %v1120
        %v1122 = vpop.xlane.xlu0 %1121
        %v1123 = vrcp.pop %v1122
        %v1124 = vmul.f32 %v1119, %v1123
        %v1125 = vpack.c.bf16 %v1124, %v1124
        %1126 = vrot.lane.b32.xlu0 %v900, 40
        %v1127 = vpop.permute.xlu0 %1126
        %v1129 = vsel %vm904, %v1125, 0
        %v1132 = vsel %vm943, %v1127, 0
        %1134 = vmatpush.bf16.msra.mxu0 0
        %1135 = vmatpush.bf16.msra.mxu0 0
        %1136 = vmatpush.bf16.msra.mxu0 0
        %1137 = vmatpush.bf16.msra.mxu0 0
        %1138 = vmatpush.bf16.msra.mxu0 0
        %1139 = vmatpush.bf16.msra.mxu0 0
        %1140 = vmatpush.bf16.msra.mxu0 0
        %1141 = vmatpush.bf16.msra.mxu0 %v1132
        %1142 = vmatmul.bf16.gmra.mxu0 %v1129
        %v1143 = vpop.f32.mrf.mxu0
        %v1144 = vadd.f32 0.0, %v1143
        %v1145 = vpop.f32.mrf.mxu0
        %1146 = vdwg.mxu0
        %1148 = vrot.lane.b32.xlu0 %v1144, 24
        %v1149 = vpop.permute.xlu0 %1148
        %vm1151 = vcmask 261312
        %1152 = vst.msk [vmem:[#allocation3] sm:$0xff] %vm1151, %v1149
        %v1153 = vld [vmem:[#allocation3] sm:$0xff]
        %v1154 = vld [vmem:[%s6] sm:$0xf]
        %v1155 = vld [vmem:[%s6 + $0x4] sm:$0xf]
        %v1156 = vld [vmem:[%s6 + $0x8] sm:$0xf]
        %v1157 = vld [vmem:[%s6 + $0xc] sm:$0xf]
        %v1158 = vpack.c.bf16 %v1153, %v1153
        %v1159 = vld [vmem:[%s7] sm:$0x1]
        %v1161 = vperm.slane %v1159, 0
        %v1167 = vunpack.c.l.b16 %v1154
        %v1168 = vunpack.c.l.b16 %v1155
        %v1169 = vunpack.c.l.b16 %v1156
        %v1170 = vunpack.c.l.b16 %v1157
        %v1171 = vpack.c.b16 %v1168, %v1167
        %v1172 = vpack.c.b16 %v1170, %v1169
        %v1176 = vsel %vm883, %v1158, 0
        %1178 = vmatpush.bf16.msra.mxu0 0
        %1179 = vmatpush.bf16.msra.mxu0 0
        %1180 = vmatpush.bf16.msra.mxu0 0
        %1181 = vmatpush.bf16.msra.mxu0 0
        %1182 = vmatpush.bf16.msra.mxu0 0
        %1183 = vmatpush.bf16.msra.mxu0 0
        %1184 = vmatpush.bf16.msra.mxu0 %v1172
        %1185 = vmatpush.bf16.msra.mxu0 %v1171
        %1186 = vmatmul.bf16.gmra.mxu0 %v1176
        %v1187 = vpop.f32.mrf.mxu0
        %v1188 = vadd.f32 %v1161, %v1187
        %v1189 = vpop.f32.mrf.mxu0
        %1190 = vdwg.mxu0
        %v1191 = vadd.f32 %v849, %v1188
        %v1192 = vld [vmem:[%s8] sm:$0x1]
        %v1193 = vld [vmem:[%s9] sm:$0x1]
        %v1194 = vsel %vm883, %v1191, 0.0
        %1195 = vadd.xlane.f32.xlu0 %v1194
        %v1196 = vpop.xlane.xlu0 %1195
        %v1197 = vrcp.pop 32.0
        %v1198 = vmul.f32 32.0, %v1197
        %v1199 = vsub.f32 1.0, %v1198
        %v1200 = vmul.f32 %v1197, %v1199
        %v1201 = vadd.f32 %v1197, %v1200
        %vm1202 = vweird.f32 %v1197
        %v1203 = vsel %vm1202, %v1197, %v1201
        %v1204 = vmul.f32 %v1196, %v1203
        %v1205 = vsub.f32 %v1191, %v1204
        %v1206 = vmul.f32 %v1205, %v1205
        %v1207 = vsel %vm883, %v1206, 0.0
        %1208 = vadd.xlane.f32.xlu0 %v1207
        %v1209 = vpop.xlane.xlu0 %1208
        %v1210 = vmul.f32 %v1209, %v1203
        %v1211 = vadd.f32 %v1210, 1e-05
        %v1212 = vrsqrt.pop %v1211
        %v1213 = vmul.f32 %v1212, %v1211
        %v1214 = vmul.f32 %v1213, %v1212
        %v1215 = vmul.f32 0.5, %v1214
        %v1216 = vsub.f32 1.5, %v1215
        %v1217 = vmul.f32 %v1212, %v1216
        %vm1218 = vweird.f32 %v1211
        %vm1219 = vweird.f32 %v1212
        %vm1220 = vmor %vm1218, %vm1219
        %v1221 = vsel %vm1220, %v1212, %v1217
        %v1222 = vmul.f32 %v1205, %v1221
        %v1224 = vperm.slane %v1192, 0
        %v1226 = vmul.f32 %v1222, %v1224
        %v1228 = vperm.slane %v1193, 0
        %v1230 = vadd.f32 %v1226, %v1228
        %v1231 = vld [vmem:[%s10] sm:$0xf]
        %v1232 = vld [vmem:[%s10 + $0x4] sm:$0xf]
        %v1233 = vld [vmem:[%s10 + $0x8] sm:$0xf]
        %v1234 = vld [vmem:[%s10 + $0xc] sm:$0xf]
        %v1235 = vpack.c.bf16 %v1230, %v1230
        %v1236 = vld [vmem:[%s11] sm:$0x1]
        %v1238 = vperm.slane %v1236, 0
        %v1244 = vunpack.c.l.b16 %v1231
        %v1245 = vunpack.c.l.b16 %v1232
        %v1246 = vunpack.c.l.b16 %v1233
        %v1247 = vunpack.c.l.b16 %v1234
        %v1248 = vpack.c.b16 %v1245, %v1244
        %v1249 = vpack.c.b16 %v1247, %v1246
        %v1253 = vsel %vm883, %v1235, 0
        %1255 = vmatpush.bf16.msra.mxu0 0
        %1256 = vmatpush.bf16.msra.mxu0 0
        %1257 = vmatpush.bf16.msra.mxu0 0
        %1258 = vmatpush.bf16.msra.mxu0 0
        %1259 = vmatpush.bf16.msra.mxu0 0
        %1260 = vmatpush.bf16.msra.mxu0 0
        %1261 = vmatpush.bf16.msra.mxu0 %v1249
        %1262 = vmatpush.bf16.msra.mxu0 %v1248
        %1263 = vmatmul.bf16.gmra.mxu0 %v1253
        %v1264 = vpop.f32.mrf.mxu0
        %v1265 = vadd.f32 %v1238, %v1264
        %v1266 = vpop.f32.mrf.mxu0
        %1267 = vdwg.mxu0
        %v1268 = vld [vmem:[%s819] sm:$0xf]
        %v1269 = vld [vmem:[%s12] sm:$0xf]
        %v1270 = vld [vmem:[%s12 + $0x4] sm:$0xf]
        %v1271 = vld [vmem:[%s12 + $0x8] sm:$0xf]
        %v1272 = vld [vmem:[%s12 + $0xc] sm:$0xf]
        %v1273 = vld [vmem:[%s13] sm:$0x1]
        %v1275 = vperm.slane %v1273, 0
        %v1281 = vunpack.c.l.b16 %v1269
        %v1282 = vunpack.c.l.b16 %v1270
        %v1283 = vunpack.c.l.b16 %v1271
        %v1284 = vunpack.c.l.b16 %v1272
        %v1285 = vpack.c.b16 %v1282, %v1281
        %v1286 = vpack.c.b16 %v1284, %v1283
        %v1290 = vsel %vm883, %v1268, 0
        %1292 = vmatpush.bf16.msra.mxu0 0
        %1293 = vmatpush.bf16.msra.mxu0 0
        %1294 = vmatpush.bf16.msra.mxu0 0
        %1295 = vmatpush.bf16.msra.mxu0 0
        %1296 = vmatpush.bf16.msra.mxu0 0
        %1297 = vmatpush.bf16.msra.mxu0 0
        %1298 = vmatpush.bf16.msra.mxu0 %v1286
        %1299 = vmatpush.bf16.msra.mxu0 %v1285
        %1300 = vmatmul.bf16.gmra.mxu0 %v1290
        %v1301 = vpop.f32.mrf.mxu0
        %v1302 = vadd.f32 %v1275, %v1301
        %v1303 = vpop.f32.mrf.mxu0
        %1304 = vdwg.mxu0
        %v1305 = vpack.c.bf16 %v1265, %v1265
        %v1306 = vpack.c.bf16 %v1302, %v1302
        %v1308 = vsel %vm904, %v1305, 0
        %v1311 = vsel %vm904, %v1306, 0
        %1313 = vmatpush.bf16.xpose.msra.mxu0 0
        %1314 = vmatpush.bf16.xpose.msra.mxu0 0
        %1315 = vmatpush.bf16.xpose.msra.mxu0 0
        %1316 = vmatpush.bf16.xpose.msra.mxu0 0
        %1317 = vmatpush.bf16.xpose.msra.mxu0 0
        %1318 = vmatpush.bf16.xpose.msra.mxu0 0
        %1319 = vmatpush.bf16.xpose.msra.mxu0 0
        %1320 = vmatpush.bf16.xpose.msra.mxu0 %v1311
        %1321 = vmatmul.bf16.gmra.mxu0 %v1308
        %v1322 = vpop.f32.mrf.mxu0
        %v1323 = vadd.f32 0.0, %v1322
        %v1324 = vpop.f32.mrf.mxu0
        %1325 = vdwg.mxu0
        %v1326 = vmul.f32 %v1323, 0.35355338
        %v1327 = vsel %vm862, 1, 0
        %v1328 = vperm.slane %v1327, 0
        %vm1329 = vcmp.eq.s32.totalorder %v1328, 1
        %v1330 = vsel %vm1329, %v1326, -1e+10
        %v1331 = vsel %vm904, %v1330, -inf
        %1332 = vmax.xlane.f32.xlu0 %v1331
        %v1333 = vpop.xlane.xlu0 %1332
        %v1334 = vsub.f32 %v1330, %v1333
        %v1335 = vmul.f32 %v1334, 1.442695
        %v1336 = vpow.pop %v1335
        %v1337 = vsel %vm904, %v1336, 0.0
        %1338 = vadd.xlane.f32.xlu0 %v1337
        %v1339 = vpop.xlane.xlu0 %1338
        %v1340 = vrcp.pop %v1339
        %v1341 = vmul.f32 %v1336, %v1340
        %v1342 = vpack.c.bf16 %v1341, %v1341
        %1344 = vrot.lane.b32.xlu0 %v1306, 96
        %v1345 = vpop.permute.xlu0 %1344
        %v1347 = vsel %vm904, %v1342, 0
        %v1350 = vsel %vm943, %v1345, 0
        %1352 = vmatpush.bf16.msra.mxu0 0
        %1353 = vmatpush.bf16.msra.mxu0 0
        %1354 = vmatpush.bf16.msra.mxu0 0
        %1355 = vmatpush.bf16.msra.mxu0 0
        %1356 = vmatpush.bf16.msra.mxu0 0
        %1357 = vmatpush.bf16.msra.mxu0 0
        %1358 = vmatpush.bf16.msra.mxu0 0
        %1359 = vmatpush.bf16.msra.mxu0 %v1350
        %1360 = vmatmul.bf16.gmra.mxu0 %v1347
        %v1361 = vpop.f32.mrf.mxu0
        %v1362 = vadd.f32 0.0, %v1361
        %v1363 = vpop.f32.mrf.mxu0
        %1364 = vdwg.mxu0
        %1365 = vst.msk [vmem:[#allocation3] sm:$0xff] %vm904, %v1362
        %1367 = vrot.lane.b32.xlu0 %v1305, 120
        %v1368 = vpop.permute.xlu0 %1367
        %1369 = vrot.lane.b32.xlu0 %v1306, 120
        %v1370 = vpop.permute.xlu0 %1369
        %v1372 = vsel %vm904, %v1368, 0
        %v1375 = vsel %vm904, %v1370, 0
        %1377 = vmatpush.bf16.xpose.msra.mxu0 0
        %1378 = vmatpush.bf16.xpose.msra.mxu0 0
        %1379 = vmatpush.bf16.xpose.msra.mxu0 0
        %1380 = vmatpush.bf16.xpose.msra.mxu0 0
        %1381 = vmatpush.bf16.xpose.msra.mxu0 0
        %1382 = vmatpush.bf16.xpose.msra.mxu0 0
        %1383 = vmatpush.bf16.xpose.msra.mxu0 0
        %1384 = vmatpush.bf16.xpose.msra.mxu0 %v1375
        %1385 = vmatmul.bf16.gmra.mxu0 %v1372
        %v1386 = vpop.f32.mrf.mxu0
        %v1387 = vadd.f32 0.0, %v1386
        %v1388 = vpop.f32.mrf.mxu0
        %1389 = vdwg.mxu0
        %v1390 = vmul.f32 %v1387, 0.35355338
        %v1391 = vsel %vm1329, %v1390, -1e+10
        %v1392 = vsel %vm904, %v1391, -inf
        %1393 = vmax.xlane.f32.xlu0 %v1392
        %v1394 = vpop.xlane.xlu0 %1393
        %v1395 = vsub.f32 %v1391, %v1394
        %v1396 = vmul.f32 %v1395, 1.442695
        %v1397 = vpow.pop %v1396
        %v1398 = vsel %vm904, %v1397, 0.0
        %1399 = vadd.xlane.f32.xlu0 %v1398
        %v1400 = vpop.xlane.xlu0 %1399
        %v1401 = vrcp.pop %v1400
        %v1402 = vmul.f32 %v1397, %v1401
        %v1403 = vpack.c.bf16 %v1402, %v1402
        %1404 = vrot.lane.b32.xlu0 %v1306, 88
        %v1405 = vpop.permute.xlu0 %1404
        %v1407 = vsel %vm904, %v1403, 0
        %v1410 = vsel %vm943, %v1405, 0
        %1412 = vmatpush.bf16.msra.mxu0 0
        %1413 = vmatpush.bf16.msra.mxu0 0
        %1414 = vmatpush.bf16.msra.mxu0 0
        %1415 = vmatpush.bf16.msra.mxu0 0
        %1416 = vmatpush.bf16.msra.mxu0 0
        %1417 = vmatpush.bf16.msra.mxu0 0
        %1418 = vmatpush.bf16.msra.mxu0 0
        %1419 = vmatpush.bf16.msra.mxu0 %v1410
        %1420 = vmatmul.bf16.gmra.mxu0 %v1407
        %v1421 = vpop.f32.mrf.mxu0
        %v1422 = vadd.f32 0.0, %v1421
        %v1423 = vpop.f32.mrf.mxu0
        %1424 = vdwg.mxu0
        %1426 = vrot.lane.b32.xlu0 %v1422, 8
        %v1427 = vpop.permute.xlu0 %1426
        %1429 = vst.msk [vmem:[#allocation3] sm:$0xff] %vm1023, %v1427
        %1430 = vrot.lane.b32.xlu0 %v1305, 112
        %v1431 = vpop.permute.xlu0 %1430
        %1432 = vrot.lane.b32.xlu0 %v1306, 112
        %v1433 = vpop.permute.xlu0 %1432
        %v1435 = vsel %vm904, %v1431, 0
        %v1438 = vsel %vm904, %v1433, 0
        %1440 = vmatpush.bf16.xpose.msra.mxu0 0
        %1441 = vmatpush.bf16.xpose.msra.mxu0 0
        %1442 = vmatpush.bf16.xpose.msra.mxu0 0
        %1443 = vmatpush.bf16.xpose.msra.mxu0 0
        %1444 = vmatpush.bf16.xpose.msra.mxu0 0
        %1445 = vmatpush.bf16.xpose.msra.mxu0 0
        %1446 = vmatpush.bf16.xpose.msra.mxu0 0
        %1447 = vmatpush.bf16.xpose.msra.mxu0 %v1438
        %1448 = vmatmul.bf16.gmra.mxu0 %v1435
        %v1449 = vpop.f32.mrf.mxu0
        %v1450 = vadd.f32 0.0, %v1449
        %v1451 = vpop.f32.mrf.mxu0
        %1452 = vdwg.mxu0
        %v1453 = vmul.f32 %v1450, 0.35355338
        %v1454 = vsel %vm1329, %v1453, -1e+10
        %v1455 = vsel %vm904, %v1454, -inf
        %1456 = vmax.xlane.f32.xlu0 %v1455
        %v1457 = vpop.xlane.xlu0 %1456
        %v1458 = vsub.f32 %v1454, %v1457
        %v1459 = vmul.f32 %v1458, 1.442695
        %v1460 = vpow.pop %v1459
        %v1461 = vsel %vm904, %v1460, 0.0
        %1462 = vadd.xlane.f32.xlu0 %v1461
        %v1463 = vpop.xlane.xlu0 %1462
        %v1464 = vrcp.pop %v1463
        %v1465 = vmul.f32 %v1460, %v1464
        %v1466 = vpack.c.bf16 %v1465, %v1465
        %1467 = vrot.lane.b32.xlu0 %v1306, 80
        %v1468 = vpop.permute.xlu0 %1467
        %v1470 = vsel %vm904, %v1466, 0
        %v1473 = vsel %vm943, %v1468, 0
        %1475 = vmatpush.bf16.msra.mxu0 0
        %1476 = vmatpush.bf16.msra.mxu0 0
        %1477 = vmatpush.bf16.msra.mxu0 0
        %1478 = vmatpush.bf16.msra.mxu0 0
        %1479 = vmatpush.bf16.msra.mxu0 0
        %1480 = vmatpush.bf16.msra.mxu0 0
        %1481 = vmatpush.bf16.msra.mxu0 0
        %1482 = vmatpush.bf16.msra.mxu0 %v1473
        %1483 = vmatmul.bf16.gmra.mxu0 %v1470
        %v1484 = vpop.f32.mrf.mxu0
        %v1485 = vadd.f32 0.0, %v1484
        %v1486 = vpop.f32.mrf.mxu0
        %1487 = vdwg.mxu0
        %1489 = vrot.lane.b32.xlu0 %v1485, 16
        %v1490 = vpop.permute.xlu0 %1489
        %1492 = vst.msk [vmem:[#allocation3] sm:$0xff] %vm1087, %v1490
        %1493 = vrot.lane.b32.xlu0 %v1305, 104
        %v1494 = vpop.permute.xlu0 %1493
        %1495 = vrot.lane.b32.xlu0 %v1306, 104
        %v1496 = vpop.permute.xlu0 %1495
        %v1498 = vsel %vm904, %v1494, 0
        %v1501 = vsel %vm904, %v1496, 0
        %1503 = vmatpush.bf16.xpose.msra.mxu0 0
        %1504 = vmatpush.bf16.xpose.msra.mxu0 0
        %1505 = vmatpush.bf16.xpose.msra.mxu0 0
        %1506 = vmatpush.bf16.xpose.msra.mxu0 0
        %1507 = vmatpush.bf16.xpose.msra.mxu0 0
        %1508 = vmatpush.bf16.xpose.msra.mxu0 0
        %1509 = vmatpush.bf16.xpose.msra.mxu0 0
        %1510 = vmatpush.bf16.xpose.msra.mxu0 %v1501
        %1511 = vmatmul.bf16.gmra.mxu0 %v1498
        %v1512 = vpop.f32.mrf.mxu0
        %v1513 = vadd.f32 0.0, %v1512
        %v1514 = vpop.f32.mrf.mxu0
        %1515 = vdwg.mxu0
        %v1516 = vmul.f32 %v1513, 0.35355338
        %v1517 = vsel %vm1329, %v1516, -1e+10
        %v1518 = vsel %vm904, %v1517, -inf
        %1519 = vmax.xlane.f32.xlu0 %v1518
        %v1520 = vpop.xlane.xlu0 %1519
        %v1521 = vsub.f32 %v1517, %v1520
        %v1522 = vmul.f32 %v1521, 1.442695
        %v1523 = vpow.pop %v1522
        %v1524 = vsel %vm904, %v1523, 0.0
        %1525 = vadd.xlane.f32.xlu0 %v1524
        %v1526 = vpop.xlane.xlu0 %1525
        %v1527 = vrcp.pop %v1526
        %v1528 = vmul.f32 %v1523, %v1527
        %v1529 = vpack.c.bf16 %v1528, %v1528
        %1530 = vrot.lane.b32.xlu0 %v1306, 72
        %v1531 = vpop.permute.xlu0 %1530
        %v1533 = vsel %vm904, %v1529, 0
        %v1536 = vsel %vm943, %v1531, 0
        %1538 = vmatpush.bf16.msra.mxu0 0
        %1539 = vmatpush.bf16.msra.mxu0 0
        %1540 = vmatpush.bf16.msra.mxu0 0
        %1541 = vmatpush.bf16.msra.mxu0 0
        %1542 = vmatpush.bf16.msra.mxu0 0
        %1543 = vmatpush.bf16.msra.mxu0 0
        %1544 = vmatpush.bf16.msra.mxu0 0
        %1545 = vmatpush.bf16.msra.mxu0 %v1536
        %1546 = vmatmul.bf16.gmra.mxu0 %v1533
        %v1547 = vpop.f32.mrf.mxu0
        %v1548 = vadd.f32 0.0, %v1547
        %v1549 = vpop.f32.mrf.mxu0
        %1550 = vdwg.mxu0
        %1552 = vrot.lane.b32.xlu0 %v1548, 24
        %v1553 = vpop.permute.xlu0 %1552
        %1555 = vst.msk [vmem:[#allocation3] sm:$0xff] %vm1151, %v1553
        %v1556 = vld [vmem:[#allocation3] sm:$0xff]
        %v1557 = vld [vmem:[%s14] sm:$0xf]
        %v1558 = vld [vmem:[%s14 + $0x4] sm:$0xf]
        %v1559 = vld [vmem:[%s14 + $0x8] sm:$0xf]
        %v1560 = vld [vmem:[%s14 + $0xc] sm:$0xf]
        %v1561 = vpack.c.bf16 %v1556, %v1556
        %v1562 = vld [vmem:[%s15] sm:$0x1]
        %v1564 = vperm.slane %v1562, 0
        %v1570 = vunpack.c.l.b16 %v1557
        %v1571 = vunpack.c.l.b16 %v1558
        %v1572 = vunpack.c.l.b16 %v1559
        %v1573 = vunpack.c.l.b16 %v1560
        %v1574 = vpack.c.b16 %v1571, %v1570
        %v1575 = vpack.c.b16 %v1573, %v1572
        %v1579 = vsel %vm883, %v1561, 0
        %1581 = vmatpush.bf16.msra.mxu0 0
        %1582 = vmatpush.bf16.msra.mxu0 0
        %1583 = vmatpush.bf16.msra.mxu0 0
        %1584 = vmatpush.bf16.msra.mxu0 0
        %1585 = vmatpush.bf16.msra.mxu0 0
        %1586 = vmatpush.bf16.msra.mxu0 0
        %1587 = vmatpush.bf16.msra.mxu0 %v1575
        %1588 = vmatpush.bf16.msra.mxu0 %v1574
        %1589 = vmatmul.bf16.gmra.mxu0 %v1579
        %v1590 = vpop.f32.mrf.mxu0
        %v1591 = vadd.f32 %v1564, %v1590
        %v1592 = vpop.f32.mrf.mxu0
        %1593 = vdwg.mxu0
        %v1594 = vadd.f32 %v1230, %v1591
        %v1595 = vld [vmem:[%s16] sm:$0x1]
        %v1596 = vld [vmem:[%s17] sm:$0x1]
        %v1597 = vsel %vm883, %v1594, 0.0
        %1598 = vadd.xlane.f32.xlu0 %v1597
        %v1599 = vpop.xlane.xlu0 %1598
        %v1600 = vmul.f32 %v1599, %v1203
        %v1601 = vsub.f32 %v1594, %v1600
        %v1602 = vmul.f32 %v1601, %v1601
        %v1603 = vsel %vm883, %v1602, 0.0
        %1604 = vadd.xlane.f32.xlu0 %v1603
        %v1605 = vpop.xlane.xlu0 %1604
        %v1606 = vmul.f32 %v1605, %v1203
        %v1607 = vadd.f32 %v1606, 1e-05
        %v1608 = vrsqrt.pop %v1607
        %v1609 = vmul.f32 %v1608, %v1607
        %v1610 = vmul.f32 %v1609, %v1608
        %v1611 = vmul.f32 0.5, %v1610
        %v1612 = vsub.f32 1.5, %v1611
        %v1613 = vmul.f32 %v1608, %v1612
        %vm1614 = vweird.f32 %v1607
        %vm1615 = vweird.f32 %v1608
        %vm1616 = vmor %vm1614, %vm1615
        %v1617 = vsel %vm1616, %v1608, %v1613
        %v1618 = vmul.f32 %v1601, %v1617
        %v1620 = vperm.slane %v1595, 0
        %v1622 = vmul.f32 %v1618, %v1620
        %v1624 = vperm.slane %v1596, 0
        %v1626 = vadd.f32 %v1622, %v1624
        %1627 = vst.msk [vmem:[#allocation2] sm:$0xff] %vm883, %v1626
        %1628 = vst.msk [vmem:[#allocation3] sm:$0xff] %vm883, 0.0
      $region120: #{decoder_forward.3} parent=115 // pred_fallthru
        _
      %v1629 = vld [vmem:[#allocation2] sm:$0xff]
      %v1630 = vld [vmem:[%s829] sm:$0xf]
      %v1631 = vld [vmem:[%s829 + $0x4] sm:$0xf]
      %v1632 = vld [vmem:[%s829 + $0x8] sm:$0xf]
      %v1633 = vld [vmem:[%s829 + $0xc] sm:$0xf]
      %v1634 = vpack.c.bf16 %v1629, %v1629
      %v1635 = vld [vmem:[%s832] sm:$0x1]
      %v1637 = vperm.slane %v1635, 0
      %v1643 = vunpack.c.l.b16 %v1630
      %v1644 = vunpack.c.l.b16 %v1631
      %v1645 = vunpack.c.l.b16 %v1632
      %v1646 = vunpack.c.l.b16 %v1633
      %v1647 = vpack.c.b16 %v1644, %v1643
      %v1648 = vpack.c.b16 %v1646, %v1645
      %vm1651 = vcmask 261120
      %v1653 = vsel %vm1651, %v1634, 0
      %1655 = vmatpush.bf16.msra.mxu0 0
      %1656 = vmatpush.bf16.msra.mxu0 0
      %1657 = vmatpush.bf16.msra.mxu0 0
      %1658 = vmatpush.bf16.msra.mxu0 0
      %1659 = vmatpush.bf16.msra.mxu0 0
      %1660 = vmatpush.bf16.msra.mxu0 0
      %1661 = vmatpush.bf16.msra.mxu0 %v1648
      %1662 = vmatpush.bf16.msra.mxu0 %v1647
      %1663 = vmatmul.bf16.gmra.mxu0 %v1653
      %v1664 = vpop.f32.mrf.mxu0
      %v1665 = vadd.f32 %v1637, %v1664
      %v1666 = vpop.f32.mrf.mxu0
      %1667 = vdwg.mxu0
      %v1668 = vmax.f32 %v1665, 0.0
      %v1669 = vld [vmem:[#allocation3] sm:$0xff]
      %v1670 = vld [vmem:[%s837] sm:$0xf]
      %v1671 = vld [vmem:[%s837 + $0x4] sm:$0xf]
      %v1672 = vld [vmem:[%s837 + $0x8] sm:$0xf]
      %v1673 = vld [vmem:[%s837 + $0xc] sm:$0xf]
      %v1674 = vld [vmem:[%s837 + $0x10] sm:$0xf]
      %v1675 = vld [vmem:[%s837 + $0x14] sm:$0xf]
      %v1676 = vld [vmem:[%s837 + $0x18] sm:$0xf]
      %v1677 = vld [vmem:[%s837 + $0x1c] sm:$0xf]
      %v1678 = vpack.c.bf16 %v1668, %v1668
      %v1687 = vunpack.c.l.b16 %v1670
      %v1688 = vunpack.c.l.b16 %v1671
      %v1689 = vunpack.c.l.b16 %v1672
      %v1690 = vunpack.c.l.b16 %v1673
      %v1691 = vunpack.c.l.b16 %v1674
      %v1692 = vunpack.c.l.b16 %v1675
      %v1693 = vunpack.c.l.b16 %v1676
      %v1694 = vunpack.c.l.b16 %v1677
      %v1695 = vpack.c.b16 %v1688, %v1687
      %v1696 = vpack.c.b16 %v1690, %v1689
      %v1697 = vpack.c.b16 %v1692, %v1691
      %v1698 = vpack.c.b16 %v1694, %v1693
      %vm1703 = vcmask 523264
      %v1705 = vsel %vm1703, %v1678, 0
      %1707 = vmatpush.bf16.msra.mxu0 0
      %1708 = vmatpush.bf16.msra.mxu0 0
      %1709 = vmatpush.bf16.msra.mxu0 0
      %1710 = vmatpush.bf16.msra.mxu0 0
      %1711 = vmatpush.bf16.msra.mxu0 %v1698
      %1712 = vmatpush.bf16.msra.mxu0 %v1697
      %1713 = vmatpush.bf16.msra.mxu0 %v1696
      %1714 = vmatpush.bf16.msra.mxu0 %v1695
      %1715 = vmatmul.bf16.gmra.mxu0 %v1705
      %v1716 = vpop.f32.mrf.mxu0
      %v1717 = vadd.f32 0.0, %v1716
      %v1718 = vpop.f32.mrf.mxu0
      %1719 = vdwg.mxu0
      %v1720 = vadd.f32 %v1669, %v1717
      %1721 = vst.msk [vmem:[#allocation3] sm:$0xff] %vm1651, %v1720
      // Predicated region
      $region121: #{decoder_forward.3} parent=115 // pred_check
        %p1722 = pneg %p844
      $region122: #{decoder_forward.3} parent=115 // pred_check_branch
        %1724 = sbr.rel (%p1722) target = $region124
      $region123: #{decoder_forward.3} parent=115 // pred_region
        %v1725 = vld [vmem:[#allocation2] sm:$0xff]
        %v1726 = vld [vmem:[#allocation3] sm:$0xff]
        %v1727 = vadd.f32 %v1725, %v1726
        %v1728 = vld [vmem:[%s21] sm:$0x1]
        %v1730 = vperm.slane %v1728, 0
        %v1732 = vadd.f32 %v1727, %v1730
        %v1733 = vld [vmem:[%s22] sm:$0x1]
        %v1734 = vld [vmem:[%s23] sm:$0x1]
        %v1735 = vsel %vm1651, %v1732, 0.0
        %1736 = vadd.xlane.f32.xlu0 %v1735
        %v1737 = vpop.xlane.xlu0 %1736
        %v1738 = vrcp.pop 32.0
        %v1739 = vmul.f32 32.0, %v1738
        %v1740 = vsub.f32 1.0, %v1739
        %v1741 = vmul.f32 %v1738, %v1740
        %v1742 = vadd.f32 %v1738, %v1741
        %vm1743 = vweird.f32 %v1738
        %v1744 = vsel %vm1743, %v1738, %v1742
        %v1745 = vmul.f32 %v1737, %v1744
        %v1746 = vsub.f32 %v1732, %v1745
        %v1747 = vmul.f32 %v1746, %v1746
        %v1748 = vsel %vm1651, %v1747, 0.0
        %1749 = vadd.xlane.f32.xlu0 %v1748
        %v1750 = vpop.xlane.xlu0 %1749
        %v1751 = vmul.f32 %v1750, %v1744
        %v1752 = vadd.f32 %v1751, 1e-05
        %v1753 = vrsqrt.pop %v1752
        %v1754 = vmul.f32 %v1753, %v1752
        %v1755 = vmul.f32 %v1754, %v1753
        %v1756 = vmul.f32 0.5, %v1755
        %v1757 = vsub.f32 1.5, %v1756
        %v1758 = vmul.f32 %v1753, %v1757
        %vm1759 = vweird.f32 %v1752
        %vm1760 = vweird.f32 %v1753
        %vm1761 = vmor %vm1759, %vm1760
        %v1762 = vsel %vm1761, %v1753, %v1758
        %v1763 = vmul.f32 %v1746, %v1762
        %v1765 = vperm.slane %v1733, 0
        %v1767 = vmul.f32 %v1763, %v1765
        %v1769 = vperm.slane %v1734, 0
        %v1771 = vadd.f32 %v1767, %v1769
        %v1772 = vpack.c.bf16 %v1771, %v1771
        %vm1773 = vcmask 257024
        %1774 = vst.msk [vmem:[%s842] sm:$0xf] %vm1773, %v1772
      $region124: #{decoder_forward.3} parent=115 // pred_fallthru
        _
      %p1775 = scmp.lt.s32.totalorder %s39, 1
      %s1776 = scalar_select %p1775, %s39, 1
      %s1777 = smul.addr %s1776, 4
      %s1778 = scalar_lea.vmem %s24, %s1777
      // Predicated region
      $region125: #{decoder_forward.3} parent=115 // pred_check
        %p1779 = pneg %p604
      $region126: #{decoder_forward.3} parent=115 // pred_check_branch
        %1781 = sbr.rel (%p1779) target = $region128
      $region127: #{decoder_forward.3} parent=115 // pred_region
        _
      $region128: #{decoder_forward.3} parent=115 // pred_fallthru
        _
    $region116: #{decoder_forward.3} parent=5 // pred_fallthru
      _
    %p1782 = scmp.le.s32.totalorder 2, %s30
    // Predicated region
    $region129: #{decoder_forward.3} parent=5 // pred_check
      %p1783 = pneg %p1782
    $region130: #{decoder_forward.3} parent=5 // pred_check_branch
      %1785 = sbr.rel (%p1783) target = $region132
    $region131: #{decoder_forward.3} parent=5 // pred_region
      %s1786 = ssub.s32 %s30, 2
      // Predicated region
      $region133: #{decoder_forward.3} parent=131 // pred_check
        %p1787 = pneg %p610
      $region134: #{decoder_forward.3} parent=131 // pred_check_branch
        %1789 = sbr.rel (%p1787) target = $region136
      $region135: #{decoder_forward.3} parent=131 // pred_region
        %p1790 = scmp.lt.s32.totalorder %s41, 1
        %s1791 = scalar_select %p1790, %s41, 1
        %s1792 = smul.addr %s1791, 4
        %s1793 = scalar_lea.vmem %s24, %s1792
      $region136: #{decoder_forward.3} parent=131 // pred_fallthru
        _
    $region132: #{decoder_forward.3} parent=5 // pred_fallthru
      _
  $region6: #{decoder_forward.3} parent=0 // loop_footer
    %s34 = sadd.s32 1, %s30
  $region7: #{decoder_forward.3} parent=0 // loop_footer_branch
    %29 = sbr.rel target = $region3
  $region8: #{decoder_forward.3} parent=0 // loop_exit
    _

// kernel: decoder_forward.4
$region0: #{decoder_forward.4}
  #allocation0 [shape = 'u32[]', space=smem, size = 0x4, offset = 0x4, fixed_abs, tag = 'smem constant byte address 0x4 - core index']
  #allocation1 [shape = 'u32[72,128]{1,0:T(1,128)}', space=vmem, size = 0x9000, scoped, tag = 'internal scratch']
  #allocation2 [shape = 'f32[8,32]{1,0:T(8,128)}', space=vmem, size = 0x1000, scoped, tag = 'scratch operand']
  #allocation3 [shape = 'f32[8,32]{1,0:T(8,128)}', space=vmem, size = 0x1000, scoped, tag = 'scratch operand']
  %s0 = inlined_call_operand.vmem [shape: bf16[2,8,32], index: 0, kind: input, shape index: {}]
  %s1 = inlined_call_operand.vmem [shape: bf16[2,8,32], index: 1, kind: input, shape index: {}]
  %s2 = inlined_call_operand.vmem [shape: f32[2,1,8], index: 2, kind: input, shape index: {}]
  %s3 = inlined_call_operand.vmem [shape: f32[2,1,8], index: 3, kind: input, shape index: {}]
  %s4 = inlined_call_operand.vmem [shape: bf16[32,96], index: 4, kind: input, shape index: {}]
  %s5 = inlined_call_operand.vmem [shape: f32[1,96], index: 5, kind: input, shape index: {}]
  %s6 = inlined_call_operand.vmem [shape: bf16[32,32], index: 6, kind: input, shape index: {}]
  %s7 = inlined_call_operand.vmem [shape: f32[1,32], index: 7, kind: input, shape index: {}]
  %s8 = inlined_call_operand.vmem [shape: f32[1,32], index: 8, kind: input, shape index: {}]
  %s9 = inlined_call_operand.vmem [shape: f32[1,32], index: 9, kind: input, shape index: {}]
  %s10 = inlined_call_operand.vmem [shape: bf16[32,32], index: 10, kind: input, shape index: {}]
  %s11 = inlined_call_operand.vmem [shape: f32[1,32], index: 11, kind: input, shape index: {}]
  %s12 = inlined_call_operand.vmem [shape: bf16[32,64], index: 12, kind: input, shape index: {}]
  %s13 = inlined_call_operand.vmem [shape: f32[1,64], index: 13, kind: input, shape index: {}]
  %s14 = inlined_call_operand.vmem [shape: bf16[32,32], index: 14, kind: input, shape index: {}]
  %s15 = inlined_call_operand.vmem [shape: f32[1,32], index: 15, kind: input, shape index: {}]
  %s16 = inlined_call_operand.hbm [shape: f32[1,32], index: 16, kind: input, shape index: {}]
  %s17 = inlined_call_operand.hbm [shape: f32[1,32], index: 17, kind: input, shape index: {}]
  %s18 = inlined_call_operand.vmem [shape: bf16[32,64], index: 18, kind: input, shape index: {}]
  %s19 = inlined_call_operand.hbm [shape: f32[1,64], index: 19, kind: input, shape index: {}]
  %s20 = inlined_call_operand.vmem [shape: bf16[64,32], index: 20, kind: input, shape index: {}]
  %s21 = inlined_call_operand.hbm [shape: f32[1,32], index: 21, kind: input, shape index: {}]
  %s22 = inlined_call_operand.hbm [shape: f32[1,32], index: 22, kind: input, shape index: {}]
  %s23 = inlined_call_operand.hbm [shape: f32[1,32], index: 23, kind: input, shape index: {}]
  %s24 = inlined_call_operand.vmem [shape: bf16[2,8,32], index: 24, kind: output, shape index: {0}]
  %s25 = inlined_call_operand.vmem [shape: bf16[2,4,8,8], index: 25, kind: output, shape index: {1}]
  %26 = xla_tuple %s24, %s25
  %s27 = sld [smem:[#allocation0]]
  $region169: #{decoder_forward.4} parent=0
    _
  %s29 = ssub.s32 1, %s27
  %s30 = scalar_select 0, %s29, %s27
  $region1: #{decoder_forward.4} parent=0
    #allocation4 [shape = 'u8[512]{0}', space=vmem, size = 0x400, scoped, tag = 'input window, operand 16, single buffered']
    #allocation5 [shape = 's32[2]{0}', space=sflag, size = 0x8, scoped, tag = 'scoped memory for decoder_forward.4']
    #allocation6 [shape = 'u8[512]{0}', space=vmem, size = 0x400, scoped, tag = 'input window, operand 17, single buffered']
    #allocation7 [shape = 's32[1]{0}', space=sflag, size = 0x4, scoped, tag = 'scoped memory for decoder_forward.4']
    #allocation8 [shape = 'u8[512]{0}', space=vmem, size = 0x400, scoped, tag = 'input window, operand 19, single buffered']
    #allocation9 [shape = 'u8[512]{0}', space=vmem, size = 0x400, scoped, tag = 'input window, operand 21, single buffered']
    #allocation10 [shape = 's32[1]{0}', space=sflag, size = 0x4, scoped, tag = 'scoped memory for decoder_forward.4']
    #allocation11 [shape = 'u8[512]{0}', space=vmem, size = 0x400, scoped, tag = 'input window, operand 22, single buffered']
    #allocation12 [shape = 'u8[512]{0}', space=vmem, size = 0x400, scoped, tag = 'input window, operand 23, single buffered']
    #allocation13 [shape = 's32[1]{0}', space=sflag, size = 0x4, scoped, tag = 'scoped memory for decoder_forward.4']
    %31 = vsyncpa [#allocation5], 0
    %32 = vsyncpa [#allocation7], 0
    %33 = vsyncpa [#allocation10], 0
    %34 = vsyncpa [#allocation13], 0
    loop: start=0, step=1, limit=4
    $region2: #{decoder_forward.4} parent=1 // loop_pre_header
      _
    $region3: #{decoder_forward.4} parent=1 // loop_header
      %s36 = sphi 0, %s40
      %p37 = scmp.ge.s32.totalorder %s36, 4
      %s43 = sphi 0, %s55
      %s44 = sphi 0, %s51
      %s45 = sphi 0, %s43
      %s46 = sphi 0, %s44
      %s47 = sphi 0, %s45
      %s48 = sphi 0, %s46
      %s58 = sphi 0, %s60
      %s61 = sphi 0, %s58
      %s62 = sphi 0, %s61
      %s78 = sphi 0, %s62
      %s84 = sphi 0, %s86
      %s87 = sphi 0, %s84
      %s88 = sphi 0, %s87
      %s104 = sphi 0, %s88
      %s110 = sphi 0, %s112
      %s113 = sphi 0, %s110
      %s114 = sphi 0, %s113
      %s130 = sphi 0, %s114
      %s136 = sphi 0, %s138
      %s139 = sphi 0, %s136
      %s140 = sphi 0, %s139
      %s156 = sphi 0, %s140
      %s160 = sphi 0, %s160
      %s162 = sphi 0, %s160
      %s163 = sphi 0, %s162
      %s177 = sphi 0, %s163
      %s181 = sphi 0, %s181
      %s183 = sphi 0, %s181
      %s184 = sphi 0, %s183
      %s198 = sphi 0, %s184
      %s202 = sphi 0, %s202
      %s204 = sphi 0, %s202
      %s205 = sphi 0, %s204
      %s219 = sphi 0, %s205
      %s223 = sphi 0, %s223
      %s225 = sphi 0, %s223
      %s226 = sphi 0, %s225
      %s240 = sphi 0, %s226
      %s244 = sphi 0, %s244
      %s246 = sphi 0, %s244
      %s247 = sphi 0, %s246
      %s261 = sphi 0, %s247
      %s265 = sphi 0, %s265
      %s267 = sphi 0, %s265
      %s268 = sphi 0, %s267
      %s282 = sphi 0, %s268
      %s286 = sphi 0, %s286
      %s288 = sphi 0, %s286
      %s289 = sphi 0, %s288
      %s303 = sphi 0, %s289
      %s307 = sphi 0, %s307
      %s309 = sphi 0, %s307
      %s310 = sphi 0, %s309
      %s324 = sphi 0, %s310
      %s328 = sphi 0, %s328
      %s330 = sphi 0, %s328
      %s331 = sphi 0, %s330
      %s345 = sphi 0, %s331
      %s349 = sphi 0, %s349
      %s351 = sphi 0, %s349
      %s352 = sphi 0, %s351
      %s366 = sphi 0, %s352
      %s370 = sphi 0, %s370
      %s372 = sphi 0, %s370
      %s373 = sphi 0, %s372
      %s387 = sphi 0, %s373
      %s391 = sphi 0, %s391
      %s393 = sphi 0, %s391
      %s394 = sphi 0, %s393
      %s408 = sphi 0, %s394
      %s412 = sphi 0, %s412
      %s414 = sphi 0, %s412
      %s415 = sphi 0, %s414
      %s429 = sphi 0, %s415
      %s433 = sphi 0, %s433
      %s435 = sphi 0, %s433
      %s436 = sphi 0, %s435
      %s450 = sphi 0, %s436
      %s456 = sphi 0, %s458
      %s459 = sphi 0, %s456
      %s460 = sphi 0, %s459
      %s476 = sphi 0, %s460
      %s482 = sphi 0, %s484
      %s485 = sphi 0, %s482
      %s486 = sphi 0, %s485
      %s502 = sphi 0, %s486
      %s508 = sphi 0, %s510
      %s511 = sphi 0, %s508
      %s512 = sphi 0, %s511
      %s528 = sphi 0, %s512
      %s532 = sphi 0, %s532
      %s534 = sphi 0, %s532
      %s535 = sphi 0, %s534
      %s549 = sphi 0, %s535
      %s553 = sphi 0, %s553
      %s555 = sphi 0, %s553
      %s556 = sphi 0, %s555
      %s570 = sphi 0, %s556
      %s574 = sphi 0, %s574
      %s576 = sphi 0, %s574
      %s577 = sphi 0, %s576
      %s591 = sphi 0, %s577
      %s597 = sphi 0, %s599
      %s600 = sphi 0, %s597
      %s601 = sphi 0, %s600
      %s617 = sphi 0, %s601
      %s623 = sphi 0, %s625
      %s626 = sphi 0, %s623
      %s627 = sphi 0, %s626
      %s643 = sphi 0, %s627
    $region4: #{decoder_forward.4} parent=1 // loop_header_branch
      %39 = sbr.rel (%p37) target = $region8
    $region5: #{decoder_forward.4} parent=1 // loop_body
      %s41 = ssub.s32 %s36, 1
      %s42 = ssub.s32 %s36, 2
      %s49 = sadd.s32 1, %s44
      %p50 = scmp.ge.s32.totalorder %s49, 1
      %s51 = scalar_select %p50, 0, %s49
      %s52 = sadd.s32 1, %s43
      %s53 = scalar_select %p50, %s52, %s43
      %p54 = scmp.ge.s32.totalorder %s53, 2
      %s55 = scalar_select %p54, 0, %s53
      %s56 = ssub.s32 %s43, %s55
      %p57 = scmp.eq.s32.totalorder %s56, 0
      %s59 = sadd.s32 %s58, 1
      %s60 = scalar_select %p57, %s58, %s59
      %p63 = pneg %p57
      %p64 = scmp.eq.s32.totalorder %s36, 1
      %p65 = por %p63, %p64
      %p66 = scmp.ne.s32.totalorder %s58, %s61
      %p67 = scmp.eq.s32.totalorder %s36, 0
      %p68 = por %p66, %p67
      %p69 = scmp.ne.s32.totalorder %s58, %s61
      %p70 = scmp.eq.s32.totalorder %s41, 1
      %p71 = por %p69, %p70
      %p72 = scmp.ne.s32.totalorder %s61, %s62
      %p73 = scmp.eq.s32.totalorder %s41, 0
      %p74 = por %p72, %p73
      %p75 = scmp.ne.s32.totalorder %s61, %s62
      %p76 = scmp.eq.s32.totalorder %s42, 1
      %p77 = por %p75, %p76
      %p79 = scmp.ne.s32.totalorder %s62, %s78
      %p80 = scmp.eq.s32.totalorder %s42, 0
      %p81 = por %p79, %p80
      %s82 = ssub.s32 %s43, %s55
      %p83 = scmp.eq.s32.totalorder %s82, 0
      %s85 = sadd.s32 %s84, 1
      %s86 = scalar_select %p83, %s84, %s85
      %p89 = pneg %p83
      %p90 = scmp.eq.s32.totalorder %s36, 1
      %p91 = por %p89, %p90
      %p92 = scmp.ne.s32.totalorder %s84, %s87
      %p93 = scmp.eq.s32.totalorder %s36, 0
      %p94 = por %p92, %p93
      %p95 = scmp.ne.s32.totalorder %s84, %s87
      %p96 = scmp.eq.s32.totalorder %s41, 1
      %p97 = por %p95, %p96
      %p98 = scmp.ne.s32.totalorder %s87, %s88
      %p99 = scmp.eq.s32.totalorder %s41, 0
      %p100 = por %p98, %p99
      %p101 = scmp.ne.s32.totalorder %s87, %s88
      %p102 = scmp.eq.s32.totalorder %s42, 1
      %p103 = por %p101, %p102
      %p105 = scmp.ne.s32.totalorder %s88, %s104
      %p106 = scmp.eq.s32.totalorder %s42, 0
      %p107 = por %p105, %p106
      %s108 = ssub.s32 %s43, %s55
      %p109 = scmp.eq.s32.totalorder %s108, 0
      %s111 = sadd.s32 %s110, 1
      %s112 = scalar_select %p109, %s110, %s111
      %p115 = pneg %p109
      %p116 = scmp.eq.s32.totalorder %s36, 1
      %p117 = por %p115, %p116
      %p118 = scmp.ne.s32.totalorder %s110, %s113
      %p119 = scmp.eq.s32.totalorder %s36, 0
      %p120 = por %p118, %p119
      %p121 = scmp.ne.s32.totalorder %s110, %s113
      %p122 = scmp.eq.s32.totalorder %s41, 1
      %p123 = por %p121, %p122
      %p124 = scmp.ne.s32.totalorder %s113, %s114
      %p125 = scmp.eq.s32.totalorder %s41, 0
      %p126 = por %p124, %p125
      %p127 = scmp.ne.s32.totalorder %s113, %s114
      %p128 = scmp.eq.s32.totalorder %s42, 1
      %p129 = por %p127, %p128
      %p131 = scmp.ne.s32.totalorder %s114, %s130
      %p132 = scmp.eq.s32.totalorder %s42, 0
      %p133 = por %p131, %p132
      %s134 = ssub.s32 %s43, %s55
      %p135 = scmp.eq.s32.totalorder %s134, 0
      %s137 = sadd.s32 %s136, 1
      %s138 = scalar_select %p135, %s136, %s137
      %p141 = pneg %p135
      %p142 = scmp.eq.s32.totalorder %s36, 1
      %p143 = por %p141, %p142
      %p144 = scmp.ne.s32.totalorder %s136, %s139
      %p145 = scmp.eq.s32.totalorder %s36, 0
      %p146 = por %p144, %p145
      %p147 = scmp.ne.s32.totalorder %s136, %s139
      %p148 = scmp.eq.s32.totalorder %s41, 1
      %p149 = por %p147, %p148
      %p150 = scmp.ne.s32.totalorder %s139, %s140
      %p151 = scmp.eq.s32.totalorder %s41, 0
      %p152 = por %p150, %p151
      %p153 = scmp.ne.s32.totalorder %s139, %s140
      %p154 = scmp.eq.s32.totalorder %s42, 1
      %p155 = por %p153, %p154
      %p157 = scmp.ne.s32.totalorder %s140, %s156
      %p158 = scmp.eq.s32.totalorder %s42, 0
      %p159 = por %p157, %p158
      %s161 = sadd.s32 %s160, 1
      %p164 = scmp.eq.s32.totalorder %s36, 1
      %p165 = scmp.ne.s32.totalorder %s160, %s162
      %p166 = scmp.eq.s32.totalorder %s36, 0
      %p167 = por %p165, %p166
      %p168 = scmp.ne.s32.totalorder %s160, %s162
      %p169 = scmp.eq.s32.totalorder %s41, 1
      %p170 = por %p168, %p169
      %p171 = scmp.ne.s32.totalorder %s162, %s163
      %p172 = scmp.eq.s32.totalorder %s41, 0
      %p173 = por %p171, %p172
      %p174 = scmp.ne.s32.totalorder %s162, %s163
      %p175 = scmp.eq.s32.totalorder %s42, 1
      %p176 = por %p174, %p175
      %p178 = scmp.ne.s32.totalorder %s163, %s177
      %p179 = scmp.eq.s32.totalorder %s42, 0
      %p180 = por %p178, %p179
      %s182 = sadd.s32 %s181, 1
      %p185 = scmp.eq.s32.totalorder %s36, 1
      %p186 = scmp.ne.s32.totalorder %s181, %s183
      %p187 = scmp.eq.s32.totalorder %s36, 0
      %p188 = por %p186, %p187
      %p189 = scmp.ne.s32.totalorder %s181, %s183
      %p190 = scmp.eq.s32.totalorder %s41, 1
      %p191 = por %p189, %p190
      %p192 = scmp.ne.s32.totalorder %s183, %s184
      %p193 = scmp.eq.s32.totalorder %s41, 0
      %p194 = por %p192, %p193
      %p195 = scmp.ne.s32.totalorder %s183, %s184
      %p196 = scmp.eq.s32.totalorder %s42, 1
      %p197 = por %p195, %p196
      %p199 = scmp.ne.s32.totalorder %s184, %s198
      %p200 = scmp.eq.s32.totalorder %s42, 0
      %p201 = por %p199, %p200
      %s203 = sadd.s32 %s202, 1
      %p206 = scmp.eq.s32.totalorder %s36, 1
      %p207 = scmp.ne.s32.totalorder %s202, %s204
      %p208 = scmp.eq.s32.totalorder %s36, 0
      %p209 = por %p207, %p208
      %p210 = scmp.ne.s32.totalorder %s202, %s204
      %p211 = scmp.eq.s32.totalorder %s41, 1
      %p212 = por %p210, %p211
      %p213 = scmp.ne.s32.totalorder %s204, %s205
      %p214 = scmp.eq.s32.totalorder %s41, 0
      %p215 = por %p213, %p214
      %p216 = scmp.ne.s32.totalorder %s204, %s205
      %p217 = scmp.eq.s32.totalorder %s42, 1
      %p218 = por %p216, %p217
      %p220 = scmp.ne.s32.totalorder %s205, %s219
      %p221 = scmp.eq.s32.totalorder %s42, 0
      %p222 = por %p220, %p221
      %s224 = sadd.s32 %s223, 1
      %p227 = scmp.eq.s32.totalorder %s36, 1
      %p228 = scmp.ne.s32.totalorder %s223, %s225
      %p229 = scmp.eq.s32.totalorder %s36, 0
      %p230 = por %p228, %p229
      %p231 = scmp.ne.s32.totalorder %s223, %s225
      %p232 = scmp.eq.s32.totalorder %s41, 1
      %p233 = por %p231, %p232
      %p234 = scmp.ne.s32.totalorder %s225, %s226
      %p235 = scmp.eq.s32.totalorder %s41, 0
      %p236 = por %p234, %p235
      %p237 = scmp.ne.s32.totalorder %s225, %s226
      %p238 = scmp.eq.s32.totalorder %s42, 1
      %p239 = por %p237, %p238
      %p241 = scmp.ne.s32.totalorder %s226, %s240
      %p242 = scmp.eq.s32.totalorder %s42, 0
      %p243 = por %p241, %p242
      %s245 = sadd.s32 %s244, 1
      %p248 = scmp.eq.s32.totalorder %s36, 1
      %p249 = scmp.ne.s32.totalorder %s244, %s246
      %p250 = scmp.eq.s32.totalorder %s36, 0
      %p251 = por %p249, %p250
      %p252 = scmp.ne.s32.totalorder %s244, %s246
      %p253 = scmp.eq.s32.totalorder %s41, 1
      %p254 = por %p252, %p253
      %p255 = scmp.ne.s32.totalorder %s246, %s247
      %p256 = scmp.eq.s32.totalorder %s41, 0
      %p257 = por %p255, %p256
      %p258 = scmp.ne.s32.totalorder %s246, %s247
      %p259 = scmp.eq.s32.totalorder %s42, 1
      %p260 = por %p258, %p259
      %p262 = scmp.ne.s32.totalorder %s247, %s261
      %p263 = scmp.eq.s32.totalorder %s42, 0
      %p264 = por %p262, %p263
      %s266 = sadd.s32 %s265, 1
      %p269 = scmp.eq.s32.totalorder %s36, 1
      %p270 = scmp.ne.s32.totalorder %s265, %s267
      %p271 = scmp.eq.s32.totalorder %s36, 0
      %p272 = por %p270, %p271
      %p273 = scmp.ne.s32.totalorder %s265, %s267
      %p274 = scmp.eq.s32.totalorder %s41, 1
      %p275 = por %p273, %p274
      %p276 = scmp.ne.s32.totalorder %s267, %s268
      %p277 = scmp.eq.s32.totalorder %s41, 0
      %p278 = por %p276, %p277
      %p279 = scmp.ne.s32.totalorder %s267, %s268
      %p280 = scmp.eq.s32.totalorder %s42, 1
      %p281 = por %p279, %p280
      %p283 = scmp.ne.s32.totalorder %s268, %s282
      %p284 = scmp.eq.s32.totalorder %s42, 0
      %p285 = por %p283, %p284
      %s287 = sadd.s32 %s286, 1
      %p290 = scmp.eq.s32.totalorder %s36, 1
      %p291 = scmp.ne.s32.totalorder %s286, %s288
      %p292 = scmp.eq.s32.totalorder %s36, 0
      %p293 = por %p291, %p292
      %p294 = scmp.ne.s32.totalorder %s286, %s288
      %p295 = scmp.eq.s32.totalorder %s41, 1
      %p296 = por %p294, %p295
      %p297 = scmp.ne.s32.totalorder %s288, %s289
      %p298 = scmp.eq.s32.totalorder %s41, 0
      %p299 = por %p297, %p298
      %p300 = scmp.ne.s32.totalorder %s288, %s289
      %p301 = scmp.eq.s32.totalorder %s42, 1
      %p302 = por %p300, %p301
      %p304 = scmp.ne.s32.totalorder %s289, %s303
      %p305 = scmp.eq.s32.totalorder %s42, 0
      %p306 = por %p304, %p305
      %s308 = sadd.s32 %s307, 1
      %p311 = scmp.eq.s32.totalorder %s36, 1
      %p312 = scmp.ne.s32.totalorder %s307, %s309
      %p313 = scmp.eq.s32.totalorder %s36, 0
      %p314 = por %p312, %p313
      %p315 = scmp.ne.s32.totalorder %s307, %s309
      %p316 = scmp.eq.s32.totalorder %s41, 1
      %p317 = por %p315, %p316
      %p318 = scmp.ne.s32.totalorder %s309, %s310
      %p319 = scmp.eq.s32.totalorder %s41, 0
      %p320 = por %p318, %p319
      %p321 = scmp.ne.s32.totalorder %s309, %s310
      %p322 = scmp.eq.s32.totalorder %s42, 1
      %p323 = por %p321, %p322
      %p325 = scmp.ne.s32.totalorder %s310, %s324
      %p326 = scmp.eq.s32.totalorder %s42, 0
      %p327 = por %p325, %p326
      %s329 = sadd.s32 %s328, 1
      %p332 = scmp.eq.s32.totalorder %s36, 1
      %p333 = scmp.ne.s32.totalorder %s328, %s330
      %p334 = scmp.eq.s32.totalorder %s36, 0
      %p335 = por %p333, %p334
      %p336 = scmp.ne.s32.totalorder %s328, %s330
      %p337 = scmp.eq.s32.totalorder %s41, 1
      %p338 = por %p336, %p337
      %p339 = scmp.ne.s32.totalorder %s330, %s331
      %p340 = scmp.eq.s32.totalorder %s41, 0
      %p341 = por %p339, %p340
      %p342 = scmp.ne.s32.totalorder %s330, %s331
      %p343 = scmp.eq.s32.totalorder %s42, 1
      %p344 = por %p342, %p343
      %p346 = scmp.ne.s32.totalorder %s331, %s345
      %p347 = scmp.eq.s32.totalorder %s42, 0
      %p348 = por %p346, %p347
      %s350 = sadd.s32 %s349, 1
      %p353 = scmp.eq.s32.totalorder %s36, 1
      %p354 = scmp.ne.s32.totalorder %s349, %s351
      %p355 = scmp.eq.s32.totalorder %s36, 0
      %p356 = por %p354, %p355
      %p357 = scmp.ne.s32.totalorder %s349, %s351
      %p358 = scmp.eq.s32.totalorder %s41, 1
      %p359 = por %p357, %p358
      %p360 = scmp.ne.s32.totalorder %s351, %s352
      %p361 = scmp.eq.s32.totalorder %s41, 0
      %p362 = por %p360, %p361
      %p363 = scmp.ne.s32.totalorder %s351, %s352
      %p364 = scmp.eq.s32.totalorder %s42, 1
      %p365 = por %p363, %p364
      %p367 = scmp.ne.s32.totalorder %s352, %s366
      %p368 = scmp.eq.s32.totalorder %s42, 0
      %p369 = por %p367, %p368
      %s371 = sadd.s32 %s370, 1
      %p374 = scmp.eq.s32.totalorder %s36, 1
      %p375 = scmp.ne.s32.totalorder %s370, %s372
      %p376 = scmp.eq.s32.totalorder %s36, 0
      %p377 = por %p375, %p376
      %p378 = scmp.ne.s32.totalorder %s370, %s372
      %p379 = scmp.eq.s32.totalorder %s41, 1
      %p380 = por %p378, %p379
      %p381 = scmp.ne.s32.totalorder %s372, %s373
      %p382 = scmp.eq.s32.totalorder %s41, 0
      %p383 = por %p381, %p382
      %p384 = scmp.ne.s32.totalorder %s372, %s373
      %p385 = scmp.eq.s32.totalorder %s42, 1
      %p386 = por %p384, %p385
      %p388 = scmp.ne.s32.totalorder %s373, %s387
      %p389 = scmp.eq.s32.totalorder %s42, 0
      %p390 = por %p388, %p389
      %s392 = sadd.s32 %s391, 1
      %p395 = scmp.eq.s32.totalorder %s36, 1
      %p396 = scmp.ne.s32.totalorder %s391, %s393
      %p397 = scmp.eq.s32.totalorder %s36, 0
      %p398 = por %p396, %p397
      %p399 = scmp.ne.s32.totalorder %s391, %s393
      %p400 = scmp.eq.s32.totalorder %s41, 1
      %p401 = por %p399, %p400
      %p402 = scmp.ne.s32.totalorder %s393, %s394
      %p403 = scmp.eq.s32.totalorder %s41, 0
      %p404 = por %p402, %p403
      %p405 = scmp.ne.s32.totalorder %s393, %s394
      %p406 = scmp.eq.s32.totalorder %s42, 1
      %p407 = por %p405, %p406
      %p409 = scmp.ne.s32.totalorder %s394, %s408
      %p410 = scmp.eq.s32.totalorder %s42, 0
      %p411 = por %p409, %p410
      %s413 = sadd.s32 %s412, 1
      %p416 = scmp.eq.s32.totalorder %s36, 1
      %p417 = scmp.ne.s32.totalorder %s412, %s414
      %p418 = scmp.eq.s32.totalorder %s36, 0
      %p419 = por %p417, %p418
      %p420 = scmp.ne.s32.totalorder %s412, %s414
      %p421 = scmp.eq.s32.totalorder %s41, 1
      %p422 = por %p420, %p421
      %p423 = scmp.ne.s32.totalorder %s414, %s415
      %p424 = scmp.eq.s32.totalorder %s41, 0
      %p425 = por %p423, %p424
      %p426 = scmp.ne.s32.totalorder %s414, %s415
      %p427 = scmp.eq.s32.totalorder %s42, 1
      %p428 = por %p426, %p427
      %p430 = scmp.ne.s32.totalorder %s415, %s429
      %p431 = scmp.eq.s32.totalorder %s42, 0
      %p432 = por %p430, %p431
      %s434 = sadd.s32 %s433, 1
      %p437 = scmp.eq.s32.totalorder %s36, 1
      %p438 = scmp.ne.s32.totalorder %s433, %s435
      %p439 = scmp.eq.s32.totalorder %s36, 0
      %p440 = por %p438, %p439
      %p441 = scmp.ne.s32.totalorder %s433, %s435
      %p442 = scmp.eq.s32.totalorder %s41, 1
      %p443 = por %p441, %p442
      %p444 = scmp.ne.s32.totalorder %s435, %s436
      %p445 = scmp.eq.s32.totalorder %s41, 0
      %p446 = por %p444, %p445
      %p447 = scmp.ne.s32.totalorder %s435, %s436
      %p448 = scmp.eq.s32.totalorder %s42, 1
      %p449 = por %p447, %p448
      %p451 = scmp.ne.s32.totalorder %s436, %s450
      %p452 = scmp.eq.s32.totalorder %s42, 0
      %p453 = por %p451, %p452
      %s454 = ssub.s32 %s44, %s51
      %p455 = scmp.eq.s32.totalorder %s454, 0
      %s457 = sadd.s32 %s456, 1
      %s458 = scalar_select %p455, %s456, %s457
      %p461 = pneg %p455
      %p462 = scmp.eq.s32.totalorder %s36, 1
      %p463 = por %p461, %p462
      %p464 = scmp.ne.s32.totalorder %s456, %s459
      %p465 = scmp.eq.s32.totalorder %s36, 0
      %p466 = por %p464, %p465
      %p467 = scmp.ne.s32.totalorder %s456, %s459
      %p468 = scmp.eq.s32.totalorder %s41, 1
      %p469 = por %p467, %p468
      %p470 = scmp.ne.s32.totalorder %s459, %s460
      %p471 = scmp.eq.s32.totalorder %s41, 0
      %p472 = por %p470, %p471
      %p473 = scmp.ne.s32.totalorder %s459, %s460
      %p474 = scmp.eq.s32.totalorder %s42, 1
      %p475 = por %p473, %p474
      %p477 = scmp.ne.s32.totalorder %s460, %s476
      %p478 = scmp.eq.s32.totalorder %s42, 0
      %p479 = por %p477, %p478
      %s480 = ssub.s32 %s44, %s51
      %p481 = scmp.eq.s32.totalorder %s480, 0
      %s483 = sadd.s32 %s482, 1
      %s484 = scalar_select %p481, %s482, %s483
      %p487 = pneg %p481
      %p488 = scmp.eq.s32.totalorder %s36, 1
      %p489 = por %p487, %p488
      %p490 = scmp.ne.s32.totalorder %s482, %s485
      %p491 = scmp.eq.s32.totalorder %s36, 0
      %p492 = por %p490, %p491
      %p493 = scmp.ne.s32.totalorder %s482, %s485
      %p494 = scmp.eq.s32.totalorder %s41, 1
      %p495 = por %p493, %p494
      %p496 = scmp.ne.s32.totalorder %s485, %s486
      %p497 = scmp.eq.s32.totalorder %s41, 0
      %p498 = por %p496, %p497
      %p499 = scmp.ne.s32.totalorder %s485, %s486
      %p500 = scmp.eq.s32.totalorder %s42, 1
      %p501 = por %p499, %p500
      %p503 = scmp.ne.s32.totalorder %s486, %s502
      %p504 = scmp.eq.s32.totalorder %s42, 0
      %p505 = por %p503, %p504
      %s506 = ssub.s32 %s44, %s51
      %p507 = scmp.eq.s32.totalorder %s506, 0
      %s509 = sadd.s32 %s508, 1
      %s510 = scalar_select %p507, %s508, %s509
      %p513 = pneg %p507
      %p514 = scmp.eq.s32.totalorder %s36, 1
      %p515 = por %p513, %p514
      %p516 = scmp.ne.s32.totalorder %s508, %s511
      %p517 = scmp.eq.s32.totalorder %s36, 0
      %p518 = por %p516, %p517
      %p519 = scmp.ne.s32.totalorder %s508, %s511
      %p520 = scmp.eq.s32.totalorder %s41, 1
      %p521 = por %p519, %p520
      %p522 = scmp.ne.s32.totalorder %s511, %s512
      %p523 = scmp.eq.s32.totalorder %s41, 0
      %p524 = por %p522, %p523
      %p525 = scmp.ne.s32.totalorder %s511, %s512
      %p526 = scmp.eq.s32.totalorder %s42, 1
      %p527 = por %p525, %p526
      %p529 = scmp.ne.s32.totalorder %s512, %s528
      %p530 = scmp.eq.s32.totalorder %s42, 0
      %p531 = por %p529, %p530
      %s533 = sadd.s32 %s532, 1
      %p536 = scmp.eq.s32.totalorder %s36, 1
      %p537 = scmp.ne.s32.totalorder %s532, %s534
      %p538 = scmp.eq.s32.totalorder %s36, 0
      %p539 = por %p537, %p538
      %p540 = scmp.ne.s32.totalorder %s532, %s534
      %p541 = scmp.eq.s32.totalorder %s41, 1
      %p542 = por %p540, %p541
      %p543 = scmp.ne.s32.totalorder %s534, %s535
      %p544 = scmp.eq.s32.totalorder %s41, 0
      %p545 = por %p543, %p544
      %p546 = scmp.ne.s32.totalorder %s534, %s535
      %p547 = scmp.eq.s32.totalorder %s42, 1
      %p548 = por %p546, %p547
      %p550 = scmp.ne.s32.totalorder %s535, %s549
      %p551 = scmp.eq.s32.totalorder %s42, 0
      %p552 = por %p550, %p551
      %s554 = sadd.s32 %s553, 1
      %p557 = scmp.eq.s32.totalorder %s36, 1
      %p558 = scmp.ne.s32.totalorder %s553, %s555
      %p559 = scmp.eq.s32.totalorder %s36, 0
      %p560 = por %p558, %p559
      %p561 = scmp.ne.s32.totalorder %s553, %s555
      %p562 = scmp.eq.s32.totalorder %s41, 1
      %p563 = por %p561, %p562
      %p564 = scmp.ne.s32.totalorder %s555, %s556
      %p565 = scmp.eq.s32.totalorder %s41, 0
      %p566 = por %p564, %p565
      %p567 = scmp.ne.s32.totalorder %s555, %s556
      %p568 = scmp.eq.s32.totalorder %s42, 1
      %p569 = por %p567, %p568
      %p571 = scmp.ne.s32.totalorder %s556, %s570
      %p572 = scmp.eq.s32.totalorder %s42, 0
      %p573 = por %p571, %p572
      %s575 = sadd.s32 %s574, 1
      %p578 = scmp.eq.s32.totalorder %s36, 1
      %p579 = scmp.ne.s32.totalorder %s574, %s576
      %p580 = scmp.eq.s32.totalorder %s36, 0
      %p581 = por %p579, %p580
      %p582 = scmp.ne.s32.totalorder %s574, %s576
      %p583 = scmp.eq.s32.totalorder %s41, 1
      %p584 = por %p582, %p583
      %p585 = scmp.ne.s32.totalorder %s576, %s577
      %p586 = scmp.eq.s32.totalorder %s41, 0
      %p587 = por %p585, %p586
      %p588 = scmp.ne.s32.totalorder %s576, %s577
      %p589 = scmp.eq.s32.totalorder %s42, 1
      %p590 = por %p588, %p589
      %p592 = scmp.ne.s32.totalorder %s577, %s591
      %p593 = scmp.eq.s32.totalorder %s42, 0
      %p594 = por %p592, %p593
      %s595 = ssub.s32 %s43, %s55
      %p596 = scmp.eq.s32.totalorder %s595, 0
      %s598 = sadd.s32 %s597, 1
      %s599 = scalar_select %p596, %s597, %s598
      %p602 = pneg %p596
      %p603 = scmp.eq.s32.totalorder %s36, 1
      %p604 = por %p602, %p603
      %p605 = scmp.ne.s32.totalorder %s597, %s600
      %p606 = scmp.eq.s32.totalorder %s36, 0
      %p607 = por %p605, %p606
      %p608 = scmp.ne.s32.totalorder %s597, %s600
      %p609 = scmp.eq.s32.totalorder %s41, 1
      %p610 = por %p608, %p609
      %p611 = scmp.ne.s32.totalorder %s600, %s601
      %p612 = scmp.eq.s32.totalorder %s41, 0
      %p613 = por %p611, %p612
      %p614 = scmp.ne.s32.totalorder %s600, %s601
      %p615 = scmp.eq.s32.totalorder %s42, 1
      %p616 = por %p614, %p615
      %p618 = scmp.ne.s32.totalorder %s601, %s617
      %p619 = scmp.eq.s32.totalorder %s42, 0
      %p620 = por %p618, %p619
      %s621 = ssub.s32 %s43, %s55
      %p622 = scmp.eq.s32.totalorder %s621, 0
      %s624 = sadd.s32 %s623, 1
      %s625 = scalar_select %p622, %s623, %s624
      %p628 = pneg %p622
      %p629 = scmp.eq.s32.totalorder %s36, 1
      %p630 = por %p628, %p629
      %p631 = scmp.ne.s32.totalorder %s623, %s626
      %p632 = scmp.eq.s32.totalorder %s36, 0
      %p633 = por %p631, %p632
      %p634 = scmp.ne.s32.totalorder %s623, %s626
      %p635 = scmp.eq.s32.totalorder %s41, 1
      %p636 = por %p634, %p635
      %p637 = scmp.ne.s32.totalorder %s626, %s627
      %p638 = scmp.eq.s32.totalorder %s41, 0
      %p639 = por %p637, %p638
      %p640 = scmp.ne.s32.totalorder %s626, %s627
      %p641 = scmp.eq.s32.totalorder %s42, 1
      %p642 = por %p640, %p641
      %p644 = scmp.ne.s32.totalorder %s627, %s643
      %p645 = scmp.eq.s32.totalorder %s42, 0
      %p646 = por %p644, %p645
      %p647 = scmp.le.s32.totalorder 1, %s36
      %p648 = scmp.lt.s32.totalorder %s36, 3
      %p649 = pnand %p647, %p648
      %p650 = pneg %p649
      // Predicated region
      $region9: #{decoder_forward.4} parent=5 // pred_check
        _
      $region10: #{decoder_forward.4} parent=5 // pred_check_branch
        %652 = sbr.rel (%p649) target = $region12
      $region11: #{decoder_forward.4} parent=5 // pred_region
        %s653 = ssub.s32 %s36, 1
        // Predicated region
        $region13: #{decoder_forward.4} parent=11 // pred_check
          %p654 = pneg %p173
        $region14: #{decoder_forward.4} parent=11 // pred_check_branch
          %656 = sbr.rel (%p654) target = $region16
        $region15: #{decoder_forward.4} parent=11 // pred_region
          _
        $region16: #{decoder_forward.4} parent=11 // pred_fallthru
          _
        // Predicated region
        $region17: #{decoder_forward.4} parent=11 // pred_check
          %p657 = pneg %p194
        $region18: #{decoder_forward.4} parent=11 // pred_check_branch
          %659 = sbr.rel (%p657) target = $region20
        $region19: #{decoder_forward.4} parent=11 // pred_region
          _
        $region20: #{decoder_forward.4} parent=11 // pred_fallthru
          _
        // Predicated region
        $region21: #{decoder_forward.4} parent=11 // pred_check
          %p660 = pneg %p215
        $region22: #{decoder_forward.4} parent=11 // pred_check_branch
          %662 = sbr.rel (%p660) target = $region24
        $region23: #{decoder_forward.4} parent=11 // pred_region
          _
        $region24: #{decoder_forward.4} parent=11 // pred_fallthru
          _
        // Predicated region
        $region25: #{decoder_forward.4} parent=11 // pred_check
          %p663 = pneg %p236
        $region26: #{decoder_forward.4} parent=11 // pred_check_branch
          %665 = sbr.rel (%p663) target = $region28
        $region27: #{decoder_forward.4} parent=11 // pred_region
          _
        $region28: #{decoder_forward.4} parent=11 // pred_fallthru
          _
        // Predicated region
        $region29: #{decoder_forward.4} parent=11 // pred_check
          %p666 = pneg %p257
        $region30: #{decoder_forward.4} parent=11 // pred_check_branch
          %668 = sbr.rel (%p666) target = $region32
        $region31: #{decoder_forward.4} parent=11 // pred_region
          _
        $region32: #{decoder_forward.4} parent=11 // pred_fallthru
          _
        // Predicated region
        $region33: #{decoder_forward.4} parent=11 // pred_check
          %p669 = pneg %p278
        $region34: #{decoder_forward.4} parent=11 // pred_check_branch
          %671 = sbr.rel (%p669) target = $region36
        $region35: #{decoder_forward.4} parent=11 // pred_region
          _
        $region36: #{decoder_forward.4} parent=11 // pred_fallthru
          _
        // Predicated region
        $region37: #{decoder_forward.4} parent=11 // pred_check
          %p672 = pneg %p299
        $region38: #{decoder_forward.4} parent=11 // pred_check_branch
          %674 = sbr.rel (%p672) target = $region40
        $region39: #{decoder_forward.4} parent=11 // pred_region
          _
        $region40: #{decoder_forward.4} parent=11 // pred_fallthru
          _
        // Predicated region
        $region41: #{decoder_forward.4} parent=11 // pred_check
          %p675 = pneg %p320
        $region42: #{decoder_forward.4} parent=11 // pred_check_branch
          %677 = sbr.rel (%p675) target = $region44
        $region43: #{decoder_forward.4} parent=11 // pred_region
          _
        $region44: #{decoder_forward.4} parent=11 // pred_fallthru
          _
        // Predicated region
        $region45: #{decoder_forward.4} parent=11 // pred_check
          %p678 = pneg %p341
        $region46: #{decoder_forward.4} parent=11 // pred_check_branch
          %680 = sbr.rel (%p678) target = $region48
        $region47: #{decoder_forward.4} parent=11 // pred_region
          _
        $region48: #{decoder_forward.4} parent=11 // pred_fallthru
          _
        // Predicated region
        $region49: #{decoder_forward.4} parent=11 // pred_check
          %p681 = pneg %p362
        $region50: #{decoder_forward.4} parent=11 // pred_check_branch
          %683 = sbr.rel (%p681) target = $region52
        $region51: #{decoder_forward.4} parent=11 // pred_region
          _
        $region52: #{decoder_forward.4} parent=11 // pred_fallthru
          _
        // Predicated region
        $region53: #{decoder_forward.4} parent=11 // pred_check
          %p684 = pneg %p383
        $region54: #{decoder_forward.4} parent=11 // pred_check_branch
          %686 = sbr.rel (%p684) target = $region56
        $region55: #{decoder_forward.4} parent=11 // pred_region
          _
        $region56: #{decoder_forward.4} parent=11 // pred_fallthru
          _
        // Predicated region
        $region57: #{decoder_forward.4} parent=11 // pred_check
          %p687 = pneg %p404
        $region58: #{decoder_forward.4} parent=11 // pred_check_branch
          %689 = sbr.rel (%p687) target = $region60
        $region59: #{decoder_forward.4} parent=11 // pred_region
          _
        $region60: #{decoder_forward.4} parent=11 // pred_fallthru
          _
        // Predicated region
        $region61: #{decoder_forward.4} parent=11 // pred_check
          %p690 = pneg %p425
        $region62: #{decoder_forward.4} parent=11 // pred_check_branch
          %692 = sbr.rel (%p690) target = $region64
        $region63: #{decoder_forward.4} parent=11 // pred_region
          %694 = vsyncadd [#allocation5], 0
          %s696 = sshll.u32 %s16, 4
          %s697 = int_to_ptr.hbm [resolvable:$true] %s696
          %s698 = sshll.u32 [#allocation4], 4
          %s699 = int_to_ptr.vmem [resolvable:$true] %s698
          %701 = dma.hbm_to_vmem [thread:$0]  %s697, 16, %s699, [#allocation5]
        $region64: #{decoder_forward.4} parent=11 // pred_fallthru
          _
        // Predicated region
        $region65: #{decoder_forward.4} parent=11 // pred_check
          %p702 = pneg %p446
        $region66: #{decoder_forward.4} parent=11 // pred_check_branch
          %704 = sbr.rel (%p702) target = $region68
        $region67: #{decoder_forward.4} parent=11 // pred_region
          %706 = vsyncadd [#allocation7], 0
          %s708 = sshll.u32 %s17, 4
          %s709 = int_to_ptr.hbm [resolvable:$true] %s708
          %s710 = sshll.u32 [#allocation6], 4
          %s711 = int_to_ptr.vmem [resolvable:$true] %s710
          %713 = dma.hbm_to_vmem [thread:$0]  %s709, 16, %s711, [#allocation7]
        $region68: #{decoder_forward.4} parent=11 // pred_fallthru
          _
        // Predicated region
        $region69: #{decoder_forward.4} parent=11 // pred_check
          %p714 = pneg %p472
        $region70: #{decoder_forward.4} parent=11 // pred_check_branch
          %716 = sbr.rel (%p714) target = $region72
        $region71: #{decoder_forward.4} parent=11 // pred_region
          %p717 = scmp.lt.s32.totalorder %s46, 0
          %s718 = scalar_select %p717, %s46, 0
          %s719 = smul.addr %s718, 4
          %s720 = scalar_lea.vmem %s18, %s719
        $region72: #{decoder_forward.4} parent=11 // pred_fallthru
          _
        // Predicated region
        $region73: #{decoder_forward.4} parent=11 // pred_check
          %p721 = pneg %p498
        $region74: #{decoder_forward.4} parent=11 // pred_check_branch
          %723 = sbr.rel (%p721) target = $region76
        $region75: #{decoder_forward.4} parent=11 // pred_region
          %725 = vsyncadd [#allocation7], 0
          %s726 = scalar_lea.hbm %s19, %s46
          %s728 = sshll.u32 %s726, 4
          %s729 = int_to_ptr.hbm [resolvable:$true] %s728
          %s730 = sshll.u32 [#allocation8], 4
          %s731 = int_to_ptr.vmem [resolvable:$true] %s730
          %733 = dma.hbm_to_vmem [thread:$0]  %s729, 16, %s731, [#allocation7]
        $region76: #{decoder_forward.4} parent=11 // pred_fallthru
          _
        // Predicated region
        $region77: #{decoder_forward.4} parent=11 // pred_check
          %p734 = pneg %p524
        $region78: #{decoder_forward.4} parent=11 // pred_check_branch
          %736 = sbr.rel (%p734) target = $region80
        $region79: #{decoder_forward.4} parent=11 // pred_region
          %s737 = smul.u32 8, %s46
          %p738 = scmp.lt.s32.totalorder %s737, 7
          %s739 = scalar_select %p738, %s737, 7
          %s740 = smul.addr %s739, 4
          %s741 = scalar_lea.vmem %s20, %s740
          %s742 = smul.u32 8, %s46
        $region80: #{decoder_forward.4} parent=11 // pred_fallthru
          _
        // Predicated region
        $region81: #{decoder_forward.4} parent=11 // pred_check
          %p743 = pneg %p545
        $region82: #{decoder_forward.4} parent=11 // pred_check_branch
          %745 = sbr.rel (%p743) target = $region84
        $region83: #{decoder_forward.4} parent=11 // pred_region
          %747 = vsyncadd [#allocation10], 0
          %s749 = sshll.u32 %s21, 4
          %s750 = int_to_ptr.hbm [resolvable:$true] %s749
          %s751 = sshll.u32 [#allocation9], 4
          %s752 = int_to_ptr.vmem [resolvable:$true] %s751
          %754 = dma.hbm_to_vmem [thread:$0]  %s750, 16, %s752, [#allocation10]
        $region84: #{decoder_forward.4} parent=11 // pred_fallthru
          _
        // Predicated region
        $region85: #{decoder_forward.4} parent=11 // pred_check
          %p755 = pneg %p566
        $region86: #{decoder_forward.4} parent=11 // pred_check_branch
          %757 = sbr.rel (%p755) target = $region88
        $region87: #{decoder_forward.4} parent=11 // pred_region
          %759 = vsyncadd [#allocation10], 0
          %s761 = sshll.u32 %s22, 4
          %s762 = int_to_ptr.hbm [resolvable:$true] %s761
          %s763 = sshll.u32 [#allocation11], 4
          %s764 = int_to_ptr.vmem [resolvable:$true] %s763
          %766 = dma.hbm_to_vmem [thread:$0]  %s762, 16, %s764, [#allocation10]
        $region88: #{decoder_forward.4} parent=11 // pred_fallthru
          _
        // Predicated region
        $region89: #{decoder_forward.4} parent=11 // pred_check
          %p767 = pneg %p587
        $region90: #{decoder_forward.4} parent=11 // pred_check_branch
          %769 = sbr.rel (%p767) target = $region92
        $region91: #{decoder_forward.4} parent=11 // pred_region
          %771 = vsyncadd [#allocation13], 0
          %s773 = sshll.u32 %s23, 4
          %s774 = int_to_ptr.hbm [resolvable:$true] %s773
          %s775 = sshll.u32 [#allocation12], 4
          %s776 = int_to_ptr.vmem [resolvable:$true] %s775
          %778 = dma.hbm_to_vmem [thread:$0]  %s774, 16, %s776, [#allocation13]
        $region92: #{decoder_forward.4} parent=11 // pred_fallthru
          _
      $region12: #{decoder_forward.4} parent=5 // pred_fallthru
        _
      %p779 = scmp.lt.s32.totalorder %s36, 2
      // Predicated region
      $region93: #{decoder_forward.4} parent=5 // pred_check
        %p780 = pneg %p779
      $region94: #{decoder_forward.4} parent=5 // pred_check_branch
        %782 = sbr.rel (%p780) target = $region96
      $region95: #{decoder_forward.4} parent=5 // pred_region
        // Predicated region
        $region97: #{decoder_forward.4} parent=95 // pred_check
          %p783 = pneg %p68
        $region98: #{decoder_forward.4} parent=95 // pred_check_branch
          %785 = sbr.rel (%p783) target = $region100
        $region99: #{decoder_forward.4} parent=95 // pred_region
          %p786 = scmp.lt.s32.totalorder %s43, 1
          %s787 = scalar_select %p786, %s43, 1
          %s788 = smul.addr %s787, 4
          %s789 = scalar_lea.vmem %s0, %s788
        $region100: #{decoder_forward.4} parent=95 // pred_fallthru
          _
        // Predicated region
        $region101: #{decoder_forward.4} parent=95 // pred_check
          %p790 = pneg %p94
        $region102: #{decoder_forward.4} parent=95 // pred_check_branch
          %792 = sbr.rel (%p790) target = $region104
        $region103: #{decoder_forward.4} parent=95 // pred_region
          %p793 = scmp.lt.s32.totalorder %s43, 1
          %s794 = scalar_select %p793, %s43, 1
          %s795 = smul.addr %s794, 4
          %s796 = scalar_lea.vmem %s1, %s795
        $region104: #{decoder_forward.4} parent=95 // pred_fallthru
          _
        // Predicated region
        $region105: #{decoder_forward.4} parent=95 // pred_check
          %p797 = pneg %p120
        $region106: #{decoder_forward.4} parent=95 // pred_check_branch
          %799 = sbr.rel (%p797) target = $region108
        $region107: #{decoder_forward.4} parent=95 // pred_region
          %p800 = scmp.lt.s32.totalorder %s43, 1
          %s801 = scalar_select %p800, %s43, 1
          %s802 = scalar_lea.vmem %s2, %s801
        $region108: #{decoder_forward.4} parent=95 // pred_fallthru
          _
        // Predicated region
        $region109: #{decoder_forward.4} parent=95 // pred_check
          %p803 = pneg %p146
        $region110: #{decoder_forward.4} parent=95 // pred_check_branch
          %805 = sbr.rel (%p803) target = $region112
        $region111: #{decoder_forward.4} parent=95 // pred_region
          %p806 = scmp.lt.s32.totalorder %s43, 1
          %s807 = scalar_select %p806, %s43, 1
          %s808 = scalar_lea.vmem %s3, %s807
        $region112: #{decoder_forward.4} parent=95 // pred_fallthru
          _
      $region96: #{decoder_forward.4} parent=5 // pred_fallthru
        _
      %p809 = scmp.le.s32.totalorder 1, %s36
      %p810 = scmp.lt.s32.totalorder %s36, 3
      %p811 = pnand %p809, %p810
      %p812 = pneg %p811
      // Predicated region
      $region113: #{decoder_forward.4} parent=5 // pred_check
        _
      $region114: #{decoder_forward.4} parent=5 // pred_check_branch
        %814 = sbr.rel (%p811) target = $region116
      $region115: #{decoder_forward.4} parent=5 // pred_region
        %s815 = ssub.s32 %s36, 1
        // Predicated region
        $region117: #{decoder_forward.4} parent=115 // pred_check
          %p816 = pneg %p425
        $region118: #{decoder_forward.4} parent=115 // pred_check_branch
          %818 = sbr.rel (%p816) target = $region120
        $region119: #{decoder_forward.4} parent=115 // pred_region
          %820 = dma.done [#allocation5], 16
        $region120: #{decoder_forward.4} parent=115 // pred_fallthru
          _
        // Predicated region
        $region121: #{decoder_forward.4} parent=115 // pred_check
          %p821 = pneg %p446
        $region122: #{decoder_forward.4} parent=115 // pred_check_branch
          %823 = sbr.rel (%p821) target = $region124
        $region123: #{decoder_forward.4} parent=115 // pred_region
          %825 = dma.done [#allocation7], 16
        $region124: #{decoder_forward.4} parent=115 // pred_fallthru
          _
        // Predicated region
        $region125: #{decoder_forward.4} parent=115 // pred_check
          %p826 = pneg %p498
        $region126: #{decoder_forward.4} parent=115 // pred_check_branch
          %828 = sbr.rel (%p826) target = $region128
        $region127: #{decoder_forward.4} parent=115 // pred_region
          %830 = dma.done [#allocation7], 16
        $region128: #{decoder_forward.4} parent=115 // pred_fallthru
          _
        // Predicated region
        $region129: #{decoder_forward.4} parent=115 // pred_check
          %p831 = pneg %p545
        $region130: #{decoder_forward.4} parent=115 // pred_check_branch
          %833 = sbr.rel (%p831) target = $region132
        $region131: #{decoder_forward.4} parent=115 // pred_region
          %835 = dma.done [#allocation10], 16
        $region132: #{decoder_forward.4} parent=115 // pred_fallthru
          _
        // Predicated region
        $region133: #{decoder_forward.4} parent=115 // pred_check
          %p836 = pneg %p566
        $region134: #{decoder_forward.4} parent=115 // pred_check_branch
          %838 = sbr.rel (%p836) target = $region136
        $region135: #{decoder_forward.4} parent=115 // pred_region
          %840 = dma.done [#allocation10], 16
        $region136: #{decoder_forward.4} parent=115 // pred_fallthru
          _
        // Predicated region
        $region137: #{decoder_forward.4} parent=115 // pred_check
          %p841 = pneg %p587
        $region138: #{decoder_forward.4} parent=115 // pred_check_branch
          %843 = sbr.rel (%p841) target = $region140
        $region139: #{decoder_forward.4} parent=115 // pred_region
          %845 = dma.done [#allocation13], 16
        $region140: #{decoder_forward.4} parent=115 // pred_fallthru
          _
        %p846 = scmp.lt.s32.totalorder %s45, 1
        %s847 = scalar_select %p846, %s45, 1
        %s848 = smul.addr %s847, 4
        %s849 = scalar_lea.vmem %s0, %s848
        %p850 = pneg %p74
        %p851 = pneg %p71
        %p852 = scmp.lt.s32.totalorder %s45, 1
        %s853 = scalar_select %p852, %s45, 1
        %s854 = smul.addr %s853, 4
        %s855 = scalar_lea.vmem %s1, %s854
        %p856 = pneg %p100
        %p857 = pneg %p97
        %p858 = scmp.lt.s32.totalorder %s45, 1
        %s859 = scalar_select %p858, %s45, 1
        %s860 = scalar_lea.vmem %s2, %s859
        %p861 = pneg %p126
        %p862 = pneg %p123
        %p863 = scmp.lt.s32.totalorder %s45, 1
        %s864 = scalar_select %p863, %s45, 1
        %s865 = scalar_lea.vmem %s3, %s864
        %p866 = pneg %p152
        %p867 = pneg %p149
        %p868 = pneg %p173
        %p869 = pneg %p170
        %p870 = pneg %p194
        %p871 = pneg %p191
        %p872 = pneg %p215
        %p873 = pneg %p212
        %p874 = pneg %p236
        %p875 = pneg %p233
        %p876 = pneg %p257
        %p877 = pneg %p254
        %p878 = pneg %p278
        %p879 = pneg %p275
        %p880 = pneg %p299
        %p881 = pneg %p296
        %p882 = pneg %p320
        %p883 = pneg %p317
        %p884 = pneg %p341
        %p885 = pneg %p338
        %p886 = pneg %p362
        %p887 = pneg %p359
        %p888 = pneg %p383
        %p889 = pneg %p380
        %p890 = pneg %p404
        %p891 = pneg %p401
        %p892 = pneg %p425
        %p893 = pneg %p422
        %p894 = pneg %p446
        %p895 = pneg %p443
        %p896 = scmp.lt.s32.totalorder %s46, 0
        %s897 = scalar_select %p896, %s46, 0
        %s898 = smul.addr %s897, 4
        %s899 = scalar_lea.vmem %s18, %s898
        %p900 = pneg %p472
        %p901 = pneg %p469
        %p902 = pneg %p498
        %p903 = pneg %p495
        %s904 = smul.u32 8, %s46
        %p905 = scmp.lt.s32.totalorder %s904, 7
        %s906 = scalar_select %p905, %s904, 7
        %s907 = smul.addr %s906, 4
        %s908 = scalar_lea.vmem %s20, %s907
        %p909 = pneg %p524
        %p910 = pneg %p521
        %p911 = pneg %p545
        %p912 = pneg %p542
        %p913 = pneg %p566
        %p914 = pneg %p563
        %p915 = pneg %p587
        %p916 = pneg %p584
        %p917 = pneg %p613
        %p918 = pneg %p610
        %p919 = scmp.lt.s32.totalorder %s45, 1
        %s920 = scalar_select %p919, %s45, 1
        %s921 = smul.addr %s920, 4
        %s922 = scalar_lea.vmem %s24, %s921
        %p923 = pneg %p639
        %p924 = pneg %p636
        %p925 = scmp.lt.s32.totalorder %s45, 1
        %s926 = scalar_select %p925, %s45, 1
        %s927 = smul.addr %s926, 4
        %s928 = smul.addr %s927, 4
        %s929 = scalar_lea.vmem %s25, %s928
        %p930 = scmp.lt.s32.totalorder %s45, 1
        %s931 = scalar_select %p930, %s45, 1
        %s932 = smul.addr %s931, 4
        %s933 = scalar_lea.vmem %s0, %s932
        %p934 = scmp.lt.s32.totalorder %s45, 1
        %s935 = scalar_select %p934, %s45, 1
        %s936 = smul.addr %s935, 4
        %s937 = scalar_lea.vmem %s1, %s936
        %p938 = scmp.lt.s32.totalorder %s45, 1
        %s939 = scalar_select %p938, %s45, 1
        %s940 = scalar_lea.vmem %s2, %s939
        %p941 = scmp.lt.s32.totalorder %s45, 1
        %s942 = scalar_select %p941, %s45, 1
        %s943 = scalar_lea.vmem %s3, %s942
        %p944 = scmp.lt.s32.totalorder %s46, 0
        %s945 = scalar_select %p944, %s46, 0
        %s946 = smul.addr %s945, 4
        %s947 = scalar_lea.vmem %s18, %s946
        %s948 = smul.u32 8, %s46
        %p949 = scmp.lt.s32.totalorder %s948, 7
        %s950 = scalar_select %p949, %s948, 7
        %s951 = smul.addr %s950, 4
        %s952 = scalar_lea.vmem %s20, %s951
        %s953 = smul.u32 8, %s46
        %p954 = scmp.lt.s32.totalorder %s45, 1
        %s955 = scalar_select %p954, %s45, 1
        %s956 = smul.addr %s955, 4
        %s957 = scalar_lea.vmem %s24, %s956
        %p958 = scmp.lt.s32.totalorder %s45, 1
        %s959 = scalar_select %p958, %s45, 1
        %s960 = smul.addr %s959, 4
        %s961 = smul.addr %s960, 4
        %s962 = scalar_lea.vmem %s25, %s961
        %p964 = scmp.eq.s32.totalorder %s46, 0
        // Predicated region
        $region141: #{decoder_forward.4} parent=115 // pred_check
          %p965 = pneg %p964
        $region142: #{decoder_forward.4} parent=115 // pred_check_branch
          %967 = sbr.rel (%p965) target = $region144
        $region143: #{decoder_forward.4} parent=115 // pred_region
          %v968 = vld [vmem:[%s933] sm:$0xf]
          %v969 = vunpack.c.l.bf16 %v968
          %v970 = vlaneseq
          %v971 = vshrl.u32 %v970, 7
          %v972 = vlaneseq
          %v973 = vand.u32 %v972, 127
          %vm974 = vcmp.le.s32.totalorder %v973, %v971
          %v975 = vld [vmem:[%s940] sm:$0x1]
          %vm976 = vcmp.gt.f32.partialorder %v975, 0.5
          %v977 = vsel %vm976, 1, 0
          %v978 = vperm.slane %v977, 0
          %vm979 = vcmp.eq.s32.totalorder %v978, 1
          %vm980 = vmand %vm974, %vm979
          %v981 = vld [vmem:[%s943] sm:$0x1]
          %vm982 = vcmp.gt.f32.partialorder %v981, 0.5
          %v983 = vld [vmem:[%s4] sm:$0xf]
          %v984 = vld [vmem:[%s4 + $0x4] sm:$0xf]
          %v985 = vld [vmem:[%s4 + $0x8] sm:$0xf]
          %v986 = vld [vmem:[%s4 + $0xc] sm:$0xf]
          %v987 = vld [vmem:[%s5] sm:$0x1]
          %v989 = vperm.slane %v987, 0
          %v995 = vunpack.c.l.b16 %v983
          %v996 = vunpack.c.l.b16 %v984
          %v997 = vunpack.c.l.b16 %v985
          %v998 = vunpack.c.l.b16 %v986
          %v999 = vpack.c.b16 %v996, %v995
          %v1000 = vpack.c.b16 %v998, %v997
          %vm1003 = vcmask 261120
          %v1005 = vsel %vm1003, %v968, 0
          %1007 = vmatpush.bf16.msra.mxu0 0
          %1008 = vmatpush.bf16.msra.mxu0 0
          %1009 = vmatpush.bf16.msra.mxu0 0
          %1010 = vmatpush.bf16.msra.mxu0 0
          %1011 = vmatpush.bf16.msra.mxu0 0
          %1012 = vmatpush.bf16.msra.mxu0 0
          %1013 = vmatpush.bf16.msra.mxu0 %v1000
          %1014 = vmatpush.bf16.msra.mxu0 %v999
          %1015 = vmatmul.bf16.gmra.mxu0 %v1005
          %v1016 = vpop.f32.mrf.mxu0
          %v1017 = vadd.f32 %v989, %v1016
          %v1018 = vpop.f32.mrf.mxu0
          %1019 = vdwg.mxu0
          %v1020 = vpack.c.bf16 %v1017, %v1017
          %1022 = vrot.lane.b32.xlu0 %v1020, 96
          %v1023 = vpop.permute.xlu0 %1022
          %vm1024 = vcmask 64512
          %v1026 = vsel %vm1024, %v1020, 0
          %v1029 = vsel %vm1024, %v1023, 0
          %1031 = vmatpush.bf16.xpose.msra.mxu0 0
          %1032 = vmatpush.bf16.xpose.msra.mxu0 0
          %1033 = vmatpush.bf16.xpose.msra.mxu0 0
          %1034 = vmatpush.bf16.xpose.msra.mxu0 0
          %1035 = vmatpush.bf16.xpose.msra.mxu0 0
          %1036 = vmatpush.bf16.xpose.msra.mxu0 0
          %1037 = vmatpush.bf16.xpose.msra.mxu0 0
          %1038 = vmatpush.bf16.xpose.msra.mxu0 %v1029
          %1039 = vmatmul.bf16.gmra.mxu0 %v1026
          %v1040 = vpop.f32.mrf.mxu0
          %v1041 = vadd.f32 0.0, %v1040
          %v1042 = vpop.f32.mrf.mxu0
          %1043 = vdwg.mxu0
          %v1044 = vmul.f32 %v1041, 0.35355338
          %v1045 = vsel %vm980, %v1044, -1e+10
          %v1046 = vsel %vm1024, %v1045, -inf
          %1047 = vmax.xlane.f32.xlu0 %v1046
          %v1048 = vpop.xlane.xlu0 %1047
          %v1049 = vsub.f32 %v1045, %v1048
          %v1050 = vmul.f32 %v1049, 1.442695
          %v1051 = vpow.pop %v1050
          %v1052 = vsel %vm1024, %v1051, 0.0
          %1053 = vadd.xlane.f32.xlu0 %v1052
          %v1054 = vpop.xlane.xlu0 %1053
          %v1055 = vrcp.pop %v1054
          %v1056 = vmul.f32 %v1051, %v1055
          %v1057 = vpack.c.bf16 %v1056, %v1056
          %1058 = vrot.lane.b32.xlu0 %v1020, 64
          %v1059 = vpop.permute.xlu0 %1058
          %v1061 = vsel %vm1024, %v1057, 0
          %vm1063 = vcmask 1043456
          %v1065 = vsel %vm1063, %v1059, 0
          %1067 = vmatpush.bf16.msra.mxu0 0
          %1068 = vmatpush.bf16.msra.mxu0 0
          %1069 = vmatpush.bf16.msra.mxu0 0
          %1070 = vmatpush.bf16.msra.mxu0 0
          %1071 = vmatpush.bf16.msra.mxu0 0
          %1072 = vmatpush.bf16.msra.mxu0 0
          %1073 = vmatpush.bf16.msra.mxu0 0
          %1074 = vmatpush.bf16.msra.mxu0 %v1065
          %1075 = vmatmul.bf16.gmra.mxu0 %v1061
          %v1076 = vpop.f32.mrf.mxu0
          %v1077 = vadd.f32 0.0, %v1076
          %v1078 = vpop.f32.mrf.mxu0
          %1079 = vdwg.mxu0
          %1080 = vst.msk [vmem:[#allocation3] sm:$0xff] %vm1024, %v1077
          %1081 = vrot.lane.b32.xlu0 %v1020, 120
          %v1082 = vpop.permute.xlu0 %1081
          %1083 = vrot.lane.b32.xlu0 %v1020, 88
          %v1084 = vpop.permute.xlu0 %1083
          %v1086 = vsel %vm1024, %v1082, 0
          %v1089 = vsel %vm1024, %v1084, 0
          %1091 = vmatpush.bf16.xpose.msra.mxu0 0
          %1092 = vmatpush.bf16.xpose.msra.mxu0 0
          %1093 = vmatpush.bf16.xpose.msra.mxu0 0
          %1094 = vmatpush.bf16.xpose.msra.mxu0 0
          %1095 = vmatpush.bf16.xpose.msra.mxu0 0
          %1096 = vmatpush.bf16.xpose.msra.mxu0 0
          %1097 = vmatpush.bf16.xpose.msra.mxu0 0
          %1098 = vmatpush.bf16.xpose.msra.mxu0 %v1089
          %1099 = vmatmul.bf16.gmra.mxu0 %v1086
          %v1100 = vpop.f32.mrf.mxu0
          %v1101 = vadd.f32 0.0, %v1100
          %v1102 = vpop.f32.mrf.mxu0
          %1103 = vdwg.mxu0
          %v1104 = vmul.f32 %v1101, 0.35355338
          %v1105 = vsel %vm980, %v1104, -1e+10
          %v1106 = vsel %vm1024, %v1105, -inf
          %1107 = vmax.xlane.f32.xlu0 %v1106
          %v1108 = vpop.xlane.xlu0 %1107
          %v1109 = vsub.f32 %v1105, %v1108
          %v1110 = vmul.f32 %v1109, 1.442695
          %v1111 = vpow.pop %v1110
          %v1112 = vsel %vm1024, %v1111, 0.0
          %1113 = vadd.xlane.f32.xlu0 %v1112
          %v1114 = vpop.xlane.xlu0 %1113
          %v1115 = vrcp.pop %v1114
          %v1116 = vmul.f32 %v1111, %v1115
          %v1117 = vpack.c.bf16 %v1116, %v1116
          %1118 = vrot.lane.b32.xlu0 %v1020, 56
          %v1119 = vpop.permute.xlu0 %1118
          %v1121 = vsel %vm1024, %v1117, 0
          %v1124 = vsel %vm1063, %v1119, 0
          %1126 = vmatpush.bf16.msra.mxu0 0
          %1127 = vmatpush.bf16.msra.mxu0 0
          %1128 = vmatpush.bf16.msra.mxu0 0
          %1129 = vmatpush.bf16.msra.mxu0 0
          %1130 = vmatpush.bf16.msra.mxu0 0
          %1131 = vmatpush.bf16.msra.mxu0 0
          %1132 = vmatpush.bf16.msra.mxu0 0
          %1133 = vmatpush.bf16.msra.mxu0 %v1124
          %1134 = vmatmul.bf16.gmra.mxu0 %v1121
          %v1135 = vpop.f32.mrf.mxu0
          %v1136 = vadd.f32 0.0, %v1135
          %v1137 = vpop.f32.mrf.mxu0
          %1138 = vdwg.mxu0
          %1140 = vrot.lane.b32.xlu0 %v1136, 8
          %v1141 = vpop.permute.xlu0 %1140
          %vm1143 = vcmask 130112
          %1144 = vst.msk [vmem:[#allocation3] sm:$0xff] %vm1143, %v1141
          %1145 = vrot.lane.b32.xlu0 %v1020, 112
          %v1146 = vpop.permute.xlu0 %1145
          %1147 = vrot.lane.b32.xlu0 %v1020, 80
          %v1148 = vpop.permute.xlu0 %1147
          %v1150 = vsel %vm1024, %v1146, 0
          %v1153 = vsel %vm1024, %v1148, 0
          %1155 = vmatpush.bf16.xpose.msra.mxu0 0
          %1156 = vmatpush.bf16.xpose.msra.mxu0 0
          %1157 = vmatpush.bf16.xpose.msra.mxu0 0
          %1158 = vmatpush.bf16.xpose.msra.mxu0 0
          %1159 = vmatpush.bf16.xpose.msra.mxu0 0
          %1160 = vmatpush.bf16.xpose.msra.mxu0 0
          %1161 = vmatpush.bf16.xpose.msra.mxu0 0
          %1162 = vmatpush.bf16.xpose.msra.mxu0 %v1153
          %1163 = vmatmul.bf16.gmra.mxu0 %v1150
          %v1164 = vpop.f32.mrf.mxu0
          %v1165 = vadd.f32 0.0, %v1164
          %v1166 = vpop.f32.mrf.mxu0
          %1167 = vdwg.mxu0
          %v1168 = vmul.f32 %v1165, 0.35355338
          %v1169 = vsel %vm980, %v1168, -1e+10
          %v1170 = vsel %vm1024, %v1169, -inf
          %1171 = vmax.xlane.f32.xlu0 %v1170
          %v1172 = vpop.xlane.xlu0 %1171
          %v1173 = vsub.f32 %v1169, %v1172
          %v1174 = vmul.f32 %v1173, 1.442695
          %v1175 = vpow.pop %v1174
          %v1176 = vsel %vm1024, %v1175, 0.0
          %1177 = vadd.xlane.f32.xlu0 %v1176
          %v1178 = vpop.xlane.xlu0 %1177
          %v1179 = vrcp.pop %v1178
          %v1180 = vmul.f32 %v1175, %v1179
          %v1181 = vpack.c.bf16 %v1180, %v1180
          %1182 = vrot.lane.b32.xlu0 %v1020, 48
          %v1183 = vpop.permute.xlu0 %1182
          %v1185 = vsel %vm1024, %v1181, 0
          %v1188 = vsel %vm1063, %v1183, 0
          %1190 = vmatpush.bf16.msra.mxu0 0
          %1191 = vmatpush.bf16.msra.mxu0 0
          %1192 = vmatpush.bf16.msra.mxu0 0
          %1193 = vmatpush.bf16.msra.mxu0 0
          %1194 = vmatpush.bf16.msra.mxu0 0
          %1195 = vmatpush.bf16.msra.mxu0 0
          %1196 = vmatpush.bf16.msra.mxu0 0
          %1197 = vmatpush.bf16.msra.mxu0 %v1188
          %1198 = vmatmul.bf16.gmra.mxu0 %v1185
          %v1199 = vpop.f32.mrf.mxu0
          %v1200 = vadd.f32 0.0, %v1199
          %v1201 = vpop.f32.mrf.mxu0
          %1202 = vdwg.mxu0
          %1204 = vrot.lane.b32.xlu0 %v1200, 16
          %v1205 = vpop.permute.xlu0 %1204
          %vm1207 = vcmask 195712
          %1208 = vst.msk [vmem:[#allocation3] sm:$0xff] %vm1207, %v1205
          %1209 = vrot.lane.b32.xlu0 %v1020, 104
          %v1210 = vpop.permute.xlu0 %1209
          %1211 = vrot.lane.b32.xlu0 %v1020, 72
          %v1212 = vpop.permute.xlu0 %1211
          %v1214 = vsel %vm1024, %v1210, 0
          %v1217 = vsel %vm1024, %v1212, 0
          %1219 = vmatpush.bf16.xpose.msra.mxu0 0
          %1220 = vmatpush.bf16.xpose.msra.mxu0 0
          %1221 = vmatpush.bf16.xpose.msra.mxu0 0
          %1222 = vmatpush.bf16.xpose.msra.mxu0 0
          %1223 = vmatpush.bf16.xpose.msra.mxu0 0
          %1224 = vmatpush.bf16.xpose.msra.mxu0 0
          %1225 = vmatpush.bf16.xpose.msra.mxu0 0
          %1226 = vmatpush.bf16.xpose.msra.mxu0 %v1217
          %1227 = vmatmul.bf16.gmra.mxu0 %v1214
          %v1228 = vpop.f32.mrf.mxu0
          %v1229 = vadd.f32 0.0, %v1228
          %v1230 = vpop.f32.mrf.mxu0
          %1231 = vdwg.mxu0
          %v1232 = vmul.f32 %v1229, 0.35355338
          %v1233 = vsel %vm980, %v1232, -1e+10
          %v1234 = vsel %vm1024, %v1233, -inf
          %1235 = vmax.xlane.f32.xlu0 %v1234
          %v1236 = vpop.xlane.xlu0 %1235
          %v1237 = vsub.f32 %v1233, %v1236
          %v1238 = vmul.f32 %v1237, 1.442695
          %v1239 = vpow.pop %v1238
          %v1240 = vsel %vm1024, %v1239, 0.0
          %1241 = vadd.xlane.f32.xlu0 %v1240
          %v1242 = vpop.xlane.xlu0 %1241
          %v1243 = vrcp.pop %v1242
          %v1244 = vmul.f32 %v1239, %v1243
          %v1245 = vpack.c.bf16 %v1244, %v1244
          %1246 = vrot.lane.b32.xlu0 %v1020, 40
          %v1247 = vpop.permute.xlu0 %1246
          %v1249 = vsel %vm1024, %v1245, 0
          %v1252 = vsel %vm1063, %v1247, 0
          %1254 = vmatpush.bf16.msra.mxu0 0
          %1255 = vmatpush.bf16.msra.mxu0 0
          %1256 = vmatpush.bf16.msra.mxu0 0
          %1257 = vmatpush.bf16.msra.mxu0 0
          %1258 = vmatpush.bf16.msra.mxu0 0
          %1259 = vmatpush.bf16.msra.mxu0 0
          %1260 = vmatpush.bf16.msra.mxu0 0
          %1261 = vmatpush.bf16.msra.mxu0 %v1252
          %1262 = vmatmul.bf16.gmra.mxu0 %v1249
          %v1263 = vpop.f32.mrf.mxu0
          %v1264 = vadd.f32 0.0, %v1263
          %v1265 = vpop.f32.mrf.mxu0
          %1266 = vdwg.mxu0
          %1268 = vrot.lane.b32.xlu0 %v1264, 24
          %v1269 = vpop.permute.xlu0 %1268
          %vm1271 = vcmask 261312
          %1272 = vst.msk [vmem:[#allocation3] sm:$0xff] %vm1271, %v1269
          %v1273 = vld [vmem:[#allocation3] sm:$0xff]
          %v1274 = vld [vmem:[%s6] sm:$0xf]
          %v1275 = vld [vmem:[%s6 + $0x4] sm:$0xf]
          %v1276 = vld [vmem:[%s6 + $0x8] sm:$0xf]
          %v1277 = vld [vmem:[%s6 + $0xc] sm:$0xf]
          %v1278 = vpack.c.bf16 %v1273, %v1273
          %v1279 = vld [vmem:[%s7] sm:$0x1]
          %v1281 = vperm.slane %v1279, 0
          %v1287 = vunpack.c.l.b16 %v1274
          %v1288 = vunpack.c.l.b16 %v1275
          %v1289 = vunpack.c.l.b16 %v1276
          %v1290 = vunpack.c.l.b16 %v1277
          %v1291 = vpack.c.b16 %v1288, %v1287
          %v1292 = vpack.c.b16 %v1290, %v1289
          %v1296 = vsel %vm1003, %v1278, 0
          %1298 = vmatpush.bf16.msra.mxu0 0
          %1299 = vmatpush.bf16.msra.mxu0 0
          %1300 = vmatpush.bf16.msra.mxu0 0
          %1301 = vmatpush.bf16.msra.mxu0 0
          %1302 = vmatpush.bf16.msra.mxu0 0
          %1303 = vmatpush.bf16.msra.mxu0 0
          %1304 = vmatpush.bf16.msra.mxu0 %v1292
          %1305 = vmatpush.bf16.msra.mxu0 %v1291
          %1306 = vmatmul.bf16.gmra.mxu0 %v1296
          %v1307 = vpop.f32.mrf.mxu0
          %v1308 = vadd.f32 %v1281, %v1307
          %v1309 = vpop.f32.mrf.mxu0
          %1310 = vdwg.mxu0
          %v1311 = vadd.f32 %v969, %v1308
          %v1312 = vld [vmem:[%s8] sm:$0x1]
          %v1313 = vld [vmem:[%s9] sm:$0x1]
          %v1314 = vsel %vm1003, %v1311, 0.0
          %1315 = vadd.xlane.f32.xlu0 %v1314
          %v1316 = vpop.xlane.xlu0 %1315
          %v1317 = vrcp.pop 32.0
          %v1318 = vmul.f32 32.0, %v1317
          %v1319 = vsub.f32 1.0, %v1318
          %v1320 = vmul.f32 %v1317, %v1319
          %v1321 = vadd.f32 %v1317, %v1320
          %vm1322 = vweird.f32 %v1317
          %v1323 = vsel %vm1322, %v1317, %v1321
          %v1324 = vmul.f32 %v1316, %v1323
          %v1325 = vsub.f32 %v1311, %v1324
          %v1326 = vmul.f32 %v1325, %v1325
          %v1327 = vsel %vm1003, %v1326, 0.0
          %1328 = vadd.xlane.f32.xlu0 %v1327
          %v1329 = vpop.xlane.xlu0 %1328
          %v1330 = vmul.f32 %v1329, %v1323
          %v1331 = vadd.f32 %v1330, 1e-05
          %v1332 = vrsqrt.pop %v1331
          %v1333 = vmul.f32 %v1332, %v1331
          %v1334 = vmul.f32 %v1333, %v1332
          %v1335 = vmul.f32 0.5, %v1334
          %v1336 = vsub.f32 1.5, %v1335
          %v1337 = vmul.f32 %v1332, %v1336
          %vm1338 = vweird.f32 %v1331
          %vm1339 = vweird.f32 %v1332
          %vm1340 = vmor %vm1338, %vm1339
          %v1341 = vsel %vm1340, %v1332, %v1337
          %v1342 = vmul.f32 %v1325, %v1341
          %v1344 = vperm.slane %v1312, 0
          %v1346 = vmul.f32 %v1342, %v1344
          %v1348 = vperm.slane %v1313, 0
          %v1350 = vadd.f32 %v1346, %v1348
          %v1351 = vld [vmem:[%s10] sm:$0xf]
          %v1352 = vld [vmem:[%s10 + $0x4] sm:$0xf]
          %v1353 = vld [vmem:[%s10 + $0x8] sm:$0xf]
          %v1354 = vld [vmem:[%s10 + $0xc] sm:$0xf]
          %v1355 = vpack.c.bf16 %v1350, %v1350
          %v1356 = vld [vmem:[%s11] sm:$0x1]
          %v1358 = vperm.slane %v1356, 0
          %v1364 = vunpack.c.l.b16 %v1351
          %v1365 = vunpack.c.l.b16 %v1352
          %v1366 = vunpack.c.l.b16 %v1353
          %v1367 = vunpack.c.l.b16 %v1354
          %v1368 = vpack.c.b16 %v1365, %v1364
          %v1369 = vpack.c.b16 %v1367, %v1366
          %v1373 = vsel %vm1003, %v1355, 0
          %1375 = vmatpush.bf16.msra.mxu0 0
          %1376 = vmatpush.bf16.msra.mxu0 0
          %1377 = vmatpush.bf16.msra.mxu0 0
          %1378 = vmatpush.bf16.msra.mxu0 0
          %1379 = vmatpush.bf16.msra.mxu0 0
          %1380 = vmatpush.bf16.msra.mxu0 0
          %1381 = vmatpush.bf16.msra.mxu0 %v1369
          %1382 = vmatpush.bf16.msra.mxu0 %v1368
          %1383 = vmatmul.bf16.gmra.mxu0 %v1373
          %v1384 = vpop.f32.mrf.mxu0
          %v1385 = vadd.f32 %v1358, %v1384
          %v1386 = vpop.f32.mrf.mxu0
          %1387 = vdwg.mxu0
          %v1388 = vld [vmem:[%s937] sm:$0xf]
          %v1389 = vld [vmem:[%s12] sm:$0xf]
          %v1390 = vld [vmem:[%s12 + $0x4] sm:$0xf]
          %v1391 = vld [vmem:[%s12 + $0x8] sm:$0xf]
          %v1392 = vld [vmem:[%s12 + $0xc] sm:$0xf]
          %v1393 = vld [vmem:[%s13] sm:$0x1]
          %v1395 = vperm.slane %v1393, 0
          %v1401 = vunpack.c.l.b16 %v1389
          %v1402 = vunpack.c.l.b16 %v1390
          %v1403 = vunpack.c.l.b16 %v1391
          %v1404 = vunpack.c.l.b16 %v1392
          %v1405 = vpack.c.b16 %v1402, %v1401
          %v1406 = vpack.c.b16 %v1404, %v1403
          %v1410 = vsel %vm1003, %v1388, 0
          %1412 = vmatpush.bf16.msra.mxu0 0
          %1413 = vmatpush.bf16.msra.mxu0 0
          %1414 = vmatpush.bf16.msra.mxu0 0
          %1415 = vmatpush.bf16.msra.mxu0 0
          %1416 = vmatpush.bf16.msra.mxu0 0
          %1417 = vmatpush.bf16.msra.mxu0 0
          %1418 = vmatpush.bf16.msra.mxu0 %v1406
          %1419 = vmatpush.bf16.msra.mxu0 %v1405
          %1420 = vmatmul.bf16.gmra.mxu0 %v1410
          %v1421 = vpop.f32.mrf.mxu0
          %v1422 = vadd.f32 %v1395, %v1421
          %v1423 = vpop.f32.mrf.mxu0
          %1424 = vdwg.mxu0
          %v1425 = vpack.c.bf16 %v1385, %v1385
          %v1426 = vpack.c.bf16 %v1422, %v1422
          %v1428 = vsel %vm1024, %v1425, 0
          %v1431 = vsel %vm1024, %v1426, 0
          %1433 = vmatpush.bf16.xpose.msra.mxu0 0
          %1434 = vmatpush.bf16.xpose.msra.mxu0 0
          %1435 = vmatpush.bf16.xpose.msra.mxu0 0
          %1436 = vmatpush.bf16.xpose.msra.mxu0 0
          %1437 = vmatpush.bf16.xpose.msra.mxu0 0
          %1438 = vmatpush.bf16.xpose.msra.mxu0 0
          %1439 = vmatpush.bf16.xpose.msra.mxu0 0
          %1440 = vmatpush.bf16.xpose.msra.mxu0 %v1431
          %1441 = vmatmul.bf16.gmra.mxu0 %v1428
          %v1442 = vpop.f32.mrf.mxu0
          %v1443 = vadd.f32 0.0, %v1442
          %v1444 = vpop.f32.mrf.mxu0
          %1445 = vdwg.mxu0
          %v1446 = vmul.f32 %v1443, 0.35355338
          %v1447 = vsel %vm982, 1, 0
          %v1448 = vperm.slane %v1447, 0
          %vm1449 = vcmp.eq.s32.totalorder %v1448, 1
          %v1450 = vsel %vm1449, %v1446, -1e+10
          %v1451 = vsel %vm1024, %v1450, -inf
          %1452 = vmax.xlane.f32.xlu0 %v1451
          %v1453 = vpop.xlane.xlu0 %1452
          %v1454 = vsub.f32 %v1450, %v1453
          %v1455 = vmul.f32 %v1454, 1.442695
          %v1456 = vpow.pop %v1455
          %v1457 = vsel %vm1024, %v1456, 0.0
          %1458 = vadd.xlane.f32.xlu0 %v1457
          %v1459 = vpop.xlane.xlu0 %1458
          %v1460 = vrcp.pop %v1459
          %v1461 = vmul.f32 %v1456, %v1460
          %v1462 = vpack.c.bf16 %v1461, %v1461
          %1464 = vrot.lane.b32.xlu0 %v1426, 96
          %v1465 = vpop.permute.xlu0 %1464
          %v1467 = vsel %vm1024, %v1462, 0
          %v1470 = vsel %vm1063, %v1465, 0
          %1472 = vmatpush.bf16.msra.mxu0 0
          %1473 = vmatpush.bf16.msra.mxu0 0
          %1474 = vmatpush.bf16.msra.mxu0 0
          %1475 = vmatpush.bf16.msra.mxu0 0
          %1476 = vmatpush.bf16.msra.mxu0 0
          %1477 = vmatpush.bf16.msra.mxu0 0
          %1478 = vmatpush.bf16.msra.mxu0 0
          %1479 = vmatpush.bf16.msra.mxu0 %v1470
          %1480 = vmatmul.bf16.gmra.mxu0 %v1467
          %v1481 = vpop.f32.mrf.mxu0
          %v1482 = vadd.f32 0.0, %v1481
          %v1483 = vpop.f32.mrf.mxu0
          %1484 = vdwg.mxu0
          %1485 = vst.msk [vmem:[#allocation3] sm:$0xff] %vm1024, %v1482
          %1487 = vrot.lane.b32.xlu0 %v1425, 120
          %v1488 = vpop.permute.xlu0 %1487
          %1489 = vrot.lane.b32.xlu0 %v1426, 120
          %v1490 = vpop.permute.xlu0 %1489
          %v1492 = vsel %vm1024, %v1488, 0
          %v1495 = vsel %vm1024, %v1490, 0
          %1497 = vmatpush.bf16.xpose.msra.mxu0 0
          %1498 = vmatpush.bf16.xpose.msra.mxu0 0
          %1499 = vmatpush.bf16.xpose.msra.mxu0 0
          %1500 = vmatpush.bf16.xpose.msra.mxu0 0
          %1501 = vmatpush.bf16.xpose.msra.mxu0 0
          %1502 = vmatpush.bf16.xpose.msra.mxu0 0
          %1503 = vmatpush.bf16.xpose.msra.mxu0 0
          %1504 = vmatpush.bf16.xpose.msra.mxu0 %v1495
          %1505 = vmatmul.bf16.gmra.mxu0 %v1492
          %v1506 = vpop.f32.mrf.mxu0
          %v1507 = vadd.f32 0.0, %v1506
          %v1508 = vpop.f32.mrf.mxu0
          %1509 = vdwg.mxu0
          %v1510 = vmul.f32 %v1507, 0.35355338
          %v1511 = vsel %vm1449, %v1510, -1e+10
          %v1512 = vsel %vm1024, %v1511, -inf
          %1513 = vmax.xlane.f32.xlu0 %v1512
          %v1514 = vpop.xlane.xlu0 %1513
          %v1515 = vsub.f32 %v1511, %v1514
          %v1516 = vmul.f32 %v1515, 1.442695
          %v1517 = vpow.pop %v1516
          %v1518 = vsel %vm1024, %v1517, 0.0
          %1519 = vadd.xlane.f32.xlu0 %v1518
          %v1520 = vpop.xlane.xlu0 %1519
          %v1521 = vrcp.pop %v1520
          %v1522 = vmul.f32 %v1517, %v1521
          %v1523 = vpack.c.bf16 %v1522, %v1522
          %1524 = vrot.lane.b32.xlu0 %v1426, 88
          %v1525 = vpop.permute.xlu0 %1524
          %v1527 = vsel %vm1024, %v1523, 0
          %v1530 = vsel %vm1063, %v1525, 0
          %1532 = vmatpush.bf16.msra.mxu0 0
          %1533 = vmatpush.bf16.msra.mxu0 0
          %1534 = vmatpush.bf16.msra.mxu0 0
          %1535 = vmatpush.bf16.msra.mxu0 0
          %1536 = vmatpush.bf16.msra.mxu0 0
          %1537 = vmatpush.bf16.msra.mxu0 0
          %1538 = vmatpush.bf16.msra.mxu0 0
          %1539 = vmatpush.bf16.msra.mxu0 %v1530
          %1540 = vmatmul.bf16.gmra.mxu0 %v1527
          %v1541 = vpop.f32.mrf.mxu0
          %v1542 = vadd.f32 0.0, %v1541
          %v1543 = vpop.f32.mrf.mxu0
          %1544 = vdwg.mxu0
          %1546 = vrot.lane.b32.xlu0 %v1542, 8
          %v1547 = vpop.permute.xlu0 %1546
          %1549 = vst.msk [vmem:[#allocation3] sm:$0xff] %vm1143, %v1547
          %1550 = vrot.lane.b32.xlu0 %v1425, 112
          %v1551 = vpop.permute.xlu0 %1550
          %1552 = vrot.lane.b32.xlu0 %v1426, 112
          %v1553 = vpop.permute.xlu0 %1552
          %v1555 = vsel %vm1024, %v1551, 0
          %v1558 = vsel %vm1024, %v1553, 0
          %1560 = vmatpush.bf16.xpose.msra.mxu0 0
          %1561 = vmatpush.bf16.xpose.msra.mxu0 0
          %1562 = vmatpush.bf16.xpose.msra.mxu0 0
          %1563 = vmatpush.bf16.xpose.msra.mxu0 0
          %1564 = vmatpush.bf16.xpose.msra.mxu0 0
          %1565 = vmatpush.bf16.xpose.msra.mxu0 0
          %1566 = vmatpush.bf16.xpose.msra.mxu0 0
          %1567 = vmatpush.bf16.xpose.msra.mxu0 %v1558
          %1568 = vmatmul.bf16.gmra.mxu0 %v1555
          %v1569 = vpop.f32.mrf.mxu0
          %v1570 = vadd.f32 0.0, %v1569
          %v1571 = vpop.f32.mrf.mxu0
          %1572 = vdwg.mxu0
          %v1573 = vmul.f32 %v1570, 0.35355338
          %v1574 = vsel %vm1449, %v1573, -1e+10
          %v1575 = vsel %vm1024, %v1574, -inf
          %1576 = vmax.xlane.f32.xlu0 %v1575
          %v1577 = vpop.xlane.xlu0 %1576
          %v1578 = vsub.f32 %v1574, %v1577
          %v1579 = vmul.f32 %v1578, 1.442695
          %v1580 = vpow.pop %v1579
          %v1581 = vsel %vm1024, %v1580, 0.0
          %1582 = vadd.xlane.f32.xlu0 %v1581
          %v1583 = vpop.xlane.xlu0 %1582
          %v1584 = vrcp.pop %v1583
          %v1585 = vmul.f32 %v1580, %v1584
          %v1586 = vpack.c.bf16 %v1585, %v1585
          %1587 = vrot.lane.b32.xlu0 %v1426, 80
          %v1588 = vpop.permute.xlu0 %1587
          %v1590 = vsel %vm1024, %v1586, 0
          %v1593 = vsel %vm1063, %v1588, 0
          %1595 = vmatpush.bf16.msra.mxu0 0
          %1596 = vmatpush.bf16.msra.mxu0 0
          %1597 = vmatpush.bf16.msra.mxu0 0
          %1598 = vmatpush.bf16.msra.mxu0 0
          %1599 = vmatpush.bf16.msra.mxu0 0
          %1600 = vmatpush.bf16.msra.mxu0 0
          %1601 = vmatpush.bf16.msra.mxu0 0
          %1602 = vmatpush.bf16.msra.mxu0 %v1593
          %1603 = vmatmul.bf16.gmra.mxu0 %v1590
          %v1604 = vpop.f32.mrf.mxu0
          %v1605 = vadd.f32 0.0, %v1604
          %v1606 = vpop.f32.mrf.mxu0
          %1607 = vdwg.mxu0
          %1609 = vrot.lane.b32.xlu0 %v1605, 16
          %v1610 = vpop.permute.xlu0 %1609
          %1612 = vst.msk [vmem:[#allocation3] sm:$0xff] %vm1207, %v1610
          %1613 = vrot.lane.b32.xlu0 %v1425, 104
          %v1614 = vpop.permute.xlu0 %1613
          %1615 = vrot.lane.b32.xlu0 %v1426, 104
          %v1616 = vpop.permute.xlu0 %1615
          %v1618 = vsel %vm1024, %v1614, 0
          %v1621 = vsel %vm1024, %v1616, 0
          %1623 = vmatpush.bf16.xpose.msra.mxu0 0
          %1624 = vmatpush.bf16.xpose.msra.mxu0 0
          %1625 = vmatpush.bf16.xpose.msra.mxu0 0
          %1626 = vmatpush.bf16.xpose.msra.mxu0 0
          %1627 = vmatpush.bf16.xpose.msra.mxu0 0
          %1628 = vmatpush.bf16.xpose.msra.mxu0 0
          %1629 = vmatpush.bf16.xpose.msra.mxu0 0
          %1630 = vmatpush.bf16.xpose.msra.mxu0 %v1621
          %1631 = vmatmul.bf16.gmra.mxu0 %v1618
          %v1632 = vpop.f32.mrf.mxu0
          %v1633 = vadd.f32 0.0, %v1632
          %v1634 = vpop.f32.mrf.mxu0
          %1635 = vdwg.mxu0
          %v1636 = vmul.f32 %v1633, 0.35355338
          %v1637 = vsel %vm1449, %v1636, -1e+10
          %v1638 = vsel %vm1024, %v1637, -inf
          %1639 = vmax.xlane.f32.xlu0 %v1638
          %v1640 = vpop.xlane.xlu0 %1639
          %v1641 = vsub.f32 %v1637, %v1640
          %v1642 = vmul.f32 %v1641, 1.442695
          %v1643 = vpow.pop %v1642
          %v1644 = vsel %vm1024, %v1643, 0.0
          %1645 = vadd.xlane.f32.xlu0 %v1644
          %v1646 = vpop.xlane.xlu0 %1645
          %v1647 = vrcp.pop %v1646
          %v1648 = vmul.f32 %v1643, %v1647
          %v1649 = vpack.c.bf16 %v1648, %v1648
          %1650 = vrot.lane.b32.xlu0 %v1426, 72
          %v1651 = vpop.permute.xlu0 %1650
          %v1653 = vsel %vm1024, %v1649, 0
          %v1656 = vsel %vm1063, %v1651, 0
          %1658 = vmatpush.bf16.msra.mxu0 0
          %1659 = vmatpush.bf16.msra.mxu0 0
          %1660 = vmatpush.bf16.msra.mxu0 0
          %1661 = vmatpush.bf16.msra.mxu0 0
          %1662 = vmatpush.bf16.msra.mxu0 0
          %1663 = vmatpush.bf16.msra.mxu0 0
          %1664 = vmatpush.bf16.msra.mxu0 0
          %1665 = vmatpush.bf16.msra.mxu0 %v1656
          %1666 = vmatmul.bf16.gmra.mxu0 %v1653
          %v1667 = vpop.f32.mrf.mxu0
          %v1668 = vadd.f32 0.0, %v1667
          %v1669 = vpop.f32.mrf.mxu0
          %1670 = vdwg.mxu0
          %1672 = vrot.lane.b32.xlu0 %v1668, 24
          %v1673 = vpop.permute.xlu0 %1672
          %1675 = vst.msk [vmem:[#allocation3] sm:$0xff] %vm1271, %v1673
          %v1676 = vld [vmem:[#allocation3] sm:$0xff]
          %v1677 = vld [vmem:[%s14] sm:$0xf]
          %v1678 = vld [vmem:[%s14 + $0x4] sm:$0xf]
          %v1679 = vld [vmem:[%s14 + $0x8] sm:$0xf]
          %v1680 = vld [vmem:[%s14 + $0xc] sm:$0xf]
          %v1681 = vpack.c.bf16 %v1676, %v1676
          %v1682 = vld [vmem:[%s15] sm:$0x1]
          %v1684 = vperm.slane %v1682, 0
          %v1690 = vunpack.c.l.b16 %v1677
          %v1691 = vunpack.c.l.b16 %v1678
          %v1692 = vunpack.c.l.b16 %v1679
          %v1693 = vunpack.c.l.b16 %v1680
          %v1694 = vpack.c.b16 %v1691, %v1690
          %v1695 = vpack.c.b16 %v1693, %v1692
          %v1699 = vsel %vm1003, %v1681, 0
          %1701 = vmatpush.bf16.msra.mxu0 0
          %1702 = vmatpush.bf16.msra.mxu0 0
          %1703 = vmatpush.bf16.msra.mxu0 0
          %1704 = vmatpush.bf16.msra.mxu0 0
          %1705 = vmatpush.bf16.msra.mxu0 0
          %1706 = vmatpush.bf16.msra.mxu0 0
          %1707 = vmatpush.bf16.msra.mxu0 %v1695
          %1708 = vmatpush.bf16.msra.mxu0 %v1694
          %1709 = vmatmul.bf16.gmra.mxu0 %v1699
          %v1710 = vpop.f32.mrf.mxu0
          %v1711 = vadd.f32 %v1684, %v1710
          %v1712 = vpop.f32.mrf.mxu0
          %1713 = vdwg.mxu0
          %v1714 = vadd.f32 %v1350, %v1711
          %v1715 = vld [vmem:[#allocation4] sm:$0x1]
          %v1716 = vld [vmem:[#allocation6] sm:$0x1]
          %v1717 = vsel %vm1003, %v1714, 0.0
          %1718 = vadd.xlane.f32.xlu0 %v1717
          %v1719 = vpop.xlane.xlu0 %1718
          %v1720 = vmul.f32 %v1719, %v1323
          %v1721 = vsub.f32 %v1714, %v1720
          %v1722 = vmul.f32 %v1721, %v1721
          %v1723 = vsel %vm1003, %v1722, 0.0
          %1724 = vadd.xlane.f32.xlu0 %v1723
          %v1725 = vpop.xlane.xlu0 %1724
          %v1726 = vmul.f32 %v1725, %v1323
          %v1727 = vadd.f32 %v1726, 1e-05
          %v1728 = vrsqrt.pop %v1727
          %v1729 = vmul.f32 %v1728, %v1727
          %v1730 = vmul.f32 %v1729, %v1728
          %v1731 = vmul.f32 0.5, %v1730
          %v1732 = vsub.f32 1.5, %v1731
          %v1733 = vmul.f32 %v1728, %v1732
          %vm1734 = vweird.f32 %v1727
          %vm1735 = vweird.f32 %v1728
          %vm1736 = vmor %vm1734, %vm1735
          %v1737 = vsel %vm1736, %v1728, %v1733
          %v1738 = vmul.f32 %v1721, %v1737
          %v1740 = vperm.slane %v1715, 0
          %v1742 = vmul.f32 %v1738, %v1740
          %v1744 = vperm.slane %v1716, 0
          %v1746 = vadd.f32 %v1742, %v1744
          %1747 = vst.msk [vmem:[#allocation2] sm:$0xff] %vm1003, %v1746
          %1748 = vst.msk [vmem:[#allocation3] sm:$0xff] %vm1003, 0.0
          %vm1749 = vcmask 60416
          %1750 = vst.msk [vmem:[%s962] sm:$0xf] %vm1749, %v1462
          %s1751 = scalar_lea.vmem %s962, 4
          %1752 = vst.msk [vmem:[%s1751] sm:$0xf] %vm1749, %v1523
          %s1753 = scalar_lea.vmem %s962, 8
          %1754 = vst.msk [vmem:[%s1753] sm:$0xf] %vm1749, %v1586
          %s1755 = scalar_lea.vmem %s962, 12
          %1756 = vst.msk [vmem:[%s1755] sm:$0xf] %vm1749, %v1649
        $region144: #{decoder_forward.4} parent=115 // pred_fallthru
          _
        %v1757 = vld [vmem:[#allocation2] sm:$0xff]
        %v1758 = vld [vmem:[%s947] sm:$0xf]
        %v1759 = vld [vmem:[%s947 + $0x4] sm:$0xf]
        %v1760 = vld [vmem:[%s947 + $0x8] sm:$0xf]
        %v1761 = vld [vmem:[%s947 + $0xc] sm:$0xf]
        %v1762 = vpack.c.bf16 %v1757, %v1757
        %v1763 = vld [vmem:[#allocation8] sm:$0x1]
        %v1765 = vperm.slane %v1763, 0
        %v1771 = vunpack.c.l.b16 %v1758
        %v1772 = vunpack.c.l.b16 %v1759
        %v1773 = vunpack.c.l.b16 %v1760
        %v1774 = vunpack.c.l.b16 %v1761
        %v1775 = vpack.c.b16 %v1772, %v1771
        %v1776 = vpack.c.b16 %v1774, %v1773
        %vm1779 = vcmask 261120
        %v1781 = vsel %vm1779, %v1762, 0
        %1783 = vmatpush.bf16.msra.mxu0 0
        %1784 = vmatpush.bf16.msra.mxu0 0
        %1785 = vmatpush.bf16.msra.mxu0 0
        %1786 = vmatpush.bf16.msra.mxu0 0
        %1787 = vmatpush.bf16.msra.mxu0 0
        %1788 = vmatpush.bf16.msra.mxu0 0
        %1789 = vmatpush.bf16.msra.mxu0 %v1776
        %1790 = vmatpush.bf16.msra.mxu0 %v1775
        %1791 = vmatmul.bf16.gmra.mxu0 %v1781
        %v1792 = vpop.f32.mrf.mxu0
        %v1793 = vadd.f32 %v1765, %v1792
        %v1794 = vpop.f32.mrf.mxu0
        %1795 = vdwg.mxu0
        %v1796 = vmax.f32 %v1793, 0.0
        %v1797 = vld [vmem:[#allocation3] sm:$0xff]
        %v1798 = vld [vmem:[%s952] sm:$0xf]
        %v1799 = vld [vmem:[%s952 + $0x4] sm:$0xf]
        %v1800 = vld [vmem:[%s952 + $0x8] sm:$0xf]
        %v1801 = vld [vmem:[%s952 + $0xc] sm:$0xf]
        %v1802 = vld [vmem:[%s952 + $0x10] sm:$0xf]
        %v1803 = vld [vmem:[%s952 + $0x14] sm:$0xf]
        %v1804 = vld [vmem:[%s952 + $0x18] sm:$0xf]
        %v1805 = vld [vmem:[%s952 + $0x1c] sm:$0xf]
        %v1806 = vpack.c.bf16 %v1796, %v1796
        %v1815 = vunpack.c.l.b16 %v1798
        %v1816 = vunpack.c.l.b16 %v1799
        %v1817 = vunpack.c.l.b16 %v1800
        %v1818 = vunpack.c.l.b16 %v1801
        %v1819 = vunpack.c.l.b16 %v1802
        %v1820 = vunpack.c.l.b16 %v1803
        %v1821 = vunpack.c.l.b16 %v1804
        %v1822 = vunpack.c.l.b16 %v1805
        %v1823 = vpack.c.b16 %v1816, %v1815
        %v1824 = vpack.c.b16 %v1818, %v1817
        %v1825 = vpack.c.b16 %v1820, %v1819
        %v1826 = vpack.c.b16 %v1822, %v1821
        %vm1831 = vcmask 523264
        %v1833 = vsel %vm1831, %v1806, 0
        %1835 = vmatpush.bf16.msra.mxu0 0
        %1836 = vmatpush.bf16.msra.mxu0 0
        %1837 = vmatpush.bf16.msra.mxu0 0
        %1838 = vmatpush.bf16.msra.mxu0 0
        %1839 = vmatpush.bf16.msra.mxu0 %v1826
        %1840 = vmatpush.bf16.msra.mxu0 %v1825
        %1841 = vmatpush.bf16.msra.mxu0 %v1824
        %1842 = vmatpush.bf16.msra.mxu0 %v1823
        %1843 = vmatmul.bf16.gmra.mxu0 %v1833
        %v1844 = vpop.f32.mrf.mxu0
        %v1845 = vadd.f32 0.0, %v1844
        %v1846 = vpop.f32.mrf.mxu0
        %1847 = vdwg.mxu0
        %v1848 = vadd.f32 %v1797, %v1845
        %1849 = vst.msk [vmem:[#allocation3] sm:$0xff] %vm1779, %v1848
        // Predicated region
        $region145: #{decoder_forward.4} parent=115 // pred_check
          %p1850 = pneg %p964
        $region146: #{decoder_forward.4} parent=115 // pred_check_branch
          %1852 = sbr.rel (%p1850) target = $region148
        $region147: #{decoder_forward.4} parent=115 // pred_region
          %v1853 = vld [vmem:[#allocation2] sm:$0xff]
          %v1854 = vld [vmem:[#allocation3] sm:$0xff]
          %v1855 = vadd.f32 %v1853, %v1854
          %v1856 = vld [vmem:[#allocation9] sm:$0x1]
          %v1858 = vperm.slane %v1856, 0
          %v1860 = vadd.f32 %v1855, %v1858
          %v1861 = vld [vmem:[#allocation11] sm:$0x1]
          %v1862 = vld [vmem:[#allocation12] sm:$0x1]
          %v1863 = vsel %vm1779, %v1860, 0.0
          %1864 = vadd.xlane.f32.xlu0 %v1863
          %v1865 = vpop.xlane.xlu0 %1864
          %v1866 = vrcp.pop 32.0
          %v1867 = vmul.f32 32.0, %v1866
          %v1868 = vsub.f32 1.0, %v1867
          %v1869 = vmul.f32 %v1866, %v1868
          %v1870 = vadd.f32 %v1866, %v1869
          %vm1871 = vweird.f32 %v1866
          %v1872 = vsel %vm1871, %v1866, %v1870
          %v1873 = vmul.f32 %v1865, %v1872
          %v1874 = vsub.f32 %v1860, %v1873
          %v1875 = vmul.f32 %v1874, %v1874
          %v1876 = vsel %vm1779, %v1875, 0.0
          %1877 = vadd.xlane.f32.xlu0 %v1876
          %v1878 = vpop.xlane.xlu0 %1877
          %v1879 = vmul.f32 %v1878, %v1872
          %v1880 = vadd.f32 %v1879, 1e-05
          %v1881 = vrsqrt.pop %v1880
          %v1882 = vmul.f32 %v1881, %v1880
          %v1883 = vmul.f32 %v1882, %v1881
          %v1884 = vmul.f32 0.5, %v1883
          %v1885 = vsub.f32 1.5, %v1884
          %v1886 = vmul.f32 %v1881, %v1885
          %vm1887 = vweird.f32 %v1880
          %vm1888 = vweird.f32 %v1881
          %vm1889 = vmor %vm1887, %vm1888
          %v1890 = vsel %vm1889, %v1881, %v1886
          %v1891 = vmul.f32 %v1874, %v1890
          %v1893 = vperm.slane %v1861, 0
          %v1895 = vmul.f32 %v1891, %v1893
          %v1897 = vperm.slane %v1862, 0
          %v1899 = vadd.f32 %v1895, %v1897
          %v1900 = vpack.c.bf16 %v1899, %v1899
          %vm1901 = vcmask 257024
          %1902 = vst.msk [vmem:[%s957] sm:$0xf] %vm1901, %v1900
        $region148: #{decoder_forward.4} parent=115 // pred_fallthru
          _
        %p1903 = scmp.lt.s32.totalorder %s45, 1
        %s1904 = scalar_select %p1903, %s45, 1
        %s1905 = smul.addr %s1904, 4
        %s1906 = scalar_lea.vmem %s24, %s1905
        %p1907 = scmp.lt.s32.totalorder %s45, 1
        %s1908 = scalar_select %p1907, %s45, 1
        %s1909 = smul.addr %s1908, 4
        %s1910 = smul.addr %s1909, 4
        %s1911 = scalar_lea.vmem %s25, %s1910
        // Predicated region
        $region149: #{decoder_forward.4} parent=115 // pred_check
          %p1912 = pneg %p610
        $region150: #{decoder_forward.4} parent=115 // pred_check_branch
          %1914 = sbr.rel (%p1912) target = $region152
        $region151: #{decoder_forward.4} parent=115 // pred_region
          _
        $region152: #{decoder_forward.4} parent=115 // pred_fallthru
          _
        // Predicated region
        $region153: #{decoder_forward.4} parent=115 // pred_check
          %p1915 = pneg %p636
        $region154: #{decoder_forward.4} parent=115 // pred_check_branch
          %1917 = sbr.rel (%p1915) target = $region156
        $region155: #{decoder_forward.4} parent=115 // pred_region
          _
        $region156: #{decoder_forward.4} parent=115 // pred_fallthru
          _
      $region116: #{decoder_forward.4} parent=5 // pred_fallthru
        _
      %p1918 = scmp.le.s32.totalorder 2, %s36
      // Predicated region
      $region157: #{decoder_forward.4} parent=5 // pred_check
        %p1919 = pneg %p1918
      $region158: #{decoder_forward.4} parent=5 // pred_check_branch
        %1921 = sbr.rel (%p1919) target = $region160
      $region159: #{decoder_forward.4} parent=5 // pred_region
        %s1922 = ssub.s32 %s36, 2
        // Predicated region
        $region161: #{decoder_forward.4} parent=159 // pred_check
          %p1923 = pneg %p616
        $region162: #{decoder_forward.4} parent=159 // pred_check_branch
          %1925 = sbr.rel (%p1923) target = $region164
        $region163: #{decoder_forward.4} parent=159 // pred_region
          %p1926 = scmp.lt.s32.totalorder %s47, 1
          %s1927 = scalar_select %p1926, %s47, 1
          %s1928 = smul.addr %s1927, 4
          %s1929 = scalar_lea.vmem %s24, %s1928
        $region164: #{decoder_forward.4} parent=159 // pred_fallthru
          _
        // Predicated region
        $region165: #{decoder_forward.4} parent=159 // pred_check
          %p1930 = pneg %p642
        $region166: #{decoder_forward.4} parent=159 // pred_check_branch
          %1932 = sbr.rel (%p1930) target = $region168
        $region167: #{decoder_forward.4} parent=159 // pred_region
          %p1933 = scmp.lt.s32.totalorder %s47, 1
          %s1934 = scalar_select %p1933, %s47, 1
          %s1935 = smul.addr %s1934, 4
          %s1936 = smul.addr %s1935, 4
          %s1937 = scalar_lea.vmem %s25, %s1936
        $region168: #{decoder_forward.4} parent=159 // pred_fallthru
          _
      $region160: #{decoder_forward.4} parent=5 // pred_fallthru
        _
    $region6: #{decoder_forward.4} parent=1 // loop_footer
      %s40 = sadd.s32 1, %s36
    $region7: #{decoder_forward.4} parent=1 // loop_footer_branch
      %35 = sbr.rel target = $region3
    $region8: #{decoder_forward.4} parent=1 // loop_exit
      _
    %1938 = vsyncpa [#allocation5], 1
    %s1939 = scalar_lea.sflag [#allocation5], 1
    %1940 = vsyncpa %s1939, 1
    %1941 = vsyncpa [#allocation7], 1
    %1942 = vsyncpa [#allocation10], 1
    %1943 = vsyncpa [#allocation13], 1

</llo_original>
